<compile_context>
chip_gen: v5e
topology: v5e:2x2
jax: 0.10.0
libtpu: 0.0.40
codegen_flags: <defaults>
</compile_context>

<pallas_src>
import functools

import jax
import jax.numpy as jnp
from jax.experimental import pallas as pl
from jax.experimental.pallas import tpu as pltpu


# -----------------------------------------------------------------------------
# Helpers
# -----------------------------------------------------------------------------
def _round_up(x, m):
    return ((x + m - 1) // m) * m


def _cdiv(a, b):
    return (a + b - 1) // b


def _row_tile(m, cap):
    """Row tile: multiple of 16, <= cap, >= 2 grid steps when possible (v7x)."""
    return int(min(cap, max(16, _round_up(_cdiv(m, 2), 16))))


def _compiler_params(vmem_bytes):
    return pltpu.CompilerParams(
        dimension_semantics=("parallel",),
        vmem_limit_bytes=int(min(2 * vmem_bytes + (16 << 20), 48 << 20)),
    )


# -----------------------------------------------------------------------------
# Pallas kernels
# -----------------------------------------------------------------------------
def _conv1_kernel(x_ref, w_ref, b_ref, o_ref):
    """Conv1 (5x5, 1->16) + bias + ReLU + 2x2 max-pool, one MXU push.

    x_ref: (TM, 128) bf16 -- pooled-phase im2col rows, lanes = 4 phases x 32 taps
    w_ref: (128, 64) bf16 -- block-diagonal conv weight (phase p -> lanes [16p,16p+16))
    b_ref: (1, 16)   f32
    o_ref: (TM, 16)  bf16 -- pooled rows
    """
    y = jnp.dot(x_ref[...], w_ref[...], preferred_element_type=jnp.float32)  # (TM, 64)
    m = jnp.maximum(jnp.maximum(y[:, 0:16], y[:, 16:32]),
                    jnp.maximum(y[:, 32:48], y[:, 48:64]))   # max over the 4 pool phases
    o_ref[...] = jnp.maximum(m + b_ref[...], 0.0).astype(o_ref.dtype)


def _conv2_kernel(x_ref, w_ref, b_ref, o_ref, *, hout, wout, kh, kdj, cout):
    """Conv2 (5x5, 16->32) + bias + ReLU + 2x2 max-pool, implicit GEMM over kh.

    x_ref: (NB, (hout+kh-1)*wout, kdj) bf16 -- rows = (padded row r, conv column w
           in dx-major order [even w's then odd w's]); lanes = (kw tap dj, c_in).
    w_ref: (kh, kdj, cout) bf16
    b_ref: (1, cout)       f32
    o_ref: (NB, (hout//2)*(wout//2), cout) bf16 -- pooled rows (ho, wo)
    """
    nb = x_ref.shape[0]
    x = x_ref[...]
    w = w_ref[...]
    m = hout * wout
    acc = jnp.zeros((nb, m, cout), jnp.float32)
    for di in range(kh):                                   # accumulate kernel-row taps
        xs = x[:, di * wout: di * wout + m, :]             # (NB, m, kdj)
        wd = jnp.broadcast_to(w[di], (nb, kdj, cout))      # batched-matmul RHS
        acc = acc + jnp.einsum("nmk,nko->nmo", xs, wd,
                               preferred_element_type=jnp.float32)
    acc = jnp.maximum(acc + b_ref[...], 0.0)               # bias + ReLU once, post-acc
    # 2x2 max-pool: conv rows are ordered (h, dx, wo) -> every pooling partner is a
    # contiguous (unstrided) row slice.
    half = wout // 2
    for ho in range(hout // 2):
        r0 = acc[:, (2 * ho) * wout: (2 * ho) * wout + wout, :]
        r1 = acc[:, (2 * ho + 1) * wout: (2 * ho + 1) * wout + wout, :]
        mrow = jnp.maximum(r0, r1)
        pooled = jnp.maximum(mrow[:, 0:half, :], mrow[:, half:wout, :])
        o_ref[:, ho * half:(ho + 1) * half, :] = pooled.astype(o_ref.dtype)


def _mlp_softmax_kernel(x_ref, w3_ref, b3_ref, w4_ref, b4_ref, o_ref):
    """Fused Linear(1568,256)+ReLU -> Linear(256,out)+softmax (out padded to 128)."""
    h = jnp.dot(x_ref[...], w3_ref[...], preferred_element_type=jnp.float32)
    h = jnp.maximum(h + b3_ref[...], 0.0)
    z = jnp.dot(h.astype(jnp.bfloat16), w4_ref[...],
                preferred_element_type=jnp.float32) + b4_ref[...]
    zmax = jnp.max(z, axis=-1, keepdims=True)
    e = jnp.exp(z - zmax)                                  # padded classes: exp(-1e30)=0
    o_ref[...] = e / jnp.sum(e, axis=-1, keepdims=True)


# -----------------------------------------------------------------------------
# Wrappers (row/batch tiled pallas_calls)
# -----------------------------------------------------------------------------
def conv1_fused(cols, w_bd, b, *, tile_cap=512):
    M, K = cols.shape                 # K = 128
    C = b.shape[0]                    # 16
    TM = _row_tile(M, tile_cap)
    Mp = _round_up(M, TM)
    if Mp != M:
        cols = jnp.pad(cols, ((0, Mp - M), (0, 0)))
    vmem = 2 * (TM * 128 * 2 + TM * 128 * 2) + TM * 128 * 4 + K * 128 * 2
    out = pl.pallas_call(
        _conv1_kernel,
        out_shape=jax.ShapeDtypeStruct((Mp, C), jnp.bfloat16),
        grid=(Mp // TM,),
        in_specs=[pl.BlockSpec((TM, K), lambda i: (i, 0)),
                  pl.BlockSpec((K, 4 * C), lambda i: (0, 0)),
                  pl.BlockSpec((1, C), lambda i: (0, 0))],
        out_specs=pl.BlockSpec((TM, C), lambda i: (i, 0)),
        compiler_params=_compiler_params(vmem),
        cost_estimate=pl.CostEstimate(
            flops=2 * Mp * K * 4 * C, transcendentals=0,
            bytes_accessed=Mp * K * 2 + K * 4 * C * 2 + Mp * C * 2),
    )(cols.astype(jnp.bfloat16), w_bd.astype(jnp.bfloat16),
      b.reshape(1, C).astype(jnp.float32))
    return out[:M]


def conv2_fused(u, w_taps, b, *, nb_cap=32):
    N, R, Kdj = u.shape               # (N, 252, 80)
    KH, _, C = w_taps.shape           # (5, 80, 32)
    HOUT = WOUT = 14
    assert R == (HOUT + KH - 1) * WOUT and Kdj == KH * 16
    NB = int(max(1, min(nb_cap, _cdiv(N, 2))))
    Np = _round_up(N, NB)
    if Np != N:
        u = jnp.pad(u, ((0, Np - N), (0, 0), (0, 0)))
    prows = (HOUT // 2) * (WOUT // 2)  # 49
    vmem = (2 * (NB * R * 128 * 2 + NB * prows * 128 * 2)
            + 2 * NB * HOUT * WOUT * 128 * 4)
    kernel = functools.partial(_conv2_kernel, hout=HOUT, wout=WOUT, kh=KH,
                               kdj=Kdj, cout=C)
    out = pl.pallas_call(
        kernel,
        out_shape=jax.ShapeDtypeStruct((Np, prows, C), jnp.bfloat16),
        grid=(Np // NB,),
        in_specs=[pl.BlockSpec((NB, R, Kdj), lambda i: (i, 0, 0)),
                  pl.BlockSpec((KH, Kdj, C), lambda i: (0, 0, 0)),
                  pl.BlockSpec((1, C), lambda i: (0, 0))],
        out_specs=pl.BlockSpec((NB, prows, C), lambda i: (i, 0, 0)),
        compiler_params=_compiler_params(vmem),
        cost_estimate=pl.CostEstimate(
            flops=2 * Np * KH * HOUT * WOUT * Kdj * C, transcendentals=0,
            bytes_accessed=Np * R * Kdj * 2 + KH * Kdj * C * 2 + Np * prows * C * 2),
    )(u.astype(jnp.bfloat16), w_taps.astype(jnp.bfloat16),
      b.reshape(1, C).astype(jnp.float32))
    return out[:N]


def mlp_softmax(x, w3, b3, w4p, b4p, out_dim, *, tile_cap=256):
    M, K = x.shape                    # K = 1568
    H = w3.shape[1]                   # 256
    NP = w4p.shape[1]                 # 128 (padded classes)
    TM = _row_tile(M, tile_cap)
    Mp = _round_up(M, TM)
    if Mp != M:
        x = jnp.pad(x, ((0, Mp - M), (0, 0)))
    vmem = 2 * (TM * K * 2 + TM * NP * 4) + K * H * 2 + H * NP * 2 + 2 * TM * H * 4
    out = pl.pallas_call(
        _mlp_softmax_kernel,
        out_shape=jax.ShapeDtypeStruct((Mp, NP), jnp.float32),
        grid=(Mp // TM,),
        in_specs=[pl.BlockSpec((TM, K), lambda i: (i, 0)),
                  pl.BlockSpec((K, H), lambda i: (0, 0)),
                  pl.BlockSpec((1, H), lambda i: (0, 0)),
                  pl.BlockSpec((H, NP), lambda i: (0, 0)),
                  pl.BlockSpec((1, NP), lambda i: (0, 0))],
        out_specs=pl.BlockSpec((TM, NP), lambda i: (i, 0)),
        compiler_params=_compiler_params(vmem),
        cost_estimate=pl.CostEstimate(
            flops=2 * Mp * (K * H + H * NP), transcendentals=Mp * NP,
            bytes_accessed=Mp * K * 2 + K * H * 2 + H * NP * 2 + Mp * NP * 4),
    )(x.astype(jnp.bfloat16), w3.astype(jnp.bfloat16),
      b3.reshape(1, H).astype(jnp.float32),
      w4p.astype(jnp.bfloat16), b4p.reshape(1, NP).astype(jnp.float32))
    return out[:M, :out_dim]


# -----------------------------------------------------------------------------
# XLA-side patch prep (cheap, feeds the kernels)
# -----------------------------------------------------------------------------
def conv1_im2col_pooled(x_nhwc):
    """(N,28,28,1) -> (N*196, 128): rows=(n,ho,wo); lanes = 4 pool phases x
    (25 5x5 taps zero-padded to 32); phase p = dy*2+dx, tap k = ki*5+kj."""
    N, H, W, C = x_nhwc.shape
    Ho, Wo = H // 2, W // 2
    xp = jnp.pad(x_nhwc, ((0, 0), (2, 2), (2, 2), (0, 0)))
    groups = []
    for dy in (0, 1):
        for dx in (0, 1):
            taps = [xp[:, dy + ki: dy + ki + 2 * Ho: 2,
                       dx + kj: dx + kj + 2 * Wo: 2, :]
                    for ki in range(5) for kj in range(5)]
            g = jnp.concatenate(taps, axis=-1)                     # (N,Ho,Wo,25)
            g = jnp.pad(g, ((0, 0), (0, 0), (0, 0), (0, 32 - 25 * C)))
            groups.append(g)
    cols = jnp.concatenate(groups, axis=-1)                        # (N,Ho,Wo,128)
    return cols.reshape(N * Ho * Wo, 128)


def conv2_unfold_rows(y_nhwc):
    """(N,14,14,16) -> (N, 18*14, 80): rows = (padded row r, conv column w in
    dx-major order), lanes = (kw tap dj, c_in)."""
    N, H, W, C = y_nhwc.shape
    yp = jnp.pad(y_nhwc, ((0, 0), (2, 2), (2, 2), (0, 0)))         # (N,18,18,16)
    taps = [yp[:, :, dj: dj + W, :] for dj in range(5)]
    u = jnp.concatenate(taps, axis=-1)                             # (N,18,14,80)
    u = jnp.concatenate([u[:, :, 0::2, :], u[:, :, 1::2, :]], axis=2)  # dx-major cols
    return u.reshape(N, (H + 4) * W, 5 * C)


# -----------------------------------------------------------------------------
# Parameters
# -----------------------------------------------------------------------------
def init_params(key, out_dim=10):
    ks = jax.random.split(key, 8)
    s = 0.05
    return {
        "conv1_w": s * jax.random.normal(ks[0], (16, 1, 5, 5), jnp.float32),
        "conv1_b": s * jax.random.normal(ks[1], (16,), jnp.float32),
        "conv2_w": s * jax.random.normal(ks[2], (32, 16, 5, 5), jnp.float32),
        "conv2_b": s * jax.random.normal(ks[3], (32,), jnp.float32),
        "fc1_w": s * jax.random.normal(ks[4], (256, 7 * 7 * 32), jnp.float32),
        "fc1_b": s * jax.random.normal(ks[5], (256,), jnp.float32),
        "fc2_w": s * jax.random.normal(ks[6], (out_dim, 256), jnp.float32),
        "fc2_b": s * jax.random.normal(ks[7], (out_dim,), jnp.float32),
    }


def prepare_params(p):
    out_dim = p["fc2_w"].shape[0]
    # conv1: (16,1,5,5) -> (25,16) -> pad K to 32 -> block-diag over 4 pool phases.
    w1 = jnp.transpose(p["conv1_w"], (2, 3, 1, 0)).reshape(25, 16)
    w1 = jnp.pad(w1, ((0, 7), (0, 0)))
    w1 = jnp.kron(jnp.eye(4, dtype=w1.dtype), w1)                  # (128, 64)
    # conv2: (32,16,5,5) -> (kh=5, kw*C=80, 32) matching the kw-unfolded lanes.
    w2 = jnp.transpose(p["conv2_w"], (2, 3, 1, 0)).reshape(5, 80, 32)
    # fc1: permute its 1568 input features from NCHW (c,h,w) to NHWC (h,w,c) order
    # so the post-conv2 flatten is a plain (free) reshape.
    w3 = p["fc1_w"].reshape(256, 32, 7, 7)
    w3 = jnp.transpose(w3, (2, 3, 1, 0)).reshape(7 * 7 * 32, 256)  # (1568, 256)
    # fc2: (out,256) -> (256,out), zero-pad classes to 128 lanes; padded-class biases
    # are -1e30 so they contribute exp() == 0 to the fused softmax.
    npad = max(128, _round_up(out_dim, 128))
    w4 = jnp.pad(jnp.transpose(p["fc2_w"]), ((0, 0), (0, npad - out_dim)))
    b4 = jnp.pad(p["fc2_b"], (0, npad - out_dim), constant_values=-1e30)
    return {
        "w1": w1.astype(jnp.bfloat16), "b1": p["conv1_b"].astype(jnp.float32),
        "w2": w2.astype(jnp.bfloat16), "b2": p["conv2_b"].astype(jnp.float32),
        "w3": w3.astype(jnp.bfloat16), "b3": p["fc1_b"].astype(jnp.float32),
        "w4": w4.astype(jnp.bfloat16), "b4": b4.astype(jnp.float32),
    }


# -----------------------------------------------------------------------------
# Forward pass (matches ConvNet.forward semantics)
# -----------------------------------------------------------------------------
@functools.partial(jax.jit, static_argnames=("out_dim",))
def convnet_forward(x_nchw, params, out_dim=10):
    N = x_nchw.shape[0]
    x = jnp.transpose(x_nchw, (0, 2, 3, 1)).astype(jnp.bfloat16)   # NHWC bf16

    # layer1: Conv2d(1,16,5,pad=2)+ReLU+MaxPool2d(2) -- one fused Pallas kernel.
    cols = conv1_im2col_pooled(x)                                  # (N*196, 128)
    y = conv1_fused(cols, params["w1"], params["b1"])              # (N*196, 16) bf16
    y = y.reshape(N, 14, 14, 16)

    # layer2: Conv2d(16,32,5,pad=2)+ReLU+MaxPool2d(2) -- implicit-GEMM fused kernel.
    u = conv2_unfold_rows(y)                                       # (N, 252, 80)
    y = conv2_fused(u, params["w2"], params["b2"])                 # (N, 49, 32) bf16

    # torch.flatten(x, 1): free reshape (fc1 weight rows pre-permuted to NHWC order).
    feat = y.reshape(N, 7 * 7 * 32)

    # layer3 + layer4 + softmax fused in one kernel.
    return mlp_softmax(feat, params["w3"], params["b3"],
                       params["w4"], params["b4"], out_dim)


# -----------------------------------------------------------------------------
# Pure-JAX reference (uses the raw PyTorch-layout params)
# -----------------------------------------------------------------------------
def reference_forward(x_nchw, p):
    x = x_nchw.astype(jnp.float32)

    def conv_block(x, w, b):
        y = jax.lax.conv_general_dilated(
            x, w.astype(jnp.float32), (1, 1), "SAME",
            dimension_numbers=("NCHW", "OIHW", "NCHW"))
        y = jax.nn.relu(y + b.reshape(1, -1, 1, 1))
        return jax.lax.reduce_window(y, -jnp.inf, jax.lax.max,
                                     (1, 1, 2, 2), (1, 1, 2, 2), "VALID")

    y = conv_block(x, p["conv1_w"], p["conv1_b"])
    y = conv_block(y, p["conv2_w"], p["conv2_b"])
    y = y.reshape(y.shape[0], -1)
    y = jax.nn.relu(y @ p["fc1_w"].T + p["fc1_b"])
    y = y @ p["fc2_w"].T + p["fc2_b"]
    return jax.nn.softmax(y, axis=1)


if __name__ == "__main__":
    key = jax.random.PRNGKey(0)
    k_param, k_x = jax.random.split(key)
    out_dim = 10
    raw = init_params(k_param, out_dim=out_dim)
    params = prepare_params(raw)
    # Input spatial size is forced to 28x28x1 by the Linear(7*7*32, 256) layer.
    x = jax.random.normal(k_x, (2, 1, 28, 28), jnp.float32)

    out = jax.block_until_ready(convnet_forward(x, params, out_dim=out_dim))

    assert out.shape == (2, out_dim)
    assert bool(jnp.all(jnp.isfinite(out)))
    assert bool(jnp.allclose(jnp.sum(out, axis=1), 1.0, atol=1e-4))

    ref = reference_forward(x, raw)
    assert bool(jnp.allclose(out, ref, atol=5e-2)), (
        f"max abs diff {float(jnp.max(jnp.abs(out - ref)))}")
    print("KERNEL_OK")
</pallas_src>

<mosaic_0001>
module attributes {stable_mosaic.version = 11 : i64} {
  func.func @_conv1_kernel(%arg0: i32, %arg1: memref<208x128xbf16, #tpu.memory_space<vmem>>, %arg2: memref<128x64xbf16, #tpu.memory_space<vmem>>, %arg3: memref<1x16xf32, #tpu.memory_space<vmem>>, %arg4: memref<208x16xbf16, #tpu.memory_space<vmem>>) attributes {dimension_semantics = [#tpu.dimension_semantics<parallel>], iteration_bounds = array<i64: 2>, scalar_prefetch = 0 : i64, scratch_operands = 0 : i64, tpu.core_type = #tpu.core_type<tc>, window_params = [{transform_indices = @transform_0, window_bounds = array<i64: 208, 128>}, {pipeline_mode = #tpu.pipeline_mode<synchronous>, transform_indices = @transform_1, window_bounds = array<i64: 128, 64>}, {pipeline_mode = #tpu.pipeline_mode<synchronous>, transform_indices = @transform_2, window_bounds = array<i64: 1, 16>}, {transform_indices = @transform_3, window_bounds = array<i64: 208, 16>}]} {
    %c0 = arith.constant 0 : index
    %c0_0 = arith.constant 0 : index
    %0 = vector.load %arg1[%c0, %c0_0] : memref<208x128xbf16, #tpu.memory_space<vmem>>, vector<208x128xbf16>
    %c0_1 = arith.constant 0 : index
    %c0_2 = arith.constant 0 : index
    %1 = vector.load %arg2[%c0_1, %c0_2] : memref<128x64xbf16, #tpu.memory_space<vmem>>, vector<128x64xbf16>
    %cst = arith.constant dense<0.000000e+00> : vector<208x64xf32>
    %2 = tpu.matmul %0, %1, %cst {dimension_numbers = #tpu.dot_dimension_numbers<[1], [0], [0], [1], [0, 0, 1, 1], [], []>} : vector<208x128xbf16>, vector<128x64xbf16>, vector<208x64xf32> -> vector<208x64xf32>
    %3 = vector.extract_strided_slice %2 {offsets = [0, 0], sizes = [208, 16], strides = [1, 1]} : vector<208x64xf32> to vector<208x16xf32>
    %4 = vector.extract_strided_slice %2 {offsets = [0, 16], sizes = [208, 16], strides = [1, 1]} : vector<208x64xf32> to vector<208x16xf32>
    %5 = arith.maximumf %3, %4 : vector<208x16xf32>
    %6 = vector.extract_strided_slice %2 {offsets = [0, 32], sizes = [208, 16], strides = [1, 1]} : vector<208x64xf32> to vector<208x16xf32>
    %7 = vector.extract_strided_slice %2 {offsets = [0, 48], sizes = [208, 16], strides = [1, 1]} : vector<208x64xf32> to vector<208x16xf32>
    %8 = arith.maximumf %6, %7 : vector<208x16xf32>
    %9 = arith.maximumf %5, %8 : vector<208x16xf32>
    %c0_3 = arith.constant 0 : index
    %c0_4 = arith.constant 0 : index
    %10 = vector.load %arg3[%c0_3, %c0_4] : memref<1x16xf32, #tpu.memory_space<vmem>>, vector<1x16xf32>
    %11 = vector.broadcast %10 : vector<1x16xf32> to vector<208x16xf32>
    %12 = arith.addf %9, %11 : vector<208x16xf32>
    %cst_5 = arith.constant 0.000000e+00 : f32
    %13 = vector.broadcast %cst_5 : f32 to vector<208x16xf32>
    %14 = arith.maximumf %12, %13 : vector<208x16xf32>
    %15 = arith.truncf %14 : vector<208x16xf32> to vector<208x16xbf16>
    %c0_6 = arith.constant 0 : index
    %c0_7 = arith.constant 0 : index
    %16 = vector.load %arg4[%c0_6, %c0_7] : memref<208x16xbf16, #tpu.memory_space<vmem>>, vector<208x16xbf16>
    tpu.vector_store %arg4[%c0_6, %c0_7], %15 {strides = array<i32>} : memref<208x16xbf16, #tpu.memory_space<vmem>>, vector<208x16xbf16>,
    return
  }
  func.func @transform_0(%arg0: i32) -> (i32, i32) {
    %c0_i32 = arith.constant 0 : i32
    %c0_i32_0 = arith.constant 0 : i32
    return %arg0, %c0_i32 : i32, i32
  }
  func.func @transform_1(%arg0: i32) -> (i32, i32) {
    %c0_i32 = arith.constant 0 : i32
    %c0_i32_0 = arith.constant 0 : i32
    %c0_i32_1 = arith.constant 0 : i32
    return %c0_i32, %c0_i32_0 : i32, i32
  }
  func.func @transform_2(%arg0: i32) -> (i32, i32) {
    %c0_i32 = arith.constant 0 : i32
    %c0_i32_0 = arith.constant 0 : i32
    %c0_i32_1 = arith.constant 0 : i32
    return %c0_i32, %c0_i32_0 : i32, i32
  }
  func.func @transform_3(%arg0: i32) -> (i32, i32) {
    %c0_i32 = arith.constant 0 : i32
    %c0_i32_0 = arith.constant 0 : i32
    return %arg0, %c0_i32 : i32, i32
  }
}

module attributes {stable_mosaic.version = 11 : i64} {
  func.func @_conv2_kernel(%arg0: i32, %arg1: memref<1x252x80xbf16, #tpu.memory_space<vmem>>, %arg2: memref<5x80x32xbf16, #tpu.memory_space<vmem>>, %arg3: memref<1x32xf32, #tpu.memory_space<vmem>>, %arg4: memref<1x49x32xbf16, #tpu.memory_space<vmem>>) attributes {dimension_semantics = [#tpu.dimension_semantics<parallel>], iteration_bounds = array<i64: 2>, scalar_prefetch = 0 : i64, scratch_operands = 0 : i64, tpu.core_type = #tpu.core_type<tc>, window_params = [{transform_indices = @transform_0, window_bounds = array<i64: 1, 252, 80>}, {pipeline_mode = #tpu.pipeline_mode<synchronous>, transform_indices = @transform_1, window_bounds = array<i64: 5, 80, 32>}, {pipeline_mode = #tpu.pipeline_mode<synchronous>, transform_indices = @transform_2, window_bounds = array<i64: 1, 32>}, {transform_indices = @transform_3, window_bounds = array<i64: 1, 49, 32>}]} {
    %c0 = arith.constant 0 : index
    %c0_0 = arith.constant 0 : index
    %c0_1 = arith.constant 0 : index
    %0 = vector.load %arg1[%c0, %c0_0, %c0_1] : memref<1x252x80xbf16, #tpu.memory_space<vmem>>, vector<1x252x80xbf16>
    %c0_2 = arith.constant 0 : index
    %c0_3 = arith.constant 0 : index
    %c0_4 = arith.constant 0 : index
    %1 = vector.load %arg2[%c0_2, %c0_3, %c0_4] : memref<5x80x32xbf16, #tpu.memory_space<vmem>>, vector<5x80x32xbf16>
    %cst = arith.constant 0.000000e+00 : f32
    %2 = vector.broadcast %cst : f32 to vector<1x196x32xf32>
    %3 = vector.extract_strided_slice %0 {offsets = [0, 0, 0], sizes = [1, 196, 80], strides = [1, 1, 1]} : vector<1x252x80xbf16> to vector<1x196x80xbf16>
    %4 = vector.extract_strided_slice %1 {offsets = [0, 0, 0], sizes = [1, 80, 32], strides = [1, 1, 1]} : vector<5x80x32xbf16> to vector<1x80x32xbf16>
    %5 = vector.shape_cast %4 : vector<1x80x32xbf16> to vector<80x32xbf16>
    %6 = vector.shape_cast %5 : vector<80x32xbf16> to vector<1x80x32xbf16>
    "tpu.trace_start"() <{level = 10 : i32, message = "nmk,nko->nmo"}> : () -> ()
    %cst_5 = arith.constant dense<0.000000e+00> : vector<1x196x32xf32>
    %7 = tpu.matmul %3, %6, %cst_5 {dimension_numbers = #tpu.dot_dimension_numbers<[2], [1], [1], [2], [0, 0, 0, 1, 1, 2], [0], [0]>} : vector<1x196x80xbf16>, vector<1x80x32xbf16>, vector<1x196x32xf32> -> vector<1x196x32xf32>
    "tpu.trace_stop"() : () -> ()
    %8 = arith.addf %2, %7 : vector<1x196x32xf32>
    %9 = vector.extract_strided_slice %0 {offsets = [0, 14, 0], sizes = [1, 196, 80], strides = [1, 1, 1]} : vector<1x252x80xbf16> to vector<1x196x80xbf16>
    %10 = vector.extract_strided_slice %1 {offsets = [1, 0, 0], sizes = [1, 80, 32], strides = [1, 1, 1]} : vector<5x80x32xbf16> to vector<1x80x32xbf16>
    %11 = vector.shape_cast %10 : vector<1x80x32xbf16> to vector<80x32xbf16>
    %12 = vector.shape_cast %11 : vector<80x32xbf16> to vector<1x80x32xbf16>
    "tpu.trace_start"() <{level = 10 : i32, message = "nmk,nko->nmo"}> : () -> ()
    %cst_6 = arith.constant dense<0.000000e+00> : vector<1x196x32xf32>
    %13 = tpu.matmul %9, %12, %cst_6 {dimension_numbers = #tpu.dot_dimension_numbers<[2], [1], [1], [2], [0, 0, 0, 1, 1, 2], [0], [0]>} : vector<1x196x80xbf16>, vector<1x80x32xbf16>, vector<1x196x32xf32> -> vector<1x196x32xf32>
    "tpu.trace_stop"() : () -> ()
    %14 = arith.addf %8, %13 : vector<1x196x32xf32>
    %15 = vector.extract_strided_slice %0 {offsets = [0, 28, 0], sizes = [1, 196, 80], strides = [1, 1, 1]} : vector<1x252x80xbf16> to vector<1x196x80xbf16>
    %16 = vector.extract_strided_slice %1 {offsets = [2, 0, 0], sizes = [1, 80, 32], strides = [1, 1, 1]} : vector<5x80x32xbf16> to vector<1x80x32xbf16>
    %17 = vector.shape_cast %16 : vector<1x80x32xbf16> to vector<80x32xbf16>
    %18 = vector.shape_cast %17 : vector<80x32xbf16> to vector<1x80x32xbf16>
    "tpu.trace_start"() <{level = 10 : i32, message = "nmk,nko->nmo"}> : () -> ()
    %cst_7 = arith.constant dense<0.000000e+00> : vector<1x196x32xf32>
    %19 = tpu.matmul %15, %18, %cst_7 {dimension_numbers = #tpu.dot_dimension_numbers<[2], [1], [1], [2], [0, 0, 0, 1, 1, 2], [0], [0]>} : vector<1x196x80xbf16>, vector<1x80x32xbf16>, vector<1x196x32xf32> -> vector<1x196x32xf32>
    "tpu.trace_stop"() : () -> ()
    %20 = arith.addf %14, %19 : vector<1x196x32xf32>
    %21 = vector.extract_strided_slice %0 {offsets = [0, 42, 0], sizes = [1, 196, 80], strides = [1, 1, 1]} : vector<1x252x80xbf16> to vector<1x196x80xbf16>
    %22 = vector.extract_strided_slice %1 {offsets = [3, 0, 0], sizes = [1, 80, 32], strides = [1, 1, 1]} : vector<5x80x32xbf16> to vector<1x80x32xbf16>
    %23 = vector.shape_cast %22 : vector<1x80x32xbf16> to vector<80x32xbf16>
    %24 = vector.shape_cast %23 : vector<80x32xbf16> to vector<1x80x32xbf16>
    "tpu.trace_start"() <{level = 10 : i32, message = "nmk,nko->nmo"}> : () -> ()
    %cst_8 = arith.constant dense<0.000000e+00> : vector<1x196x32xf32>
    %25 = tpu.matmul %21, %24, %cst_8 {dimension_numbers = #tpu.dot_dimension_numbers<[2], [1], [1], [2], [0, 0, 0, 1, 1, 2], [0], [0]>} : vector<1x196x80xbf16>, vector<1x80x32xbf16>, vector<1x196x32xf32> -> vector<1x196x32xf32>
    "tpu.trace_stop"() : () -> ()
    %26 = arith.addf %20, %25 : vector<1x196x32xf32>
    %27 = vector.extract_strided_slice %0 {offsets = [0, 56, 0], sizes = [1, 196, 80], strides = [1, 1, 1]} : vector<1x252x80xbf16> to vector<1x196x80xbf16>
    %28 = vector.extract_strided_slice %1 {offsets = [4, 0, 0], sizes = [1, 80, 32], strides = [1, 1, 1]} : vector<5x80x32xbf16> to vector<1x80x32xbf16>
    %29 = vector.shape_cast %28 : vector<1x80x32xbf16> to vector<80x32xbf16>
    %30 = vector.shape_cast %29 : vector<80x32xbf16> to vector<1x80x32xbf16>
    "tpu.trace_start"() <{level = 10 : i32, message = "nmk,nko->nmo"}> : () -> ()
    %cst_9 = arith.constant dense<0.000000e+00> : vector<1x196x32xf32>
    %31 = tpu.matmul %27, %30, %cst_9 {dimension_numbers = #tpu.dot_dimension_numbers<[2], [1], [1], [2], [0, 0, 0, 1, 1, 2], [0], [0]>} : vector<1x196x80xbf16>, vector<1x80x32xbf16>, vector<1x196x32xf32> -> vector<1x196x32xf32>
    "tpu.trace_stop"() : () -> ()
    %32 = arith.addf %26, %31 : vector<1x196x32xf32>
    %c0_10 = arith.constant 0 : index
    %c0_11 = arith.constant 0 : index
    %33 = vector.load %arg3[%c0_10, %c0_11] : memref<1x32xf32, #tpu.memory_space<vmem>>, vector<1x32xf32>
    %34 = vector.shape_cast %33 : vector<1x32xf32> to vector<1x1x32xf32>
    %35 = vector.broadcast %34 : vector<1x1x32xf32> to vector<1x196x32xf32>
    %36 = arith.addf %32, %35 : vector<1x196x32xf32>
    %cst_12 = arith.constant 0.000000e+00 : f32
    %37 = vector.broadcast %cst_12 : f32 to vector<1x196x32xf32>
    %38 = arith.maximumf %36, %37 : vector<1x196x32xf32>
    %39 = vector.extract_strided_slice %38 {offsets = [0, 0, 0], sizes = [1, 14, 32], strides = [1, 1, 1]} : vector<1x196x32xf32> to vector<1x14x32xf32>
    %40 = vector.extract_strided_slice %38 {offsets = [0, 14, 0], sizes = [1, 14, 32], strides = [1, 1, 1]} : vector<1x196x32xf32> to vector<1x14x32xf32>
    %41 = arith.maximumf %39, %40 : vector<1x14x32xf32>
    %42 = vector.extract_strided_slice %41 {offsets = [0, 0, 0], sizes = [1, 7, 32], strides = [1, 1, 1]} : vector<1x14x32xf32> to vector<1x7x32xf32>
    %43 = vector.extract_strided_slice %41 {offsets = [0, 7, 0], sizes = [1, 7, 32], strides = [1, 1, 1]} : vector<1x14x32xf32> to vector<1x7x32xf32>
    %44 = arith.maximumf %42, %43 : vector<1x7x32xf32>
    %45 = arith.truncf %44 : vector<1x7x32xf32> to vector<1x7x32xbf16>
    %c0_13 = arith.constant 0 : index
    %c0_14 = arith.constant 0 : index
    %c0_15 = arith.constant 0 : index
    %46 = vector.load %arg4[%c0_13, %c0_14, %c0_15] : memref<1x49x32xbf16, #tpu.memory_space<vmem>>, vector<1x7x32xbf16>
    tpu.vector_store %arg4[%c0_13, %c0_14, %c0_15], %45 {strides = array<i32>} : memref<1x49x32xbf16, #tpu.memory_space<vmem>>, vector<1x7x32xbf16>,
    %47 = vector.extract_strided_slice %38 {offsets = [0, 28, 0], sizes = [1, 14, 32], strides = [1, 1, 1]} : vector<1x196x32xf32> to vector<1x14x32xf32>
    %48 = vector.extract_strided_slice %38 {offsets = [0, 42, 0], sizes = [1, 14, 32], strides = [1, 1, 1]} : vector<1x196x32xf32> to vector<1x14x32xf32>
    %49 = arith.maximumf %47, %48 : vector<1x14x32xf32>
    %50 = vector.extract_strided_slice %49 {offsets = [0, 0, 0], sizes = [1, 7, 32], strides = [1, 1, 1]} : vector<1x14x32xf32> to vector<1x7x32xf32>
    %51 = vector.extract_strided_slice %49 {offsets = [0, 7, 0], sizes = [1, 7, 32], strides = [1, 1, 1]} : vector<1x14x32xf32> to vector<1x7x32xf32>
    %52 = arith.maximumf %50, %51 : vector<1x7x32xf32>
    %53 = arith.truncf %52 : vector<1x7x32xf32> to vector<1x7x32xbf16>
    %c0_16 = arith.constant 0 : index
    %c7 = arith.constant 7 : index
    %c0_17 = arith.constant 0 : index
    %54 = vector.load %arg4[%c0_16, %c7, %c0_17] : memref<1x49x32xbf16, #tpu.memory_space<vmem>>, vector<1x7x32xbf16>
    tpu.vector_store %arg4[%c0_16, %c7, %c0_17], %53 {strides = array<i32>} : memref<1x49x32xbf16, #tpu.memory_space<vmem>>, vector<1x7x32xbf16>,
    %55 = vector.extract_strided_slice %38 {offsets = [0, 56, 0], sizes = [1, 14, 32], strides = [1, 1, 1]} : vector<1x196x32xf32> to vector<1x14x32xf32>
    %56 = vector.extract_strided_slice %38 {offsets = [0, 70, 0], sizes = [1, 14, 32], strides = [1, 1, 1]} : vector<1x196x32xf32> to vector<1x14x32xf32>
    %57 = arith.maximumf %55, %56 : vector<1x14x32xf32>
    %58 = vector.extract_strided_slice %57 {offsets = [0, 0, 0], sizes = [1, 7, 32], strides = [1, 1, 1]} : vector<1x14x32xf32> to vector<1x7x32xf32>
    %59 = vector.extract_strided_slice %57 {offsets = [0, 7, 0], sizes = [1, 7, 32], strides = [1, 1, 1]} : vector<1x14x32xf32> to vector<1x7x32xf32>
    %60 = arith.maximumf %58, %59 : vector<1x7x32xf32>
    %61 = arith.truncf %60 : vector<1x7x32xf32> to vector<1x7x32xbf16>
    %c0_18 = arith.constant 0 : index
    %c14 = arith.constant 14 : index
    %c0_19 = arith.constant 0 : index
    %62 = vector.load %arg4[%c0_18, %c14, %c0_19] : memref<1x49x32xbf16, #tpu.memory_space<vmem>>, vector<1x7x32xbf16>
    tpu.vector_store %arg4[%c0_18, %c14, %c0_19], %61 {strides = array<i32>} : memref<1x49x32xbf16, #tpu.memory_space<vmem>>, vector<1x7x32xbf16>,
    %63 = vector.extract_strided_slice %38 {offsets = [0, 84, 0], sizes = [1, 14, 32], strides = [1, 1, 1]} : vector<1x196x32xf32> to vector<1x14x32xf32>
    %64 = vector.extract_strided_slice %38 {offsets = [0, 98, 0], sizes = [1, 14, 32], strides = [1, 1, 1]} : vector<1x196x32xf32> to vector<1x14x32xf32>
    %65 = arith.maximumf %63, %64 : vector<1x14x32xf32>
    %66 = vector.extract_strided_slice %65 {offsets = [0, 0, 0], sizes = [1, 7, 32], strides = [1, 1, 1]} : vector<1x14x32xf32> to vector<1x7x32xf32>
    %67 = vector.extract_strided_slice %65 {offsets = [0, 7, 0], sizes = [1, 7, 32], strides = [1, 1, 1]} : vector<1x14x32xf32> to vector<1x7x32xf32>
    %68 = arith.maximumf %66, %67 : vector<1x7x32xf32>
    %69 = arith.truncf %68 : vector<1x7x32xf32> to vector<1x7x32xbf16>
    %c0_20 = arith.constant 0 : index
    %c21 = arith.constant 21 : index
    %c0_21 = arith.constant 0 : index
    %70 = vector.load %arg4[%c0_20, %c21, %c0_21] : memref<1x49x32xbf16, #tpu.memory_space<vmem>>, vector<1x7x32xbf16>
    tpu.vector_store %arg4[%c0_20, %c21, %c0_21], %69 {strides = array<i32>} : memref<1x49x32xbf16, #tpu.memory_space<vmem>>, vector<1x7x32xbf16>,
    %71 = vector.extract_strided_slice %38 {offsets = [0, 112, 0], sizes = [1, 14, 32], strides = [1, 1, 1]} : vector<1x196x32xf32> to vector<1x14x32xf32>
    %72 = vector.extract_strided_slice %38 {offsets = [0, 126, 0], sizes = [1, 14, 32], strides = [1, 1, 1]} : vector<1x196x32xf32> to vector<1x14x32xf32>
    %73 = arith.maximumf %71, %72 : vector<1x14x32xf32>
    %74 = vector.extract_strided_slice %73 {offsets = [0, 0, 0], sizes = [1, 7, 32], strides = [1, 1, 1]} : vector<1x14x32xf32> to vector<1x7x32xf32>
    %75 = vector.extract_strided_slice %73 {offsets = [0, 7, 0], sizes = [1, 7, 32], strides = [1, 1, 1]} : vector<1x14x32xf32> to vector<1x7x32xf32>
    %76 = arith.maximumf %74, %75 : vector<1x7x32xf32>
    %77 = arith.truncf %76 : vector<1x7x32xf32> to vector<1x7x32xbf16>
    %c0_22 = arith.constant 0 : index
    %c28 = arith.constant 28 : index
    %c0_23 = arith.constant 0 : index
    %78 = vector.load %arg4[%c0_22, %c28, %c0_23] : memref<1x49x32xbf16, #tpu.memory_space<vmem>>, vector<1x7x32xbf16>
    tpu.vector_store %arg4[%c0_22, %c28, %c0_23], %77 {strides = array<i32>} : memref<1x49x32xbf16, #tpu.memory_space<vmem>>, vector<1x7x32xbf16>,
    %79 = vector.extract_strided_slice %38 {offsets = [0, 140, 0], sizes = [1, 14, 32], strides = [1, 1, 1]} : vector<1x196x32xf32> to vector<1x14x32xf32>
    %80 = vector.extract_strided_slice %38 {offsets = [0, 154, 0], sizes = [1, 14, 32], strides = [1, 1, 1]} : vector<1x196x32xf32> to vector<1x14x32xf32>
    %81 = arith.maximumf %79, %80 : vector<1x14x32xf32>
    %82 = vector.extract_strided_slice %81 {offsets = [0, 0, 0], sizes = [1, 7, 32], strides = [1, 1, 1]} : vector<1x14x32xf32> to vector<1x7x32xf32>
    %83 = vector.extract_strided_slice %81 {offsets = [0, 7, 0], sizes = [1, 7, 32], strides = [1, 1, 1]} : vector<1x14x32xf32> to vector<1x7x32xf32>
    %84 = arith.maximumf %82, %83 : vector<1x7x32xf32>
    %85 = arith.truncf %84 : vector<1x7x32xf32> to vector<1x7x32xbf16>
    %c0_24 = arith.constant 0 : index
    %c35 = arith.constant 35 : index
    %c0_25 = arith.constant 0 : index
    %86 = vector.load %arg4[%c0_24, %c35, %c0_25] : memref<1x49x32xbf16, #tpu.memory_space<vmem>>, vector<1x7x32xbf16>
    tpu.vector_store %arg4[%c0_24, %c35, %c0_25], %85 {strides = array<i32>} : memref<1x49x32xbf16, #tpu.memory_space<vmem>>, vector<1x7x32xbf16>,
    %87 = vector.extract_strided_slice %38 {offsets = [0, 168, 0], sizes = [1, 14, 32], strides = [1, 1, 1]} : vector<1x196x32xf32> to vector<1x14x32xf32>
    %88 = vector.extract_strided_slice %38 {offsets = [0, 182, 0], sizes = [1, 14, 32], strides = [1, 1, 1]} : vector<1x196x32xf32> to vector<1x14x32xf32>
    %89 = arith.maximumf %87, %88 : vector<1x14x32xf32>
    %90 = vector.extract_strided_slice %89 {offsets = [0, 0, 0], sizes = [1, 7, 32], strides = [1, 1, 1]} : vector<1x14x32xf32> to vector<1x7x32xf32>
    %91 = vector.extract_strided_slice %89 {offsets = [0, 7, 0], sizes = [1, 7, 32], strides = [1, 1, 1]} : vector<1x14x32xf32> to vector<1x7x32xf32>
    %92 = arith.maximumf %90, %91 : vector<1x7x32xf32>
    %93 = arith.truncf %92 : vector<1x7x32xf32> to vector<1x7x32xbf16>
    %c0_26 = arith.constant 0 : index
    %c42 = arith.constant 42 : index
    %c0_27 = arith.constant 0 : index
    %94 = vector.load %arg4[%c0_26, %c42, %c0_27] : memref<1x49x32xbf16, #tpu.memory_space<vmem>>, vector<1x7x32xbf16>
    tpu.vector_store %arg4[%c0_26, %c42, %c0_27], %93 {strides = array<i32>} : memref<1x49x32xbf16, #tpu.memory_space<vmem>>, vector<1x7x32xbf16>,
    return
  }
  func.func @transform_0(%arg0: i32) -> (i32, i32, i32) {
    %c0_i32 = arith.constant 0 : i32
    %c0_i32_0 = arith.constant 0 : i32
    %c0_i32_1 = arith.constant 0 : i32
    return %arg0, %c0_i32, %c0_i32_0 : i32, i32, i32
  }
  func.func @transform_1(%arg0: i32) -> (i32, i32, i32) {
    %c0_i32 = arith.constant 0 : i32
    %c0_i32_0 = arith.constant 0 : i32
    %c0_i32_1 = arith.constant 0 : i32
    %c0_i32_2 = arith.constant 0 : i32
    return %c0_i32, %c0_i32_0, %c0_i32_1 : i32, i32, i32
  }
  func.func @transform_2(%arg0: i32) -> (i32, i32) {
    %c0_i32 = arith.constant 0 : i32
    %c0_i32_0 = arith.constant 0 : i32
    %c0_i32_1 = arith.constant 0 : i32
    return %c0_i32, %c0_i32_0 : i32, i32
  }
  func.func @transform_3(%arg0: i32) -> (i32, i32, i32) {
    %c0_i32 = arith.constant 0 : i32
    %c0_i32_0 = arith.constant 0 : i32
    %c0_i32_1 = arith.constant 0 : i32
    return %arg0, %c0_i32, %c0_i32_0 : i32, i32, i32
  }
}

module attributes {stable_mosaic.version = 11 : i64} {
  func.func @_mlp_softmax_kernel(%arg0: i32, %arg1: memref<16x1568xbf16, #tpu.memory_space<vmem>>, %arg2: memref<1568x256xbf16, #tpu.memory_space<vmem>>, %arg3: memref<1x256xf32, #tpu.memory_space<vmem>>, %arg4: memref<256x128xbf16, #tpu.memory_space<vmem>>, %arg5: memref<1x128xf32, #tpu.memory_space<vmem>>, %arg6: memref<16x128xf32, #tpu.memory_space<vmem>>) attributes {dimension_semantics = [#tpu.dimension_semantics<parallel>], iteration_bounds = array<i64: 1>, scalar_prefetch = 0 : i64, scratch_operands = 0 : i64, tpu.core_type = #tpu.core_type<tc>, window_params = [{transform_indices = @transform_0, window_bounds = array<i64: 16, 1568>}, {pipeline_mode = #tpu.pipeline_mode<synchronous>, transform_indices = @transform_1, window_bounds = array<i64: 1568, 256>}, {pipeline_mode = #tpu.pipeline_mode<synchronous>, transform_indices = @transform_2, window_bounds = array<i64: 1, 256>}, {pipeline_mode = #tpu.pipeline_mode<synchronous>, transform_indices = @transform_3, window_bounds = array<i64: 256, 128>}, {pipeline_mode = #tpu.pipeline_mode<synchronous>, transform_indices = @transform_4, window_bounds = array<i64: 1, 128>}, {transform_indices = @transform_5, window_bounds = array<i64: 16, 128>}]} {
    %c0 = arith.constant 0 : index
    %c0_0 = arith.constant 0 : index
    %0 = vector.load %arg1[%c0, %c0_0] : memref<16x1568xbf16, #tpu.memory_space<vmem>>, vector<16x1568xbf16>
    %c0_1 = arith.constant 0 : index
    %c0_2 = arith.constant 0 : index
    %1 = vector.load %arg2[%c0_1, %c0_2] : memref<1568x256xbf16, #tpu.memory_space<vmem>>, vector<1568x256xbf16>
    %cst = arith.constant dense<0.000000e+00> : vector<16x256xf32>
    %2 = tpu.matmul %0, %1, %cst {dimension_numbers = #tpu.dot_dimension_numbers<[1], [0], [0], [1], [0, 0, 1, 1], [], []>} : vector<16x1568xbf16>, vector<1568x256xbf16>, vector<16x256xf32> -> vector<16x256xf32>
    %c0_3 = arith.constant 0 : index
    %c0_4 = arith.constant 0 : index
    %3 = vector.load %arg3[%c0_3, %c0_4] : memref<1x256xf32, #tpu.memory_space<vmem>>, vector<1x256xf32>
    %4 = vector.broadcast %3 : vector<1x256xf32> to vector<16x256xf32>
    %5 = arith.addf %2, %4 : vector<16x256xf32>
    %cst_5 = arith.constant 0.000000e+00 : f32
    %6 = vector.broadcast %cst_5 : f32 to vector<16x256xf32>
    %7 = arith.maximumf %5, %6 : vector<16x256xf32>
    %8 = arith.truncf %7 : vector<16x256xf32> to vector<16x256xbf16>
    %c0_6 = arith.constant 0 : index
    %c0_7 = arith.constant 0 : index
    %9 = vector.load %arg4[%c0_6, %c0_7] : memref<256x128xbf16, #tpu.memory_space<vmem>>, vector<256x128xbf16>
    %cst_8 = arith.constant dense<0.000000e+00> : vector<16x128xf32>
    %10 = tpu.matmul %8, %9, %cst_8 {dimension_numbers = #tpu.dot_dimension_numbers<[1], [0], [0], [1], [0, 0, 1, 1], [], []>} : vector<16x256xbf16>, vector<256x128xbf16>, vector<16x128xf32> -> vector<16x128xf32>
    %c0_9 = arith.constant 0 : index
    %c0_10 = arith.constant 0 : index
    %11 = vector.load %arg5[%c0_9, %c0_10] : memref<1x128xf32, #tpu.memory_space<vmem>>, vector<1x128xf32>
    %12 = vector.broadcast %11 : vector<1x128xf32> to vector<16x128xf32>
    %13 = arith.addf %10, %12 : vector<16x128xf32>
    %cst_11 = arith.constant dense<0xFF800000> : vector<16xf32>
    %14 = vector.multi_reduction <maximumf>, %13, %cst_11 [1] : vector<16x128xf32> to vector<16xf32>
    %15 = vector.shape_cast %14 : vector<16xf32> to vector<16x1xf32>
    %16 = vector.broadcast %15 : vector<16x1xf32> to vector<16x128xf32>
    %17 = arith.subf %13, %16 : vector<16x128xf32>
    %18 = math.exp %17 : vector<16x128xf32>
    %cst_12 = arith.constant dense<0.000000e+00> : vector<16xf32>
    %19 = vector.multi_reduction <add>, %18, %cst_12 [1] : vector<16x128xf32> to vector<16xf32>
    %20 = vector.shape_cast %19 : vector<16xf32> to vector<16x1xf32>
    %21 = vector.broadcast %20 : vector<16x1xf32> to vector<16x128xf32>
    %22 = arith.divf %18, %21 : vector<16x128xf32>
    %c0_13 = arith.constant 0 : index
    %c0_14 = arith.constant 0 : index
    %23 = vector.load %arg6[%c0_13, %c0_14] : memref<16x128xf32, #tpu.memory_space<vmem>>, vector<16x128xf32>
    tpu.vector_store %arg6[%c0_13, %c0_14], %22 {strides = array<i32>} : memref<16x128xf32, #tpu.memory_space<vmem>>, vector<16x128xf32>,
    return
  }
  func.func @transform_0(%arg0: i32) -> (i32, i32) {
    %c0_i32 = arith.constant 0 : i32
    %c0_i32_0 = arith.constant 0 : i32
    return %arg0, %c0_i32 : i32, i32
  }
  func.func @transform_1(%arg0: i32) -> (i32, i32) {
    %c0_i32 = arith.constant 0 : i32
    %c0_i32_0 = arith.constant 0 : i32
    %c0_i32_1 = arith.constant 0 : i32
    return %c0_i32, %c0_i32_0 : i32, i32
  }
  func.func @transform_2(%arg0: i32) -> (i32, i32) {
    %c0_i32 = arith.constant 0 : i32
    %c0_i32_0 = arith.constant 0 : i32
    %c0_i32_1 = arith.constant 0 : i32
    return %c0_i32, %c0_i32_0 : i32, i32
  }
  func.func @transform_3(%arg0: i32) -> (i32, i32) {
    %c0_i32 = arith.constant 0 : i32
    %c0_i32_0 = arith.constant 0 : i32
    %c0_i32_1 = arith.constant 0 : i32
    return %c0_i32, %c0_i32_0 : i32, i32
  }
  func.func @transform_4(%arg0: i32) -> (i32, i32) {
    %c0_i32 = arith.constant 0 : i32
    %c0_i32_0 = arith.constant 0 : i32
    %c0_i32_1 = arith.constant 0 : i32
    return %c0_i32, %c0_i32_0 : i32, i32
  }
  func.func @transform_5(%arg0: i32) -> (i32, i32) {
    %c0_i32 = arith.constant 0 : i32
    %c0_i32_0 = arith.constant 0 : i32
    return %arg0, %c0_i32 : i32, i32
  }
}

</mosaic_0001>

<llo_original>
// kernel: convnet_forward.3
$region0: #{convnet_forward.3}
  #allocation0 [shape = 'u32[]', space=smem, size = 0x4, offset = 0x4, fixed_abs, tag = 'smem constant byte address 0x4 - core index']
  #allocation1 [shape = 'u32[72,128]{1,0:T(1,128)}', space=vmem, size = 0x9000, scoped, tag = 'internal scratch']
  %s0 = inlined_call_operand.vmem [shape: bf16[416,128], index: 0, kind: input, shape index: {}]
  %s1 = inlined_call_operand.vmem [shape: bf16[128,64], index: 1, kind: input, shape index: {}]
  %s2 = inlined_call_operand.vmem [shape: f32[1,16], index: 2, kind: input, shape index: {}]
  %s3 = inlined_call_operand.vmem [shape: bf16[416,16], index: 3, kind: output, shape index: {}]
  %s4 = sld [smem:[#allocation0]]
  $region45: #{convnet_forward.3} parent=0
    _
  %s6 = ssub.s32 1, %s4
  %s7 = scalar_select 0, %s6, %s4
  loop: start=0, step=1, limit=4
  $region2: #{convnet_forward.3} parent=0 // loop_pre_header
    _
  $region3: #{convnet_forward.3} parent=0 // loop_header
    %s9 = sphi 0, %s13
    %p10 = scmp.ge.s32.totalorder %s9, 4
    %s19 = sphi 0, %s21
    %s22 = sphi 0, %s19
    %s23 = sphi 0, %s22
    %s39 = sphi 0, %s23
    %s43 = sphi 0, %s43
    %s45 = sphi 0, %s43
    %s46 = sphi 0, %s45
    %s60 = sphi 0, %s46
    %s64 = sphi 0, %s64
    %s66 = sphi 0, %s64
    %s67 = sphi 0, %s66
    %s81 = sphi 0, %s67
    %s87 = sphi 0, %s89
    %s90 = sphi 0, %s87
    %s91 = sphi 0, %s90
    %s107 = sphi 0, %s91
  $region4: #{convnet_forward.3} parent=0 // loop_header_branch
    %12 = sbr.rel (%p10) target = $region8
  $region5: #{convnet_forward.3} parent=0 // loop_body
    %s14 = ssub.s32 %s9, 1
    %s15 = ssub.s32 %s9, 2
    %s16 = sadd.s32 %s9, 1
    %s17 = ssub.s32 %s9, %s16
    %p18 = scmp.eq.s32.totalorder %s17, 0
    %s20 = sadd.s32 %s19, 1
    %s21 = scalar_select %p18, %s19, %s20
    %p24 = pneg %p18
    %p25 = scmp.eq.s32.totalorder %s9, 1
    %p26 = por %p24, %p25
    %p27 = scmp.ne.s32.totalorder %s19, %s22
    %p28 = scmp.eq.s32.totalorder %s9, 0
    %p29 = por %p27, %p28
    %p30 = scmp.ne.s32.totalorder %s19, %s22
    %p31 = scmp.eq.s32.totalorder %s14, 1
    %p32 = por %p30, %p31
    %p33 = scmp.ne.s32.totalorder %s22, %s23
    %p34 = scmp.eq.s32.totalorder %s14, 0
    %p35 = por %p33, %p34
    %p36 = scmp.ne.s32.totalorder %s22, %s23
    %p37 = scmp.eq.s32.totalorder %s15, 1
    %p38 = por %p36, %p37
    %p40 = scmp.ne.s32.totalorder %s23, %s39
    %p41 = scmp.eq.s32.totalorder %s15, 0
    %p42 = por %p40, %p41
    %s44 = sadd.s32 %s43, 1
    %p47 = scmp.eq.s32.totalorder %s9, 1
    %p48 = scmp.ne.s32.totalorder %s43, %s45
    %p49 = scmp.eq.s32.totalorder %s9, 0
    %p50 = por %p48, %p49
    %p51 = scmp.ne.s32.totalorder %s43, %s45
    %p52 = scmp.eq.s32.totalorder %s14, 1
    %p53 = por %p51, %p52
    %p54 = scmp.ne.s32.totalorder %s45, %s46
    %p55 = scmp.eq.s32.totalorder %s14, 0
    %p56 = por %p54, %p55
    %p57 = scmp.ne.s32.totalorder %s45, %s46
    %p58 = scmp.eq.s32.totalorder %s15, 1
    %p59 = por %p57, %p58
    %p61 = scmp.ne.s32.totalorder %s46, %s60
    %p62 = scmp.eq.s32.totalorder %s15, 0
    %p63 = por %p61, %p62
    %s65 = sadd.s32 %s64, 1
    %p68 = scmp.eq.s32.totalorder %s9, 1
    %p69 = scmp.ne.s32.totalorder %s64, %s66
    %p70 = scmp.eq.s32.totalorder %s9, 0
    %p71 = por %p69, %p70
    %p72 = scmp.ne.s32.totalorder %s64, %s66
    %p73 = scmp.eq.s32.totalorder %s14, 1
    %p74 = por %p72, %p73
    %p75 = scmp.ne.s32.totalorder %s66, %s67
    %p76 = scmp.eq.s32.totalorder %s14, 0
    %p77 = por %p75, %p76
    %p78 = scmp.ne.s32.totalorder %s66, %s67
    %p79 = scmp.eq.s32.totalorder %s15, 1
    %p80 = por %p78, %p79
    %p82 = scmp.ne.s32.totalorder %s67, %s81
    %p83 = scmp.eq.s32.totalorder %s15, 0
    %p84 = por %p82, %p83
    %s85 = ssub.s32 %s9, %s16
    %p86 = scmp.eq.s32.totalorder %s85, 0
    %s88 = sadd.s32 %s87, 1
    %s89 = scalar_select %p86, %s87, %s88
    %p92 = pneg %p86
    %p93 = scmp.eq.s32.totalorder %s9, 1
    %p94 = por %p92, %p93
    %p95 = scmp.ne.s32.totalorder %s87, %s90
    %p96 = scmp.eq.s32.totalorder %s9, 0
    %p97 = por %p95, %p96
    %p98 = scmp.ne.s32.totalorder %s87, %s90
    %p99 = scmp.eq.s32.totalorder %s14, 1
    %p100 = por %p98, %p99
    %p101 = scmp.ne.s32.totalorder %s90, %s91
    %p102 = scmp.eq.s32.totalorder %s14, 0
    %p103 = por %p101, %p102
    %p104 = scmp.ne.s32.totalorder %s90, %s91
    %p105 = scmp.eq.s32.totalorder %s15, 1
    %p106 = por %p104, %p105
    %p108 = scmp.ne.s32.totalorder %s91, %s107
    %p109 = scmp.eq.s32.totalorder %s15, 0
    %p110 = por %p108, %p109
    %p111 = scmp.le.s32.totalorder 1, %s9
    %p112 = scmp.lt.s32.totalorder %s9, 3
    %p113 = pnand %p111, %p112
    %p114 = pneg %p113
    // Predicated region
    $region9: #{convnet_forward.3} parent=5 // pred_check
      _
    $region10: #{convnet_forward.3} parent=5 // pred_check_branch
      %116 = sbr.rel (%p113) target = $region12
    $region11: #{convnet_forward.3} parent=5 // pred_region
      %s117 = ssub.s32 %s9, 1
      // Predicated region
      $region13: #{convnet_forward.3} parent=11 // pred_check
        %p118 = pneg %p56
      $region14: #{convnet_forward.3} parent=11 // pred_check_branch
        %120 = sbr.rel (%p118) target = $region16
      $region15: #{convnet_forward.3} parent=11 // pred_region
        _
      $region16: #{convnet_forward.3} parent=11 // pred_fallthru
        _
      // Predicated region
      $region17: #{convnet_forward.3} parent=11 // pred_check
        %p121 = pneg %p77
      $region18: #{convnet_forward.3} parent=11 // pred_check_branch
        %123 = sbr.rel (%p121) target = $region20
      $region19: #{convnet_forward.3} parent=11 // pred_region
        _
      $region20: #{convnet_forward.3} parent=11 // pred_fallthru
        _
    $region12: #{convnet_forward.3} parent=5 // pred_fallthru
      _
    %p124 = scmp.lt.s32.totalorder %s9, 2
    // Predicated region
    $region21: #{convnet_forward.3} parent=5 // pred_check
      %p125 = pneg %p124
    $region22: #{convnet_forward.3} parent=5 // pred_check_branch
      %127 = sbr.rel (%p125) target = $region24
    $region23: #{convnet_forward.3} parent=5 // pred_region
      // Predicated region
      $region25: #{convnet_forward.3} parent=23 // pred_check
        %p128 = pneg %p29
      $region26: #{convnet_forward.3} parent=23 // pred_check_branch
        %130 = sbr.rel (%p128) target = $region28
      $region27: #{convnet_forward.3} parent=23 // pred_region
        %s131 = smul.u32 26, %s9
        %p132 = scmp.lt.s32.totalorder %s131, 51
        %s133 = scalar_select %p132, %s131, 51
        %s134 = smul.addr %s133, 4
        %s135 = scalar_lea.vmem %s0, %s134
        %s136 = smul.u32 26, %s9
      $region28: #{convnet_forward.3} parent=23 // pred_fallthru
        _
    $region24: #{convnet_forward.3} parent=5 // pred_fallthru
      _
    %p137 = scmp.le.s32.totalorder 1, %s9
    %p138 = scmp.lt.s32.totalorder %s9, 3
    %p139 = pnand %p137, %p138
    %p140 = pneg %p139
    // Predicated region
    $region29: #{convnet_forward.3} parent=5 // pred_check
      _
    $region30: #{convnet_forward.3} parent=5 // pred_check_branch
      %142 = sbr.rel (%p139) target = $region32
    $region31: #{convnet_forward.3} parent=5 // pred_region
      %s143 = ssub.s32 %s9, 1
      %s144 = smul.u32 26, %s14
      %p145 = scmp.lt.s32.totalorder %s144, 51
      %s146 = scalar_select %p145, %s144, 51
      %s147 = smul.addr %s146, 4
      %s148 = scalar_lea.vmem %s0, %s147
      %p149 = pneg %p35
      %p150 = pneg %p32
      %p151 = pneg %p56
      %p152 = pneg %p53
      %p153 = pneg %p77
      %p154 = pneg %p74
      %p155 = pneg %p103
      %p156 = pneg %p100
      %s157 = smul.u32 26, %s14
      %p158 = scmp.lt.s32.totalorder %s157, 51
      %s159 = scalar_select %p158, %s157, 51
      %s160 = smul.addr %s159, 4
      %s161 = scalar_lea.vmem %s3, %s160
      %s162 = smul.u32 26, %s14
      %p163 = scmp.lt.s32.totalorder %s162, 51
      %s164 = scalar_select %p163, %s162, 51
      %s165 = smul.addr %s164, 4
      %s166 = scalar_lea.vmem %s0, %s165
      %s167 = smul.u32 26, %s14
      %s168 = smul.u32 26, %s14
      %p169 = scmp.lt.s32.totalorder %s168, 51
      %s170 = scalar_select %p169, %s168, 51
      %s171 = smul.addr %s170, 4
      %s172 = scalar_lea.vmem %s3, %s171
      %s173 = smul.u32 26, %s14
      %v174 = vld [vmem:[%s166] sm:$0xf]
      %v175 = vld [vmem:[%s166 + $0x4] sm:$0xf]
      %v176 = vld [vmem:[%s166 + $0x8] sm:$0xf]
      %v177 = vld [vmem:[%s166 + $0xc] sm:$0xf]
      %v178 = vld [vmem:[%s166 + $0x10] sm:$0xf]
      %v179 = vld [vmem:[%s166 + $0x14] sm:$0xf]
      %v180 = vld [vmem:[%s166 + $0x18] sm:$0xf]
      %v181 = vld [vmem:[%s166 + $0x1c] sm:$0xf]
      %v182 = vld [vmem:[%s166 + $0x20] sm:$0xf]
      %v183 = vld [vmem:[%s166 + $0x24] sm:$0xf]
      %v184 = vld [vmem:[%s166 + $0x28] sm:$0xf]
      %v185 = vld [vmem:[%s166 + $0x2c] sm:$0xf]
      %v186 = vld [vmem:[%s166 + $0x30] sm:$0xf]
      %v187 = vld [vmem:[%s166 + $0x34] sm:$0xf]
      %v188 = vld [vmem:[%s166 + $0x38] sm:$0xf]
      %v189 = vld [vmem:[%s166 + $0x3c] sm:$0xf]
      %v190 = vld [vmem:[%s166 + $0x40] sm:$0xf]
      %v191 = vld [vmem:[%s166 + $0x44] sm:$0xf]
      %v192 = vld [vmem:[%s166 + $0x48] sm:$0xf]
      %v193 = vld [vmem:[%s166 + $0x4c] sm:$0xf]
      %v194 = vld [vmem:[%s166 + $0x50] sm:$0xf]
      %v195 = vld [vmem:[%s166 + $0x54] sm:$0xf]
      %v196 = vld [vmem:[%s166 + $0x58] sm:$0xf]
      %v197 = vld [vmem:[%s166 + $0x5c] sm:$0xf]
      %v198 = vld [vmem:[%s166 + $0x60] sm:$0xf]
      %v199 = vld [vmem:[%s166 + $0x64] sm:$0xf]
      %v200 = vld [vmem:[%s1] sm:$0xf]
      %v201 = vld [vmem:[%s1 + $0x4] sm:$0xf]
      %v202 = vld [vmem:[%s1 + $0x8] sm:$0xf]
      %v203 = vld [vmem:[%s1 + $0xc] sm:$0xf]
      %v204 = vld [vmem:[%s1 + $0x10] sm:$0xf]
      %v205 = vld [vmem:[%s1 + $0x14] sm:$0xf]
      %v206 = vld [vmem:[%s1 + $0x18] sm:$0xf]
      %v207 = vld [vmem:[%s1 + $0x1c] sm:$0xf]
      %v208 = vld [vmem:[%s1 + $0x20] sm:$0xf]
      %v209 = vld [vmem:[%s1 + $0x24] sm:$0xf]
      %v210 = vld [vmem:[%s1 + $0x28] sm:$0xf]
      %v211 = vld [vmem:[%s1 + $0x2c] sm:$0xf]
      %v212 = vld [vmem:[%s1 + $0x30] sm:$0xf]
      %v213 = vld [vmem:[%s1 + $0x34] sm:$0xf]
      %v214 = vld [vmem:[%s1 + $0x38] sm:$0xf]
      %v215 = vld [vmem:[%s1 + $0x3c] sm:$0xf]
      %v242 = vunpack.c.l.b16 %v174
      %v243 = vunpack.c.l.b16 %v175
      %v244 = vunpack.c.l.b16 %v176
      %v245 = vunpack.c.l.b16 %v177
      %v246 = vunpack.c.l.b16 %v178
      %v247 = vunpack.c.l.b16 %v179
      %v248 = vunpack.c.l.b16 %v180
      %v249 = vunpack.c.l.b16 %v181
      %v250 = vunpack.c.l.b16 %v182
      %v251 = vunpack.c.l.b16 %v183
      %v252 = vunpack.c.l.b16 %v184
      %v253 = vunpack.c.l.b16 %v185
      %v254 = vunpack.c.l.b16 %v186
      %v255 = vunpack.c.l.b16 %v187
      %v256 = vunpack.c.l.b16 %v188
      %v257 = vunpack.c.l.b16 %v189
      %v258 = vunpack.c.l.b16 %v190
      %v259 = vunpack.c.l.b16 %v191
      %v260 = vunpack.c.l.b16 %v192
      %v261 = vunpack.c.l.b16 %v193
      %v262 = vunpack.c.l.b16 %v194
      %v263 = vunpack.c.l.b16 %v195
      %v264 = vunpack.c.l.b16 %v196
      %v265 = vunpack.c.l.b16 %v197
      %v266 = vunpack.c.l.b16 %v198
      %v267 = vunpack.c.l.b16 %v199
      %v268 = vpack.c.b16 %v243, %v242
      %v269 = vpack.c.b16 %v245, %v244
      %v270 = vpack.c.b16 %v247, %v246
      %v271 = vpack.c.b16 %v249, %v248
      %v272 = vpack.c.b16 %v251, %v250
      %v273 = vpack.c.b16 %v253, %v252
      %v274 = vpack.c.b16 %v255, %v254
      %v275 = vpack.c.b16 %v257, %v256
      %v276 = vpack.c.b16 %v259, %v258
      %v277 = vpack.c.b16 %v261, %v260
      %v278 = vpack.c.b16 %v263, %v262
      %v279 = vpack.c.b16 %v265, %v264
      %v280 = vpack.c.b16 %v267, %v266
      %v310 = vunpack.c.l.b16 %v200
      %v311 = vunpack.c.l.b16 %v201
      %v312 = vunpack.c.l.b16 %v202
      %v313 = vunpack.c.l.b16 %v203
      %v314 = vunpack.c.l.b16 %v204
      %v315 = vunpack.c.l.b16 %v205
      %v316 = vunpack.c.l.b16 %v206
      %v317 = vunpack.c.l.b16 %v207
      %v318 = vunpack.c.l.b16 %v208
      %v319 = vunpack.c.l.b16 %v209
      %v320 = vunpack.c.l.b16 %v210
      %v321 = vunpack.c.l.b16 %v211
      %v322 = vunpack.c.l.b16 %v212
      %v323 = vunpack.c.l.b16 %v213
      %v324 = vunpack.c.l.b16 %v214
      %v325 = vunpack.c.l.b16 %v215
      %v326 = vpack.c.b16 %v311, %v310
      %v327 = vpack.c.b16 %v313, %v312
      %v328 = vpack.c.b16 %v315, %v314
      %v329 = vpack.c.b16 %v317, %v316
      %v330 = vpack.c.b16 %v319, %v318
      %v331 = vpack.c.b16 %v321, %v320
      %v332 = vpack.c.b16 %v323, %v322
      %v333 = vpack.c.b16 %v325, %v324
      %342 = vmatpush.bf16.msra.mxu0 %v333
      %343 = vmatpush.bf16.msra.mxu0 %v332
      %344 = vmatpush.bf16.msra.mxu0 %v331
      %345 = vmatpush.bf16.msra.mxu0 %v330
      %346 = vmatpush.bf16.msra.mxu0 %v329
      %347 = vmatpush.bf16.msra.mxu0 %v328
      %348 = vmatpush.bf16.msra.mxu0 %v327
      %349 = vmatpush.bf16.msra.mxu0 %v326
      %350 = vmatmul.bf16.gmra.mxu0 %v268
      %v351 = vpop.f32.mrf.mxu0
      %v352 = vadd.f32 0.0, %v351
      %v353 = vpop.f32.mrf.mxu0
      %v354 = vadd.f32 0.0, %v353
      %355 = vmatmul.bf16.gmra.mxu0 %v269
      %v356 = vpop.f32.mrf.mxu0
      %v357 = vadd.f32 0.0, %v356
      %v358 = vpop.f32.mrf.mxu0
      %v359 = vadd.f32 0.0, %v358
      %360 = vmatmul.bf16.gmra.mxu0 %v270
      %v361 = vpop.f32.mrf.mxu0
      %v362 = vadd.f32 0.0, %v361
      %v363 = vpop.f32.mrf.mxu0
      %v364 = vadd.f32 0.0, %v363
      %365 = vmatmul.bf16.gmra.mxu0 %v271
      %v366 = vpop.f32.mrf.mxu0
      %v367 = vadd.f32 0.0, %v366
      %v368 = vpop.f32.mrf.mxu0
      %v369 = vadd.f32 0.0, %v368
      %370 = vmatmul.bf16.gmra.mxu0 %v272
      %v371 = vpop.f32.mrf.mxu0
      %v372 = vadd.f32 0.0, %v371
      %v373 = vpop.f32.mrf.mxu0
      %v374 = vadd.f32 0.0, %v373
      %375 = vmatmul.bf16.gmra.mxu0 %v273
      %v376 = vpop.f32.mrf.mxu0
      %v377 = vadd.f32 0.0, %v376
      %v378 = vpop.f32.mrf.mxu0
      %v379 = vadd.f32 0.0, %v378
      %380 = vmatmul.bf16.gmra.mxu0 %v274
      %v381 = vpop.f32.mrf.mxu0
      %v382 = vadd.f32 0.0, %v381
      %v383 = vpop.f32.mrf.mxu0
      %v384 = vadd.f32 0.0, %v383
      %385 = vmatmul.bf16.gmra.mxu0 %v275
      %v386 = vpop.f32.mrf.mxu0
      %v387 = vadd.f32 0.0, %v386
      %v388 = vpop.f32.mrf.mxu0
      %v389 = vadd.f32 0.0, %v388
      %390 = vmatmul.bf16.gmra.mxu0 %v276
      %v391 = vpop.f32.mrf.mxu0
      %v392 = vadd.f32 0.0, %v391
      %v393 = vpop.f32.mrf.mxu0
      %v394 = vadd.f32 0.0, %v393
      %395 = vmatmul.bf16.gmra.mxu0 %v277
      %v396 = vpop.f32.mrf.mxu0
      %v397 = vadd.f32 0.0, %v396
      %v398 = vpop.f32.mrf.mxu0
      %v399 = vadd.f32 0.0, %v398
      %400 = vmatmul.bf16.gmra.mxu0 %v278
      %v401 = vpop.f32.mrf.mxu0
      %v402 = vadd.f32 0.0, %v401
      %v403 = vpop.f32.mrf.mxu0
      %v404 = vadd.f32 0.0, %v403
      %405 = vmatmul.bf16.gmra.mxu0 %v279
      %v406 = vpop.f32.mrf.mxu0
      %v407 = vadd.f32 0.0, %v406
      %v408 = vpop.f32.mrf.mxu0
      %v409 = vadd.f32 0.0, %v408
      %410 = vmatmul.bf16.gmra.mxu0 %v280
      %v411 = vpop.f32.mrf.mxu0
      %v412 = vadd.f32 0.0, %v411
      %v413 = vpop.f32.mrf.mxu0
      %v414 = vadd.f32 0.0, %v413
      %415 = vdwg.mxu0
      %442 = vrot.lane.b32.xlu0 %v352, 112
      %v443 = vpop.permute.xlu0 %442
      %444 = vrot.lane.b32.xlu0 %v354, 112
      %v445 = vpop.permute.xlu0 %444
      %446 = vrot.lane.b32.xlu0 %v357, 112
      %v447 = vpop.permute.xlu0 %446
      %448 = vrot.lane.b32.xlu0 %v359, 112
      %v449 = vpop.permute.xlu0 %448
      %450 = vrot.lane.b32.xlu0 %v362, 112
      %v451 = vpop.permute.xlu0 %450
      %452 = vrot.lane.b32.xlu0 %v364, 112
      %v453 = vpop.permute.xlu0 %452
      %454 = vrot.lane.b32.xlu0 %v367, 112
      %v455 = vpop.permute.xlu0 %454
      %456 = vrot.lane.b32.xlu0 %v369, 112
      %v457 = vpop.permute.xlu0 %456
      %458 = vrot.lane.b32.xlu0 %v372, 112
      %v459 = vpop.permute.xlu0 %458
      %460 = vrot.lane.b32.xlu0 %v374, 112
      %v461 = vpop.permute.xlu0 %460
      %462 = vrot.lane.b32.xlu0 %v377, 112
      %v463 = vpop.permute.xlu0 %462
      %464 = vrot.lane.b32.xlu0 %v379, 112
      %v465 = vpop.permute.xlu0 %464
      %466 = vrot.lane.b32.xlu0 %v382, 112
      %v467 = vpop.permute.xlu0 %466
      %468 = vrot.lane.b32.xlu0 %v384, 112
      %v469 = vpop.permute.xlu0 %468
      %470 = vrot.lane.b32.xlu0 %v387, 112
      %v471 = vpop.permute.xlu0 %470
      %472 = vrot.lane.b32.xlu0 %v389, 112
      %v473 = vpop.permute.xlu0 %472
      %474 = vrot.lane.b32.xlu0 %v392, 112
      %v475 = vpop.permute.xlu0 %474
      %476 = vrot.lane.b32.xlu0 %v394, 112
      %v477 = vpop.permute.xlu0 %476
      %478 = vrot.lane.b32.xlu0 %v397, 112
      %v479 = vpop.permute.xlu0 %478
      %480 = vrot.lane.b32.xlu0 %v399, 112
      %v481 = vpop.permute.xlu0 %480
      %482 = vrot.lane.b32.xlu0 %v402, 112
      %v483 = vpop.permute.xlu0 %482
      %484 = vrot.lane.b32.xlu0 %v404, 112
      %v485 = vpop.permute.xlu0 %484
      %486 = vrot.lane.b32.xlu0 %v407, 112
      %v487 = vpop.permute.xlu0 %486
      %488 = vrot.lane.b32.xlu0 %v409, 112
      %v489 = vpop.permute.xlu0 %488
      %490 = vrot.lane.b32.xlu0 %v412, 112
      %v491 = vpop.permute.xlu0 %490
      %492 = vrot.lane.b32.xlu0 %v414, 112
      %v493 = vpop.permute.xlu0 %492
      %v520 = vmax.f32 %v352, %v443
      %v521 = vmax.f32 %v354, %v445
      %v522 = vmax.f32 %v357, %v447
      %v523 = vmax.f32 %v359, %v449
      %v524 = vmax.f32 %v362, %v451
      %v525 = vmax.f32 %v364, %v453
      %v526 = vmax.f32 %v367, %v455
      %v527 = vmax.f32 %v369, %v457
      %v528 = vmax.f32 %v372, %v459
      %v529 = vmax.f32 %v374, %v461
      %v530 = vmax.f32 %v377, %v463
      %v531 = vmax.f32 %v379, %v465
      %v532 = vmax.f32 %v382, %v467
      %v533 = vmax.f32 %v384, %v469
      %v534 = vmax.f32 %v387, %v471
      %v535 = vmax.f32 %v389, %v473
      %v536 = vmax.f32 %v392, %v475
      %v537 = vmax.f32 %v394, %v477
      %v538 = vmax.f32 %v397, %v479
      %v539 = vmax.f32 %v399, %v481
      %v540 = vmax.f32 %v402, %v483
      %v541 = vmax.f32 %v404, %v485
      %v542 = vmax.f32 %v407, %v487
      %v543 = vmax.f32 %v409, %v489
      %v544 = vmax.f32 %v412, %v491
      %v545 = vmax.f32 %v414, %v493
      %572 = vrot.lane.b32.xlu0 %v520, 96
      %v573 = vpop.permute.xlu0 %572
      %574 = vrot.lane.b32.xlu0 %v521, 96
      %v575 = vpop.permute.xlu0 %574
      %576 = vrot.lane.b32.xlu0 %v522, 96
      %v577 = vpop.permute.xlu0 %576
      %578 = vrot.lane.b32.xlu0 %v523, 96
      %v579 = vpop.permute.xlu0 %578
      %580 = vrot.lane.b32.xlu0 %v524, 96
      %v581 = vpop.permute.xlu0 %580
      %582 = vrot.lane.b32.xlu0 %v525, 96
      %v583 = vpop.permute.xlu0 %582
      %584 = vrot.lane.b32.xlu0 %v526, 96
      %v585 = vpop.permute.xlu0 %584
      %586 = vrot.lane.b32.xlu0 %v527, 96
      %v587 = vpop.permute.xlu0 %586
      %588 = vrot.lane.b32.xlu0 %v528, 96
      %v589 = vpop.permute.xlu0 %588
      %590 = vrot.lane.b32.xlu0 %v529, 96
      %v591 = vpop.permute.xlu0 %590
      %592 = vrot.lane.b32.xlu0 %v530, 96
      %v593 = vpop.permute.xlu0 %592
      %594 = vrot.lane.b32.xlu0 %v531, 96
      %v595 = vpop.permute.xlu0 %594
      %596 = vrot.lane.b32.xlu0 %v532, 96
      %v597 = vpop.permute.xlu0 %596
      %598 = vrot.lane.b32.xlu0 %v533, 96
      %v599 = vpop.permute.xlu0 %598
      %600 = vrot.lane.b32.xlu0 %v534, 96
      %v601 = vpop.permute.xlu0 %600
      %602 = vrot.lane.b32.xlu0 %v535, 96
      %v603 = vpop.permute.xlu0 %602
      %604 = vrot.lane.b32.xlu0 %v536, 96
      %v605 = vpop.permute.xlu0 %604
      %606 = vrot.lane.b32.xlu0 %v537, 96
      %v607 = vpop.permute.xlu0 %606
      %608 = vrot.lane.b32.xlu0 %v538, 96
      %v609 = vpop.permute.xlu0 %608
      %610 = vrot.lane.b32.xlu0 %v539, 96
      %v611 = vpop.permute.xlu0 %610
      %612 = vrot.lane.b32.xlu0 %v540, 96
      %v613 = vpop.permute.xlu0 %612
      %614 = vrot.lane.b32.xlu0 %v541, 96
      %v615 = vpop.permute.xlu0 %614
      %616 = vrot.lane.b32.xlu0 %v542, 96
      %v617 = vpop.permute.xlu0 %616
      %618 = vrot.lane.b32.xlu0 %v543, 96
      %v619 = vpop.permute.xlu0 %618
      %620 = vrot.lane.b32.xlu0 %v544, 96
      %v621 = vpop.permute.xlu0 %620
      %622 = vrot.lane.b32.xlu0 %v545, 96
      %v623 = vpop.permute.xlu0 %622
      %v650 = vmax.f32 %v520, %v573
      %v651 = vmax.f32 %v521, %v575
      %v652 = vmax.f32 %v522, %v577
      %v653 = vmax.f32 %v523, %v579
      %v654 = vmax.f32 %v524, %v581
      %v655 = vmax.f32 %v525, %v583
      %v656 = vmax.f32 %v526, %v585
      %v657 = vmax.f32 %v527, %v587
      %v658 = vmax.f32 %v528, %v589
      %v659 = vmax.f32 %v529, %v591
      %v660 = vmax.f32 %v530, %v593
      %v661 = vmax.f32 %v531, %v595
      %v662 = vmax.f32 %v532, %v597
      %v663 = vmax.f32 %v533, %v599
      %v664 = vmax.f32 %v534, %v601
      %v665 = vmax.f32 %v535, %v603
      %v666 = vmax.f32 %v536, %v605
      %v667 = vmax.f32 %v537, %v607
      %v668 = vmax.f32 %v538, %v609
      %v669 = vmax.f32 %v539, %v611
      %v670 = vmax.f32 %v540, %v613
      %v671 = vmax.f32 %v541, %v615
      %v672 = vmax.f32 %v542, %v617
      %v673 = vmax.f32 %v543, %v619
      %v674 = vmax.f32 %v544, %v621
      %v675 = vmax.f32 %v545, %v623
      %v676 = vld [vmem:[%s2] sm:$0x1]
      %v678 = vperm.slane %v676, 0
      %v680 = vadd.f32 %v650, %v678
      %v681 = vadd.f32 %v651, %v678
      %v682 = vadd.f32 %v652, %v678
      %v683 = vadd.f32 %v653, %v678
      %v684 = vadd.f32 %v654, %v678
      %v685 = vadd.f32 %v655, %v678
      %v686 = vadd.f32 %v656, %v678
      %v687 = vadd.f32 %v657, %v678
      %v688 = vadd.f32 %v658, %v678
      %v689 = vadd.f32 %v659, %v678
      %v690 = vadd.f32 %v660, %v678
      %v691 = vadd.f32 %v661, %v678
      %v692 = vadd.f32 %v662, %v678
      %v693 = vadd.f32 %v663, %v678
      %v694 = vadd.f32 %v664, %v678
      %v695 = vadd.f32 %v665, %v678
      %v696 = vadd.f32 %v666, %v678
      %v697 = vadd.f32 %v667, %v678
      %v698 = vadd.f32 %v668, %v678
      %v699 = vadd.f32 %v669, %v678
      %v700 = vadd.f32 %v670, %v678
      %v701 = vadd.f32 %v671, %v678
      %v702 = vadd.f32 %v672, %v678
      %v703 = vadd.f32 %v673, %v678
      %v704 = vadd.f32 %v674, %v678
      %v705 = vadd.f32 %v675, %v678
      %v706 = vmax.f32 %v680, 0.0
      %v707 = vmax.f32 %v681, 0.0
      %v708 = vmax.f32 %v682, 0.0
      %v709 = vmax.f32 %v683, 0.0
      %v710 = vmax.f32 %v684, 0.0
      %v711 = vmax.f32 %v685, 0.0
      %v712 = vmax.f32 %v686, 0.0
      %v713 = vmax.f32 %v687, 0.0
      %v714 = vmax.f32 %v688, 0.0
      %v715 = vmax.f32 %v689, 0.0
      %v716 = vmax.f32 %v690, 0.0
      %v717 = vmax.f32 %v691, 0.0
      %v718 = vmax.f32 %v692, 0.0
      %v719 = vmax.f32 %v693, 0.0
      %v720 = vmax.f32 %v694, 0.0
      %v721 = vmax.f32 %v695, 0.0
      %v722 = vmax.f32 %v696, 0.0
      %v723 = vmax.f32 %v697, 0.0
      %v724 = vmax.f32 %v698, 0.0
      %v725 = vmax.f32 %v699, 0.0
      %v726 = vmax.f32 %v700, 0.0
      %v727 = vmax.f32 %v701, 0.0
      %v728 = vmax.f32 %v702, 0.0
      %v729 = vmax.f32 %v703, 0.0
      %v730 = vmax.f32 %v704, 0.0
      %v731 = vmax.f32 %v705, 0.0
      %v732 = vpack.c.bf16 %v706, %v706
      %v733 = vpack.c.bf16 %v707, %v707
      %v734 = vpack.c.bf16 %v708, %v708
      %v735 = vpack.c.bf16 %v709, %v709
      %v736 = vpack.c.bf16 %v710, %v710
      %v737 = vpack.c.bf16 %v711, %v711
      %v738 = vpack.c.bf16 %v712, %v712
      %v739 = vpack.c.bf16 %v713, %v713
      %v740 = vpack.c.bf16 %v714, %v714
      %v741 = vpack.c.bf16 %v715, %v715
      %v742 = vpack.c.bf16 %v716, %v716
      %v743 = vpack.c.bf16 %v717, %v717
      %v744 = vpack.c.bf16 %v718, %v718
      %v745 = vpack.c.bf16 %v719, %v719
      %v746 = vpack.c.bf16 %v720, %v720
      %v747 = vpack.c.bf16 %v721, %v721
      %v748 = vpack.c.bf16 %v722, %v722
      %v749 = vpack.c.bf16 %v723, %v723
      %v750 = vpack.c.bf16 %v724, %v724
      %v751 = vpack.c.bf16 %v725, %v725
      %v752 = vpack.c.bf16 %v726, %v726
      %v753 = vpack.c.bf16 %v727, %v727
      %v754 = vpack.c.bf16 %v728, %v728
      %v755 = vpack.c.bf16 %v729, %v729
      %v756 = vpack.c.bf16 %v730, %v730
      %v757 = vpack.c.bf16 %v731, %v731
      %vm758 = vcmask 125952
      %759 = vst.msk [vmem:[%s172] sm:$0xf] %vm758, %v732
      %760 = vst.msk [vmem:[%s172 + $0x4] sm:$0xf] %vm758, %v733
      %761 = vst.msk [vmem:[%s172 + $0x8] sm:$0xf] %vm758, %v734
      %762 = vst.msk [vmem:[%s172 + $0xc] sm:$0xf] %vm758, %v735
      %763 = vst.msk [vmem:[%s172 + $0x10] sm:$0xf] %vm758, %v736
      %764 = vst.msk [vmem:[%s172 + $0x14] sm:$0xf] %vm758, %v737
      %765 = vst.msk [vmem:[%s172 + $0x18] sm:$0xf] %vm758, %v738
      %766 = vst.msk [vmem:[%s172 + $0x1c] sm:$0xf] %vm758, %v739
      %767 = vst.msk [vmem:[%s172 + $0x20] sm:$0xf] %vm758, %v740
      %768 = vst.msk [vmem:[%s172 + $0x24] sm:$0xf] %vm758, %v741
      %769 = vst.msk [vmem:[%s172 + $0x28] sm:$0xf] %vm758, %v742
      %770 = vst.msk [vmem:[%s172 + $0x2c] sm:$0xf] %vm758, %v743
      %771 = vst.msk [vmem:[%s172 + $0x30] sm:$0xf] %vm758, %v744
      %772 = vst.msk [vmem:[%s172 + $0x34] sm:$0xf] %vm758, %v745
      %773 = vst.msk [vmem:[%s172 + $0x38] sm:$0xf] %vm758, %v746
      %774 = vst.msk [vmem:[%s172 + $0x3c] sm:$0xf] %vm758, %v747
      %775 = vst.msk [vmem:[%s172 + $0x40] sm:$0xf] %vm758, %v748
      %776 = vst.msk [vmem:[%s172 + $0x44] sm:$0xf] %vm758, %v749
      %777 = vst.msk [vmem:[%s172 + $0x48] sm:$0xf] %vm758, %v750
      %778 = vst.msk [vmem:[%s172 + $0x4c] sm:$0xf] %vm758, %v751
      %779 = vst.msk [vmem:[%s172 + $0x50] sm:$0xf] %vm758, %v752
      %780 = vst.msk [vmem:[%s172 + $0x54] sm:$0xf] %vm758, %v753
      %781 = vst.msk [vmem:[%s172 + $0x58] sm:$0xf] %vm758, %v754
      %782 = vst.msk [vmem:[%s172 + $0x5c] sm:$0xf] %vm758, %v755
      %783 = vst.msk [vmem:[%s172 + $0x60] sm:$0xf] %vm758, %v756
      %784 = vst.msk [vmem:[%s172 + $0x64] sm:$0xf] %vm758, %v757
      %s785 = smul.u32 26, %s14
      %p786 = scmp.lt.s32.totalorder %s785, 51
      %s787 = scalar_select %p786, %s785, 51
      %s788 = smul.addr %s787, 4
      %s789 = scalar_lea.vmem %s3, %s788
      // Predicated region
      $region33: #{convnet_forward.3} parent=31 // pred_check
        %p790 = pneg %p100
      $region34: #{convnet_forward.3} parent=31 // pred_check_branch
        %792 = sbr.rel (%p790) target = $region36
      $region35: #{convnet_forward.3} parent=31 // pred_region
        %s793 = smul.u32 26, %s14
      $region36: #{convnet_forward.3} parent=31 // pred_fallthru
        _
    $region32: #{convnet_forward.3} parent=5 // pred_fallthru
      _
    %p794 = scmp.le.s32.totalorder 2, %s9
    // Predicated region
    $region37: #{convnet_forward.3} parent=5 // pred_check
      %p795 = pneg %p794
    $region38: #{convnet_forward.3} parent=5 // pred_check_branch
      %797 = sbr.rel (%p795) target = $region40
    $region39: #{convnet_forward.3} parent=5 // pred_region
      %s798 = ssub.s32 %s9, 2
      // Predicated region
      $region41: #{convnet_forward.3} parent=39 // pred_check
        %p799 = pneg %p106
      $region42: #{convnet_forward.3} parent=39 // pred_check_branch
        %801 = sbr.rel (%p799) target = $region44
      $region43: #{convnet_forward.3} parent=39 // pred_region
        %s802 = smul.u32 26, %s15
        %p803 = scmp.lt.s32.totalorder %s802, 51
        %s804 = scalar_select %p803, %s802, 51
        %s805 = smul.addr %s804, 4
        %s806 = scalar_lea.vmem %s3, %s805
      $region44: #{convnet_forward.3} parent=39 // pred_fallthru
        _
    $region40: #{convnet_forward.3} parent=5 // pred_fallthru
      _
  $region6: #{convnet_forward.3} parent=0 // loop_footer
    %s13 = sadd.s32 1, %s9
  $region7: #{convnet_forward.3} parent=0 // loop_footer_branch
    %8 = sbr.rel target = $region3
  $region8: #{convnet_forward.3} parent=0 // loop_exit
    _

// kernel: convnet_forward.4
$region0: #{convnet_forward.4}
  #allocation0 [shape = 'u32[]', space=smem, size = 0x4, offset = 0x4, fixed_abs, tag = 'smem constant byte address 0x4 - core index']
  #allocation1 [shape = 'u32[72,128]{1,0:T(1,128)}', space=vmem, size = 0x9000, scoped, tag = 'internal scratch']
  %s0 = inlined_call_operand.vmem [shape: bf16[2,252,80], index: 0, kind: input, shape index: {}]
  %s1 = inlined_call_operand.vmem [shape: bf16[5,80,32], index: 1, kind: input, shape index: {}]
  %s2 = inlined_call_operand.vmem [shape: f32[1,32], index: 2, kind: input, shape index: {}]
  %s3 = inlined_call_operand.vmem [shape: bf16[2,49,32], index: 3, kind: output, shape index: {}]
  %s4 = sld [smem:[#allocation0]]
  $region45: #{convnet_forward.4} parent=0
    _
  %s6 = ssub.s32 1, %s4
  %s7 = scalar_select 0, %s6, %s4
  loop: start=0, step=1, limit=4
  $region2: #{convnet_forward.4} parent=0 // loop_pre_header
    _
  $region3: #{convnet_forward.4} parent=0 // loop_header
    %s9 = sphi 0, %s13
    %p10 = scmp.ge.s32.totalorder %s9, 4
    %s19 = sphi 0, %s21
    %s22 = sphi 0, %s19
    %s23 = sphi 0, %s22
    %s39 = sphi 0, %s23
    %s43 = sphi 0, %s43
    %s45 = sphi 0, %s43
    %s46 = sphi 0, %s45
    %s60 = sphi 0, %s46
    %s64 = sphi 0, %s64
    %s66 = sphi 0, %s64
    %s67 = sphi 0, %s66
    %s81 = sphi 0, %s67
    %s87 = sphi 0, %s89
    %s90 = sphi 0, %s87
    %s91 = sphi 0, %s90
    %s107 = sphi 0, %s91
  $region4: #{convnet_forward.4} parent=0 // loop_header_branch
    %12 = sbr.rel (%p10) target = $region8
  $region5: #{convnet_forward.4} parent=0 // loop_body
    %s14 = ssub.s32 %s9, 1
    %s15 = ssub.s32 %s9, 2
    %s16 = sadd.s32 %s9, 1
    %s17 = ssub.s32 %s9, %s16
    %p18 = scmp.eq.s32.totalorder %s17, 0
    %s20 = sadd.s32 %s19, 1
    %s21 = scalar_select %p18, %s19, %s20
    %p24 = pneg %p18
    %p25 = scmp.eq.s32.totalorder %s9, 1
    %p26 = por %p24, %p25
    %p27 = scmp.ne.s32.totalorder %s19, %s22
    %p28 = scmp.eq.s32.totalorder %s9, 0
    %p29 = por %p27, %p28
    %p30 = scmp.ne.s32.totalorder %s19, %s22
    %p31 = scmp.eq.s32.totalorder %s14, 1
    %p32 = por %p30, %p31
    %p33 = scmp.ne.s32.totalorder %s22, %s23
    %p34 = scmp.eq.s32.totalorder %s14, 0
    %p35 = por %p33, %p34
    %p36 = scmp.ne.s32.totalorder %s22, %s23
    %p37 = scmp.eq.s32.totalorder %s15, 1
    %p38 = por %p36, %p37
    %p40 = scmp.ne.s32.totalorder %s23, %s39
    %p41 = scmp.eq.s32.totalorder %s15, 0
    %p42 = por %p40, %p41
    %s44 = sadd.s32 %s43, 1
    %p47 = scmp.eq.s32.totalorder %s9, 1
    %p48 = scmp.ne.s32.totalorder %s43, %s45
    %p49 = scmp.eq.s32.totalorder %s9, 0
    %p50 = por %p48, %p49
    %p51 = scmp.ne.s32.totalorder %s43, %s45
    %p52 = scmp.eq.s32.totalorder %s14, 1
    %p53 = por %p51, %p52
    %p54 = scmp.ne.s32.totalorder %s45, %s46
    %p55 = scmp.eq.s32.totalorder %s14, 0
    %p56 = por %p54, %p55
    %p57 = scmp.ne.s32.totalorder %s45, %s46
    %p58 = scmp.eq.s32.totalorder %s15, 1
    %p59 = por %p57, %p58
    %p61 = scmp.ne.s32.totalorder %s46, %s60
    %p62 = scmp.eq.s32.totalorder %s15, 0
    %p63 = por %p61, %p62
    %s65 = sadd.s32 %s64, 1
    %p68 = scmp.eq.s32.totalorder %s9, 1
    %p69 = scmp.ne.s32.totalorder %s64, %s66
    %p70 = scmp.eq.s32.totalorder %s9, 0
    %p71 = por %p69, %p70
    %p72 = scmp.ne.s32.totalorder %s64, %s66
    %p73 = scmp.eq.s32.totalorder %s14, 1
    %p74 = por %p72, %p73
    %p75 = scmp.ne.s32.totalorder %s66, %s67
    %p76 = scmp.eq.s32.totalorder %s14, 0
    %p77 = por %p75, %p76
    %p78 = scmp.ne.s32.totalorder %s66, %s67
    %p79 = scmp.eq.s32.totalorder %s15, 1
    %p80 = por %p78, %p79
    %p82 = scmp.ne.s32.totalorder %s67, %s81
    %p83 = scmp.eq.s32.totalorder %s15, 0
    %p84 = por %p82, %p83
    %s85 = ssub.s32 %s9, %s16
    %p86 = scmp.eq.s32.totalorder %s85, 0
    %s88 = sadd.s32 %s87, 1
    %s89 = scalar_select %p86, %s87, %s88
    %p92 = pneg %p86
    %p93 = scmp.eq.s32.totalorder %s9, 1
    %p94 = por %p92, %p93
    %p95 = scmp.ne.s32.totalorder %s87, %s90
    %p96 = scmp.eq.s32.totalorder %s9, 0
    %p97 = por %p95, %p96
    %p98 = scmp.ne.s32.totalorder %s87, %s90
    %p99 = scmp.eq.s32.totalorder %s14, 1
    %p100 = por %p98, %p99
    %p101 = scmp.ne.s32.totalorder %s90, %s91
    %p102 = scmp.eq.s32.totalorder %s14, 0
    %p103 = por %p101, %p102
    %p104 = scmp.ne.s32.totalorder %s90, %s91
    %p105 = scmp.eq.s32.totalorder %s15, 1
    %p106 = por %p104, %p105
    %p108 = scmp.ne.s32.totalorder %s91, %s107
    %p109 = scmp.eq.s32.totalorder %s15, 0
    %p110 = por %p108, %p109
    %p111 = scmp.le.s32.totalorder 1, %s9
    %p112 = scmp.lt.s32.totalorder %s9, 3
    %p113 = pnand %p111, %p112
    %p114 = pneg %p113
    // Predicated region
    $region9: #{convnet_forward.4} parent=5 // pred_check
      _
    $region10: #{convnet_forward.4} parent=5 // pred_check_branch
      %116 = sbr.rel (%p113) target = $region12
    $region11: #{convnet_forward.4} parent=5 // pred_region
      %s117 = ssub.s32 %s9, 1
      // Predicated region
      $region13: #{convnet_forward.4} parent=11 // pred_check
        %p118 = pneg %p56
      $region14: #{convnet_forward.4} parent=11 // pred_check_branch
        %120 = sbr.rel (%p118) target = $region16
      $region15: #{convnet_forward.4} parent=11 // pred_region
        _
      $region16: #{convnet_forward.4} parent=11 // pred_fallthru
        _
      // Predicated region
      $region17: #{convnet_forward.4} parent=11 // pred_check
        %p121 = pneg %p77
      $region18: #{convnet_forward.4} parent=11 // pred_check_branch
        %123 = sbr.rel (%p121) target = $region20
      $region19: #{convnet_forward.4} parent=11 // pred_region
        _
      $region20: #{convnet_forward.4} parent=11 // pred_fallthru
        _
    $region12: #{convnet_forward.4} parent=5 // pred_fallthru
      _
    %p124 = scmp.lt.s32.totalorder %s9, 2
    // Predicated region
    $region21: #{convnet_forward.4} parent=5 // pred_check
      %p125 = pneg %p124
    $region22: #{convnet_forward.4} parent=5 // pred_check_branch
      %127 = sbr.rel (%p125) target = $region24
    $region23: #{convnet_forward.4} parent=5 // pred_region
      // Predicated region
      $region25: #{convnet_forward.4} parent=23 // pred_check
        %p128 = pneg %p29
      $region26: #{convnet_forward.4} parent=23 // pred_check_branch
        %130 = sbr.rel (%p128) target = $region28
      $region27: #{convnet_forward.4} parent=23 // pred_region
        %p131 = scmp.lt.s32.totalorder %s9, 1
        %s132 = scalar_select %p131, %s9, 1
        %s133 = smul.addr %s132, 32
        %s134 = smul.addr %s133, 4
        %s135 = scalar_lea.vmem %s0, %s134
      $region28: #{convnet_forward.4} parent=23 // pred_fallthru
        _
    $region24: #{convnet_forward.4} parent=5 // pred_fallthru
      _
    %p136 = scmp.le.s32.totalorder 1, %s9
    %p137 = scmp.lt.s32.totalorder %s9, 3
    %p138 = pnand %p136, %p137
    %p139 = pneg %p138
    // Predicated region
    $region29: #{convnet_forward.4} parent=5 // pred_check
      _
    $region30: #{convnet_forward.4} parent=5 // pred_check_branch
      %141 = sbr.rel (%p138) target = $region32
    $region31: #{convnet_forward.4} parent=5 // pred_region
      %s142 = ssub.s32 %s9, 1
      %p143 = scmp.lt.s32.totalorder %s14, 1
      %s144 = scalar_select %p143, %s14, 1
      %s145 = smul.addr %s144, 32
      %s146 = smul.addr %s145, 4
      %s147 = scalar_lea.vmem %s0, %s146
      %p148 = pneg %p35
      %p149 = pneg %p32
      %p150 = pneg %p56
      %p151 = pneg %p53
      %p152 = pneg %p77
      %p153 = pneg %p74
      %p154 = pneg %p103
      %p155 = pneg %p100
      %p156 = scmp.lt.s32.totalorder %s14, 1
      %s157 = scalar_select %p156, %s14, 1
      %s158 = smul.addr %s157, 7
      %s159 = smul.addr %s158, 4
      %s160 = scalar_lea.vmem %s3, %s159
      %p161 = scmp.lt.s32.totalorder %s14, 1
      %s162 = scalar_select %p161, %s14, 1
      %s163 = smul.addr %s162, 32
      %s164 = smul.addr %s163, 4
      %s165 = scalar_lea.vmem %s0, %s164
      %p166 = scmp.lt.s32.totalorder %s14, 1
      %s167 = scalar_select %p166, %s14, 1
      %s168 = smul.addr %s167, 7
      %s169 = smul.addr %s168, 4
      %s170 = scalar_lea.vmem %s3, %s169
      %v172 = vld [vmem:[%s165] sm:$0xf]
      %v173 = vld [vmem:[%s165 + $0x4] sm:$0xf]
      %v174 = vld [vmem:[%s165 + $0x8] sm:$0xf]
      %v175 = vld [vmem:[%s165 + $0xc] sm:$0xf]
      %v176 = vld [vmem:[%s165 + $0x10] sm:$0xf]
      %v177 = vld [vmem:[%s165 + $0x14] sm:$0xf]
      %v178 = vld [vmem:[%s165 + $0x18] sm:$0xf]
      %v179 = vld [vmem:[%s165 + $0x1c] sm:$0xf]
      %v180 = vld [vmem:[%s165 + $0x20] sm:$0xf]
      %v181 = vld [vmem:[%s165 + $0x24] sm:$0xf]
      %v182 = vld [vmem:[%s165 + $0x28] sm:$0xf]
      %v183 = vld [vmem:[%s165 + $0x2c] sm:$0xf]
      %v184 = vld [vmem:[%s165 + $0x30] sm:$0xf]
      %v185 = vld [vmem:[%s165 + $0x34] sm:$0xf]
      %v186 = vld [vmem:[%s165 + $0x38] sm:$0xf]
      %v187 = vld [vmem:[%s165 + $0x3c] sm:$0xf]
      %v188 = vld [vmem:[%s165 + $0x40] sm:$0xf]
      %v189 = vld [vmem:[%s165 + $0x44] sm:$0xf]
      %v190 = vld [vmem:[%s165 + $0x48] sm:$0xf]
      %v191 = vld [vmem:[%s165 + $0x4c] sm:$0xf]
      %v192 = vld [vmem:[%s165 + $0x50] sm:$0xf]
      %v193 = vld [vmem:[%s165 + $0x54] sm:$0xf]
      %v194 = vld [vmem:[%s165 + $0x58] sm:$0xf]
      %v195 = vld [vmem:[%s165 + $0x5c] sm:$0xf]
      %v196 = vld [vmem:[%s165 + $0x60] sm:$0xf]
      %v197 = vld [vmem:[%s165 + $0x64] sm:$0xf]
      %v198 = vld [vmem:[%s165 + $0x68] sm:$0xf]
      %v199 = vld [vmem:[%s165 + $0x6c] sm:$0xf]
      %v200 = vld [vmem:[%s165 + $0x70] sm:$0xf]
      %v201 = vld [vmem:[%s165 + $0x74] sm:$0xf]
      %v202 = vld [vmem:[%s165 + $0x78] sm:$0xf]
      %v203 = vld [vmem:[%s165 + $0x7c] sm:$0x3]
      %v204 = vld [vmem:[%s1] sm:$0xf]
      %v205 = vld [vmem:[%s1 + $0x4] sm:$0xf]
      %v206 = vld [vmem:[%s1 + $0x8] sm:$0xf]
      %v207 = vld [vmem:[%s1 + $0xc] sm:$0xf]
      %v208 = vld [vmem:[%s1 + $0x10] sm:$0xf]
      %v209 = vld [vmem:[%s1 + $0x14] sm:$0xf]
      %v210 = vld [vmem:[%s1 + $0x18] sm:$0xf]
      %v211 = vld [vmem:[%s1 + $0x1c] sm:$0xf]
      %v212 = vld [vmem:[%s1 + $0x20] sm:$0xf]
      %v213 = vld [vmem:[%s1 + $0x24] sm:$0xf]
      %v214 = vld [vmem:[%s1 + $0x28] sm:$0xf]
      %v215 = vld [vmem:[%s1 + $0x2c] sm:$0xf]
      %v216 = vld [vmem:[%s1 + $0x30] sm:$0xf]
      %v217 = vld [vmem:[%s1 + $0x34] sm:$0xf]
      %v218 = vld [vmem:[%s1 + $0x38] sm:$0xf]
      %v219 = vld [vmem:[%s1 + $0x3c] sm:$0xf]
      %v220 = vld [vmem:[%s1 + $0x40] sm:$0xf]
      %v221 = vld [vmem:[%s1 + $0x44] sm:$0xf]
      %v222 = vld [vmem:[%s1 + $0x48] sm:$0xf]
      %v223 = vld [vmem:[%s1 + $0x4c] sm:$0xf]
      %v224 = vld [vmem:[%s1 + $0x50] sm:$0xf]
      %v225 = vld [vmem:[%s1 + $0x54] sm:$0xf]
      %v226 = vld [vmem:[%s1 + $0x58] sm:$0xf]
      %v227 = vld [vmem:[%s1 + $0x5c] sm:$0xf]
      %v228 = vld [vmem:[%s1 + $0x60] sm:$0xf]
      %v229 = vld [vmem:[%s1 + $0x64] sm:$0xf]
      %v230 = vld [vmem:[%s1 + $0x68] sm:$0xf]
      %v231 = vld [vmem:[%s1 + $0x6c] sm:$0xf]
      %v232 = vld [vmem:[%s1 + $0x70] sm:$0xf]
      %v233 = vld [vmem:[%s1 + $0x74] sm:$0xf]
      %v234 = vld [vmem:[%s1 + $0x78] sm:$0xf]
      %v235 = vld [vmem:[%s1 + $0x7c] sm:$0xf]
      %v236 = vld [vmem:[%s1 + $0x80] sm:$0xf]
      %v237 = vld [vmem:[%s1 + $0x84] sm:$0xf]
      %v238 = vld [vmem:[%s1 + $0x88] sm:$0xf]
      %v239 = vld [vmem:[%s1 + $0x8c] sm:$0xf]
      %v240 = vld [vmem:[%s1 + $0x90] sm:$0xf]
      %v241 = vld [vmem:[%s1 + $0x94] sm:$0xf]
      %v242 = vld [vmem:[%s1 + $0x98] sm:$0xf]
      %v243 = vld [vmem:[%s1 + $0x9c] sm:$0xf]
      %v244 = vld [vmem:[%s1 + $0xa0] sm:$0xf]
      %v245 = vld [vmem:[%s1 + $0xa4] sm:$0xf]
      %v246 = vld [vmem:[%s1 + $0xa8] sm:$0xf]
      %v247 = vld [vmem:[%s1 + $0xac] sm:$0xf]
      %v248 = vld [vmem:[%s1 + $0xb0] sm:$0xf]
      %v249 = vld [vmem:[%s1 + $0xb4] sm:$0xf]
      %v250 = vld [vmem:[%s1 + $0xb8] sm:$0xf]
      %v251 = vld [vmem:[%s1 + $0xbc] sm:$0xf]
      %v252 = vld [vmem:[%s1 + $0xc0] sm:$0xf]
      %v253 = vld [vmem:[%s1 + $0xc4] sm:$0xf]
      %v280 = vunpack.c.l.b16 %v173
      %v281 = vunpack.c.l.b16 %v174
      %v282 = vunpack.c.l.b16 %v175
      %v283 = vunpack.c.l.b16 %v176
      %v284 = vunpack.c.l.b16 %v177
      %v285 = vunpack.c.l.b16 %v178
      %v286 = vunpack.c.l.b16 %v179
      %v287 = vunpack.c.l.b16 %v180
      %v288 = vunpack.c.l.b16 %v181
      %v289 = vunpack.c.l.b16 %v182
      %v290 = vunpack.c.l.b16 %v183
      %v291 = vunpack.c.l.b16 %v184
      %v292 = vunpack.c.l.b16 %v185
      %v293 = vunpack.c.l.b16 %v186
      %v294 = vunpack.c.l.b16 %v187
      %v295 = vunpack.c.l.b16 %v188
      %v296 = vunpack.c.l.b16 %v189
      %v297 = vunpack.c.l.b16 %v190
      %v298 = vunpack.c.l.b16 %v191
      %v299 = vunpack.c.l.b16 %v192
      %v300 = vunpack.c.l.b16 %v193
      %v301 = vunpack.c.l.b16 %v194
      %v302 = vunpack.c.l.b16 %v195
      %v303 = vunpack.c.l.b16 %v196
      %v304 = vunpack.c.l.b16 %v197
      %v305 = vunpack.c.l.b16 %v198
      %v306 = vpack.c.b16 %v281, %v280
      %v307 = vpack.c.b16 %v283, %v282
      %v308 = vpack.c.b16 %v285, %v284
      %v309 = vpack.c.b16 %v287, %v286
      %v310 = vpack.c.b16 %v289, %v288
      %v311 = vpack.c.b16 %v291, %v290
      %v312 = vpack.c.b16 %v293, %v292
      %v313 = vpack.c.b16 %v295, %v294
      %v314 = vpack.c.b16 %v297, %v296
      %v315 = vpack.c.b16 %v299, %v298
      %v316 = vpack.c.b16 %v301, %v300
      %v317 = vpack.c.b16 %v303, %v302
      %v318 = vpack.c.b16 %v305, %v304
      %vm319 = vcmask 1044480
      %v320 = vrot.slane %v306, 3
      %v321 = vrot.slane %v307, 3
      %v322 = vsel %vm319, %v320, %v321
      %v323 = vrot.slane %v308, 3
      %v324 = vsel %vm319, %v321, %v323
      %v325 = vrot.slane %v309, 3
      %v326 = vsel %vm319, %v323, %v325
      %v327 = vrot.slane %v310, 3
      %v328 = vsel %vm319, %v325, %v327
      %v329 = vrot.slane %v311, 3
      %v330 = vsel %vm319, %v327, %v329
      %v331 = vrot.slane %v312, 3
      %v332 = vsel %vm319, %v329, %v331
      %v333 = vrot.slane %v313, 3
      %v334 = vsel %vm319, %v331, %v333
      %v335 = vrot.slane %v314, 3
      %v336 = vsel %vm319, %v333, %v335
      %v337 = vrot.slane %v315, 3
      %v338 = vsel %vm319, %v335, %v337
      %v339 = vrot.slane %v316, 3
      %v340 = vsel %vm319, %v337, %v339
      %v341 = vrot.slane %v317, 3
      %v342 = vsel %vm319, %v339, %v341
      %v343 = vrot.slane %v318, 3
      %v344 = vsel %vm319, %v341, %v343
      %v355 = vunpack.c.l.b16 %v214
      %v356 = vunpack.c.l.b16 %v215
      %v357 = vunpack.c.l.b16 %v216
      %v358 = vunpack.c.l.b16 %v217
      %v359 = vunpack.c.l.b16 %v218
      %v360 = vunpack.c.l.b16 %v219
      %v361 = vunpack.c.l.b16 %v220
      %v362 = vunpack.c.l.b16 %v221
      %v363 = vunpack.c.l.b16 %v222
      %v364 = vunpack.c.l.b16 %v223
      %v365 = vpack.c.b16 %v356, %v355
      %v366 = vpack.c.b16 %v358, %v357
      %v367 = vpack.c.b16 %v360, %v359
      %v368 = vpack.c.b16 %v362, %v361
      %v369 = vpack.c.b16 %v364, %v363
      %vm375 = vcmask 654336
      %v377 = vsel %vm375, %v322, 0
      %v380 = vsel %vm375, %v324, 0
      %v383 = vsel %vm375, %v326, 0
      %v386 = vsel %vm375, %v328, 0
      %v389 = vsel %vm375, %v330, 0
      %v392 = vsel %vm375, %v332, 0
      %v395 = vsel %vm375, %v334, 0
      %v398 = vsel %vm375, %v336, 0
      %v401 = vsel %vm375, %v338, 0
      %v404 = vsel %vm375, %v340, 0
      %v407 = vsel %vm375, %v342, 0
      %v410 = vsel %vm375, %v344, 0
      %v413 = vsel %vm375, %v343, 0
      %415 = vmatpush.bf16.msra.mxu0 0
      %416 = vmatpush.bf16.msra.mxu0 0
      %417 = vmatpush.bf16.msra.mxu0 0
      %418 = vmatpush.bf16.msra.mxu0 %v369
      %419 = vmatpush.bf16.msra.mxu0 %v368
      %420 = vmatpush.bf16.msra.mxu0 %v367
      %421 = vmatpush.bf16.msra.mxu0 %v366
      %422 = vmatpush.bf16.msra.mxu0 %v365
      %423 = vmatmul.bf16.gmra.mxu0 %v377
      %v424 = vpop.f32.mrf.mxu0
      %v425 = vadd.f32 0.0, %v424
      %v426 = vpop.f32.mrf.mxu0
      %v427 = vadd.f32 0.0, %v426
      %428 = vmatmul.bf16.gmra.mxu0 %v380
      %v429 = vpop.f32.mrf.mxu0
      %v430 = vadd.f32 0.0, %v429
      %v431 = vpop.f32.mrf.mxu0
      %v432 = vadd.f32 0.0, %v431
      %433 = vmatmul.bf16.gmra.mxu0 %v383
      %v434 = vpop.f32.mrf.mxu0
      %v435 = vadd.f32 0.0, %v434
      %v436 = vpop.f32.mrf.mxu0
      %v437 = vadd.f32 0.0, %v436
      %438 = vmatmul.bf16.gmra.mxu0 %v386
      %v439 = vpop.f32.mrf.mxu0
      %v440 = vadd.f32 0.0, %v439
      %v441 = vpop.f32.mrf.mxu0
      %v442 = vadd.f32 0.0, %v441
      %443 = vmatmul.bf16.gmra.mxu0 %v389
      %v444 = vpop.f32.mrf.mxu0
      %v445 = vadd.f32 0.0, %v444
      %v446 = vpop.f32.mrf.mxu0
      %v447 = vadd.f32 0.0, %v446
      %448 = vmatmul.bf16.gmra.mxu0 %v392
      %v449 = vpop.f32.mrf.mxu0
      %v450 = vadd.f32 0.0, %v449
      %v451 = vpop.f32.mrf.mxu0
      %v452 = vadd.f32 0.0, %v451
      %453 = vmatmul.bf16.gmra.mxu0 %v395
      %v454 = vpop.f32.mrf.mxu0
      %v455 = vadd.f32 0.0, %v454
      %v456 = vpop.f32.mrf.mxu0
      %v457 = vadd.f32 0.0, %v456
      %458 = vmatmul.bf16.gmra.mxu0 %v398
      %v459 = vpop.f32.mrf.mxu0
      %v460 = vadd.f32 0.0, %v459
      %v461 = vpop.f32.mrf.mxu0
      %v462 = vadd.f32 0.0, %v461
      %463 = vmatmul.bf16.gmra.mxu0 %v401
      %v464 = vpop.f32.mrf.mxu0
      %v465 = vadd.f32 0.0, %v464
      %v466 = vpop.f32.mrf.mxu0
      %v467 = vadd.f32 0.0, %v466
      %468 = vmatmul.bf16.gmra.mxu0 %v404
      %v469 = vpop.f32.mrf.mxu0
      %v470 = vadd.f32 0.0, %v469
      %v471 = vpop.f32.mrf.mxu0
      %v472 = vadd.f32 0.0, %v471
      %473 = vmatmul.bf16.gmra.mxu0 %v407
      %v474 = vpop.f32.mrf.mxu0
      %v475 = vadd.f32 0.0, %v474
      %v476 = vpop.f32.mrf.mxu0
      %v477 = vadd.f32 0.0, %v476
      %478 = vmatmul.bf16.gmra.mxu0 %v410
      %v479 = vpop.f32.mrf.mxu0
      %v480 = vadd.f32 0.0, %v479
      %v481 = vpop.f32.mrf.mxu0
      %v482 = vadd.f32 0.0, %v481
      %483 = vmatmul.bf16.gmra.mxu0 %v413
      %v484 = vpop.f32.mrf.mxu0
      %v485 = vadd.f32 0.0, %v484
      %v486 = vpop.f32.mrf.mxu0
      %487 = vdwg.mxu0
      %v489 = vunpack.c.l.b16 %v172
      %v490 = vpack.c.b16 %v280, %v489
      %v491 = vpack.c.b16 %v282, %v281
      %v492 = vpack.c.b16 %v284, %v283
      %v493 = vpack.c.b16 %v286, %v285
      %v494 = vpack.c.b16 %v288, %v287
      %v495 = vpack.c.b16 %v290, %v289
      %v496 = vpack.c.b16 %v292, %v291
      %v497 = vpack.c.b16 %v294, %v293
      %v498 = vpack.c.b16 %v296, %v295
      %v499 = vpack.c.b16 %v298, %v297
      %v500 = vpack.c.b16 %v300, %v299
      %v501 = vpack.c.b16 %v302, %v301
      %v502 = vpack.c.b16 %v303, %v303
      %v513 = vunpack.c.l.b16 %v204
      %v514 = vunpack.c.l.b16 %v205
      %v515 = vunpack.c.l.b16 %v206
      %v516 = vunpack.c.l.b16 %v207
      %v517 = vunpack.c.l.b16 %v208
      %v518 = vunpack.c.l.b16 %v209
      %v519 = vunpack.c.l.b16 %v210
      %v520 = vunpack.c.l.b16 %v211
      %v521 = vunpack.c.l.b16 %v212
      %v522 = vunpack.c.l.b16 %v213
      %v523 = vpack.c.b16 %v514, %v513
      %v524 = vpack.c.b16 %v516, %v515
      %v525 = vpack.c.b16 %v518, %v517
      %v526 = vpack.c.b16 %v520, %v519
      %v527 = vpack.c.b16 %v522, %v521
      %v534 = vsel %vm375, %v490, 0
      %v537 = vsel %vm375, %v491, 0
      %v540 = vsel %vm375, %v492, 0
      %v543 = vsel %vm375, %v493, 0
      %v546 = vsel %vm375, %v494, 0
      %v549 = vsel %vm375, %v495, 0
      %v552 = vsel %vm375, %v496, 0
      %v555 = vsel %vm375, %v497, 0
      %v558 = vsel %vm375, %v498, 0
      %v561 = vsel %vm375, %v499, 0
      %v564 = vsel %vm375, %v500, 0
      %v567 = vsel %vm375, %v501, 0
      %v570 = vsel %vm375, %v502, 0
      %572 = vmatpush.bf16.msra.mxu0 0
      %573 = vmatpush.bf16.msra.mxu0 0
      %574 = vmatpush.bf16.msra.mxu0 0
      %575 = vmatpush.bf16.msra.mxu0 %v527
      %576 = vmatpush.bf16.msra.mxu0 %v526
      %577 = vmatpush.bf16.msra.mxu0 %v525
      %578 = vmatpush.bf16.msra.mxu0 %v524
      %579 = vmatpush.bf16.msra.mxu0 %v523
      %580 = vmatmul.bf16.gmra.mxu0 %v534
      %v581 = vpop.f32.mrf.mxu0
      %v582 = vadd.f32 %v425, %v581
      %v583 = vpop.f32.mrf.mxu0
      %v584 = vadd.f32 %v427, %v583
      %585 = vmatmul.bf16.gmra.mxu0 %v537
      %v586 = vpop.f32.mrf.mxu0
      %v587 = vadd.f32 %v430, %v586
      %v588 = vpop.f32.mrf.mxu0
      %v589 = vadd.f32 %v432, %v588
      %590 = vmatmul.bf16.gmra.mxu0 %v540
      %v591 = vpop.f32.mrf.mxu0
      %v592 = vadd.f32 %v435, %v591
      %v593 = vpop.f32.mrf.mxu0
      %v594 = vadd.f32 %v437, %v593
      %595 = vmatmul.bf16.gmra.mxu0 %v543
      %v596 = vpop.f32.mrf.mxu0
      %v597 = vadd.f32 %v440, %v596
      %v598 = vpop.f32.mrf.mxu0
      %v599 = vadd.f32 %v442, %v598
      %600 = vmatmul.bf16.gmra.mxu0 %v546
      %v601 = vpop.f32.mrf.mxu0
      %v602 = vadd.f32 %v445, %v601
      %v603 = vpop.f32.mrf.mxu0
      %v604 = vadd.f32 %v447, %v603
      %605 = vmatmul.bf16.gmra.mxu0 %v549
      %v606 = vpop.f32.mrf.mxu0
      %v607 = vadd.f32 %v450, %v606
      %v608 = vpop.f32.mrf.mxu0
      %v609 = vadd.f32 %v452, %v608
      %610 = vmatmul.bf16.gmra.mxu0 %v552
      %v611 = vpop.f32.mrf.mxu0
      %v612 = vadd.f32 %v455, %v611
      %v613 = vpop.f32.mrf.mxu0
      %v614 = vadd.f32 %v457, %v613
      %615 = vmatmul.bf16.gmra.mxu0 %v555
      %v616 = vpop.f32.mrf.mxu0
      %v617 = vadd.f32 %v460, %v616
      %v618 = vpop.f32.mrf.mxu0
      %v619 = vadd.f32 %v462, %v618
      %620 = vmatmul.bf16.gmra.mxu0 %v558
      %v621 = vpop.f32.mrf.mxu0
      %v622 = vadd.f32 %v465, %v621
      %v623 = vpop.f32.mrf.mxu0
      %v624 = vadd.f32 %v467, %v623
      %625 = vmatmul.bf16.gmra.mxu0 %v561
      %v626 = vpop.f32.mrf.mxu0
      %v627 = vadd.f32 %v470, %v626
      %v628 = vpop.f32.mrf.mxu0
      %v629 = vadd.f32 %v472, %v628
      %630 = vmatmul.bf16.gmra.mxu0 %v564
      %v631 = vpop.f32.mrf.mxu0
      %v632 = vadd.f32 %v475, %v631
      %v633 = vpop.f32.mrf.mxu0
      %v634 = vadd.f32 %v477, %v633
      %635 = vmatmul.bf16.gmra.mxu0 %v567
      %v636 = vpop.f32.mrf.mxu0
      %v637 = vadd.f32 %v480, %v636
      %v638 = vpop.f32.mrf.mxu0
      %v639 = vadd.f32 %v482, %v638
      %640 = vmatmul.bf16.gmra.mxu0 %v570
      %v641 = vpop.f32.mrf.mxu0
      %v642 = vadd.f32 %v485, %v641
      %v643 = vpop.f32.mrf.mxu0
      %644 = vdwg.mxu0
      %v646 = vunpack.c.l.b16 %v199
      %v647 = vpack.c.b16 %v646, %v646
      %vm648 = vcmask 1045504
      %v649 = vrot.slane %v307, 2
      %v650 = vrot.slane %v308, 2
      %v651 = vsel %vm648, %v649, %v650
      %v652 = vrot.slane %v309, 2
      %v653 = vsel %vm648, %v650, %v652
      %v654 = vrot.slane %v310, 2
      %v655 = vsel %vm648, %v652, %v654
      %v656 = vrot.slane %v311, 2
      %v657 = vsel %vm648, %v654, %v656
      %v658 = vrot.slane %v312, 2
      %v659 = vsel %vm648, %v656, %v658
      %v660 = vrot.slane %v313, 2
      %v661 = vsel %vm648, %v658, %v660
      %v662 = vrot.slane %v314, 2
      %v663 = vsel %vm648, %v660, %v662
      %v664 = vrot.slane %v315, 2
      %v665 = vsel %vm648, %v662, %v664
      %v666 = vrot.slane %v316, 2
      %v667 = vsel %vm648, %v664, %v666
      %v668 = vrot.slane %v317, 2
      %v669 = vsel %vm648, %v666, %v668
      %v670 = vrot.slane %v318, 2
      %v671 = vsel %vm648, %v668, %v670
      %v672 = vrot.slane %v647, 2
      %v673 = vsel %vm648, %v670, %v672
      %v684 = vunpack.c.l.b16 %v224
      %v685 = vunpack.c.l.b16 %v225
      %v686 = vunpack.c.l.b16 %v226
      %v687 = vunpack.c.l.b16 %v227
      %v688 = vunpack.c.l.b16 %v228
      %v689 = vunpack.c.l.b16 %v229
      %v690 = vunpack.c.l.b16 %v230
      %v691 = vunpack.c.l.b16 %v231
      %v692 = vunpack.c.l.b16 %v232
      %v693 = vunpack.c.l.b16 %v233
      %v694 = vpack.c.b16 %v685, %v684
      %v695 = vpack.c.b16 %v687, %v686
      %v696 = vpack.c.b16 %v689, %v688
      %v697 = vpack.c.b16 %v691, %v690
      %v698 = vpack.c.b16 %v693, %v692
      %v705 = vsel %vm375, %v651, 0
      %v708 = vsel %vm375, %v653, 0
      %v711 = vsel %vm375, %v655, 0
      %v714 = vsel %vm375, %v657, 0
      %v717 = vsel %vm375, %v659, 0
      %v720 = vsel %vm375, %v661, 0
      %v723 = vsel %vm375, %v663, 0
      %v726 = vsel %vm375, %v665, 0
      %v729 = vsel %vm375, %v667, 0
      %v732 = vsel %vm375, %v669, 0
      %v735 = vsel %vm375, %v671, 0
      %v738 = vsel %vm375, %v673, 0
      %v741 = vsel %vm375, %v672, 0
      %743 = vmatpush.bf16.msra.mxu0 0
      %744 = vmatpush.bf16.msra.mxu0 0
      %745 = vmatpush.bf16.msra.mxu0 0
      %746 = vmatpush.bf16.msra.mxu0 %v698
      %747 = vmatpush.bf16.msra.mxu0 %v697
      %748 = vmatpush.bf16.msra.mxu0 %v696
      %749 = vmatpush.bf16.msra.mxu0 %v695
      %750 = vmatpush.bf16.msra.mxu0 %v694
      %751 = vmatmul.bf16.gmra.mxu0 %v705
      %v752 = vpop.f32.mrf.mxu0
      %v753 = vadd.f32 0.0, %v752
      %v754 = vpop.f32.mrf.mxu0
      %v755 = vadd.f32 0.0, %v754
      %756 = vmatmul.bf16.gmra.mxu0 %v708
      %v757 = vpop.f32.mrf.mxu0
      %v758 = vadd.f32 0.0, %v757
      %v759 = vpop.f32.mrf.mxu0
      %v760 = vadd.f32 0.0, %v759
      %761 = vmatmul.bf16.gmra.mxu0 %v711
      %v762 = vpop.f32.mrf.mxu0
      %v763 = vadd.f32 0.0, %v762
      %v764 = vpop.f32.mrf.mxu0
      %v765 = vadd.f32 0.0, %v764
      %766 = vmatmul.bf16.gmra.mxu0 %v714
      %v767 = vpop.f32.mrf.mxu0
      %v768 = vadd.f32 0.0, %v767
      %v769 = vpop.f32.mrf.mxu0
      %v770 = vadd.f32 0.0, %v769
      %771 = vmatmul.bf16.gmra.mxu0 %v717
      %v772 = vpop.f32.mrf.mxu0
      %v773 = vadd.f32 0.0, %v772
      %v774 = vpop.f32.mrf.mxu0
      %v775 = vadd.f32 0.0, %v774
      %776 = vmatmul.bf16.gmra.mxu0 %v720
      %v777 = vpop.f32.mrf.mxu0
      %v778 = vadd.f32 0.0, %v777
      %v779 = vpop.f32.mrf.mxu0
      %v780 = vadd.f32 0.0, %v779
      %781 = vmatmul.bf16.gmra.mxu0 %v723
      %v782 = vpop.f32.mrf.mxu0
      %v783 = vadd.f32 0.0, %v782
      %v784 = vpop.f32.mrf.mxu0
      %v785 = vadd.f32 0.0, %v784
      %786 = vmatmul.bf16.gmra.mxu0 %v726
      %v787 = vpop.f32.mrf.mxu0
      %v788 = vadd.f32 0.0, %v787
      %v789 = vpop.f32.mrf.mxu0
      %v790 = vadd.f32 0.0, %v789
      %791 = vmatmul.bf16.gmra.mxu0 %v729
      %v792 = vpop.f32.mrf.mxu0
      %v793 = vadd.f32 0.0, %v792
      %v794 = vpop.f32.mrf.mxu0
      %v795 = vadd.f32 0.0, %v794
      %796 = vmatmul.bf16.gmra.mxu0 %v732
      %v797 = vpop.f32.mrf.mxu0
      %v798 = vadd.f32 0.0, %v797
      %v799 = vpop.f32.mrf.mxu0
      %v800 = vadd.f32 0.0, %v799
      %801 = vmatmul.bf16.gmra.mxu0 %v735
      %v802 = vpop.f32.mrf.mxu0
      %v803 = vadd.f32 0.0, %v802
      %v804 = vpop.f32.mrf.mxu0
      %v805 = vadd.f32 0.0, %v804
      %806 = vmatmul.bf16.gmra.mxu0 %v738
      %v807 = vpop.f32.mrf.mxu0
      %v808 = vadd.f32 0.0, %v807
      %v809 = vpop.f32.mrf.mxu0
      %v810 = vadd.f32 0.0, %v809
      %811 = vmatmul.bf16.gmra.mxu0 %v741
      %v812 = vpop.f32.mrf.mxu0
      %v813 = vadd.f32 0.0, %v812
      %v814 = vpop.f32.mrf.mxu0
      %815 = vdwg.mxu0
      %v816 = vadd.f32 %v582, %v753
      %v817 = vadd.f32 %v584, %v755
      %v818 = vadd.f32 %v587, %v758
      %v819 = vadd.f32 %v589, %v760
      %v820 = vadd.f32 %v592, %v763
      %v821 = vadd.f32 %v594, %v765
      %v822 = vadd.f32 %v597, %v768
      %v823 = vadd.f32 %v599, %v770
      %v824 = vadd.f32 %v602, %v773
      %v825 = vadd.f32 %v604, %v775
      %v826 = vadd.f32 %v607, %v778
      %v827 = vadd.f32 %v609, %v780
      %v828 = vadd.f32 %v612, %v783
      %v829 = vadd.f32 %v614, %v785
      %v830 = vadd.f32 %v617, %v788
      %v831 = vadd.f32 %v619, %v790
      %v832 = vadd.f32 %v622, %v793
      %v833 = vadd.f32 %v624, %v795
      %v834 = vadd.f32 %v627, %v798
      %v835 = vadd.f32 %v629, %v800
      %v836 = vadd.f32 %v632, %v803
      %v837 = vadd.f32 %v634, %v805
      %v838 = vadd.f32 %v637, %v808
      %v839 = vadd.f32 %v639, %v810
      %v840 = vadd.f32 %v642, %v813
      %v843 = vunpack.c.l.b16 %v200
      %v844 = vunpack.c.l.b16 %v201
      %v845 = vpack.c.b16 %v843, %v646
      %v846 = vpack.c.b16 %v844, %v844
      %vm847 = vcmask 1046528
      %v848 = vrot.slane %v308, 1
      %v849 = vrot.slane %v309, 1
      %v850 = vsel %vm847, %v848, %v849
      %v851 = vrot.slane %v310, 1
      %v852 = vsel %vm847, %v849, %v851
      %v853 = vrot.slane %v311, 1
      %v854 = vsel %vm847, %v851, %v853
      %v855 = vrot.slane %v312, 1
      %v856 = vsel %vm847, %v853, %v855
      %v857 = vrot.slane %v313, 1
      %v858 = vsel %vm847, %v855, %v857
      %v859 = vrot.slane %v314, 1
      %v860 = vsel %vm847, %v857, %v859
      %v861 = vrot.slane %v315, 1
      %v862 = vsel %vm847, %v859, %v861
      %v863 = vrot.slane %v316, 1
      %v864 = vsel %vm847, %v861, %v863
      %v865 = vrot.slane %v317, 1
      %v866 = vsel %vm847, %v863, %v865
      %v867 = vrot.slane %v318, 1
      %v868 = vsel %vm847, %v865, %v867
      %v869 = vrot.slane %v845, 1
      %v870 = vsel %vm847, %v867, %v869
      %v871 = vrot.slane %v846, 1
      %v872 = vsel %vm847, %v869, %v871
      %v883 = vunpack.c.l.b16 %v234
      %v884 = vunpack.c.l.b16 %v235
      %v885 = vunpack.c.l.b16 %v236
      %v886 = vunpack.c.l.b16 %v237
      %v887 = vunpack.c.l.b16 %v238
      %v888 = vunpack.c.l.b16 %v239
      %v889 = vunpack.c.l.b16 %v240
      %v890 = vunpack.c.l.b16 %v241
      %v891 = vunpack.c.l.b16 %v242
      %v892 = vunpack.c.l.b16 %v243
      %v893 = vpack.c.b16 %v884, %v883
      %v894 = vpack.c.b16 %v886, %v885
      %v895 = vpack.c.b16 %v888, %v887
      %v896 = vpack.c.b16 %v890, %v889
      %v897 = vpack.c.b16 %v892, %v891
      %v904 = vsel %vm375, %v850, 0
      %v907 = vsel %vm375, %v852, 0
      %v910 = vsel %vm375, %v854, 0
      %v913 = vsel %vm375, %v856, 0
      %v916 = vsel %vm375, %v858, 0
      %v919 = vsel %vm375, %v860, 0
      %v922 = vsel %vm375, %v862, 0
      %v925 = vsel %vm375, %v864, 0
      %v928 = vsel %vm375, %v866, 0
      %v931 = vsel %vm375, %v868, 0
      %v934 = vsel %vm375, %v870, 0
      %v937 = vsel %vm375, %v872, 0
      %v940 = vsel %vm375, %v871, 0
      %942 = vmatpush.bf16.msra.mxu0 0
      %943 = vmatpush.bf16.msra.mxu0 0
      %944 = vmatpush.bf16.msra.mxu0 0
      %945 = vmatpush.bf16.msra.mxu0 %v897
      %946 = vmatpush.bf16.msra.mxu0 %v896
      %947 = vmatpush.bf16.msra.mxu0 %v895
      %948 = vmatpush.bf16.msra.mxu0 %v894
      %949 = vmatpush.bf16.msra.mxu0 %v893
      %950 = vmatmul.bf16.gmra.mxu0 %v904
      %v951 = vpop.f32.mrf.mxu0
      %v952 = vadd.f32 0.0, %v951
      %v953 = vpop.f32.mrf.mxu0
      %v954 = vadd.f32 0.0, %v953
      %955 = vmatmul.bf16.gmra.mxu0 %v907
      %v956 = vpop.f32.mrf.mxu0
      %v957 = vadd.f32 0.0, %v956
      %v958 = vpop.f32.mrf.mxu0
      %v959 = vadd.f32 0.0, %v958
      %960 = vmatmul.bf16.gmra.mxu0 %v910
      %v961 = vpop.f32.mrf.mxu0
      %v962 = vadd.f32 0.0, %v961
      %v963 = vpop.f32.mrf.mxu0
      %v964 = vadd.f32 0.0, %v963
      %965 = vmatmul.bf16.gmra.mxu0 %v913
      %v966 = vpop.f32.mrf.mxu0
      %v967 = vadd.f32 0.0, %v966
      %v968 = vpop.f32.mrf.mxu0
      %v969 = vadd.f32 0.0, %v968
      %970 = vmatmul.bf16.gmra.mxu0 %v916
      %v971 = vpop.f32.mrf.mxu0
      %v972 = vadd.f32 0.0, %v971
      %v973 = vpop.f32.mrf.mxu0
      %v974 = vadd.f32 0.0, %v973
      %975 = vmatmul.bf16.gmra.mxu0 %v919
      %v976 = vpop.f32.mrf.mxu0
      %v977 = vadd.f32 0.0, %v976
      %v978 = vpop.f32.mrf.mxu0
      %v979 = vadd.f32 0.0, %v978
      %980 = vmatmul.bf16.gmra.mxu0 %v922
      %v981 = vpop.f32.mrf.mxu0
      %v982 = vadd.f32 0.0, %v981
      %v983 = vpop.f32.mrf.mxu0
      %v984 = vadd.f32 0.0, %v983
      %985 = vmatmul.bf16.gmra.mxu0 %v925
      %v986 = vpop.f32.mrf.mxu0
      %v987 = vadd.f32 0.0, %v986
      %v988 = vpop.f32.mrf.mxu0
      %v989 = vadd.f32 0.0, %v988
      %990 = vmatmul.bf16.gmra.mxu0 %v928
      %v991 = vpop.f32.mrf.mxu0
      %v992 = vadd.f32 0.0, %v991
      %v993 = vpop.f32.mrf.mxu0
      %v994 = vadd.f32 0.0, %v993
      %995 = vmatmul.bf16.gmra.mxu0 %v931
      %v996 = vpop.f32.mrf.mxu0
      %v997 = vadd.f32 0.0, %v996
      %v998 = vpop.f32.mrf.mxu0
      %v999 = vadd.f32 0.0, %v998
      %1000 = vmatmul.bf16.gmra.mxu0 %v934
      %v1001 = vpop.f32.mrf.mxu0
      %v1002 = vadd.f32 0.0, %v1001
      %v1003 = vpop.f32.mrf.mxu0
      %v1004 = vadd.f32 0.0, %v1003
      %1005 = vmatmul.bf16.gmra.mxu0 %v937
      %v1006 = vpop.f32.mrf.mxu0
      %v1007 = vadd.f32 0.0, %v1006
      %v1008 = vpop.f32.mrf.mxu0
      %v1009 = vadd.f32 0.0, %v1008
      %1010 = vmatmul.bf16.gmra.mxu0 %v940
      %v1011 = vpop.f32.mrf.mxu0
      %v1012 = vadd.f32 0.0, %v1011
      %v1013 = vpop.f32.mrf.mxu0
      %1014 = vdwg.mxu0
      %v1015 = vadd.f32 %v816, %v952
      %v1016 = vadd.f32 %v817, %v954
      %v1017 = vadd.f32 %v818, %v957
      %v1018 = vadd.f32 %v819, %v959
      %v1019 = vadd.f32 %v820, %v962
      %v1020 = vadd.f32 %v821, %v964
      %v1021 = vadd.f32 %v822, %v967
      %v1022 = vadd.f32 %v823, %v969
      %v1023 = vadd.f32 %v824, %v972
      %v1024 = vadd.f32 %v825, %v974
      %v1025 = vadd.f32 %v826, %v977
      %v1026 = vadd.f32 %v827, %v979
      %v1027 = vadd.f32 %v828, %v982
      %v1028 = vadd.f32 %v829, %v984
      %v1029 = vadd.f32 %v830, %v987
      %v1030 = vadd.f32 %v831, %v989
      %v1031 = vadd.f32 %v832, %v992
      %v1032 = vadd.f32 %v833, %v994
      %v1033 = vadd.f32 %v834, %v997
      %v1034 = vadd.f32 %v835, %v999
      %v1035 = vadd.f32 %v836, %v1002
      %v1036 = vadd.f32 %v837, %v1004
      %v1037 = vadd.f32 %v838, %v1007
      %v1038 = vadd.f32 %v839, %v1009
      %v1039 = vadd.f32 %v840, %v1012
      %v1042 = vunpack.c.l.b16 %v202
      %v1043 = vunpack.c.l.b16 %v203
      %v1044 = vpack.c.b16 %v1042, %v844
      %v1045 = vpack.c.b16 %v1043, %v1043
      %v1056 = vunpack.c.l.b16 %v244
      %v1057 = vunpack.c.l.b16 %v245
      %v1058 = vunpack.c.l.b16 %v246
      %v1059 = vunpack.c.l.b16 %v247
      %v1060 = vunpack.c.l.b16 %v248
      %v1061 = vunpack.c.l.b16 %v249
      %v1062 = vunpack.c.l.b16 %v250
      %v1063 = vunpack.c.l.b16 %v251
      %v1064 = vunpack.c.l.b16 %v252
      %v1065 = vunpack.c.l.b16 %v253
      %v1066 = vpack.c.b16 %v1057, %v1056
      %v1067 = vpack.c.b16 %v1059, %v1058
      %v1068 = vpack.c.b16 %v1061, %v1060
      %v1069 = vpack.c.b16 %v1063, %v1062
      %v1070 = vpack.c.b16 %v1065, %v1064
      %v1077 = vsel %vm375, %v309, 0
      %v1080 = vsel %vm375, %v310, 0
      %v1083 = vsel %vm375, %v311, 0
      %v1086 = vsel %vm375, %v312, 0
      %v1089 = vsel %vm375, %v313, 0
      %v1092 = vsel %vm375, %v314, 0
      %v1095 = vsel %vm375, %v315, 0
      %v1098 = vsel %vm375, %v316, 0
      %v1101 = vsel %vm375, %v317, 0
      %v1104 = vsel %vm375, %v318, 0
      %v1107 = vsel %vm375, %v845, 0
      %v1110 = vsel %vm375, %v1044, 0
      %v1113 = vsel %vm375, %v1045, 0
      %1115 = vmatpush.bf16.msra.mxu0 0
      %1116 = vmatpush.bf16.msra.mxu0 0
      %1117 = vmatpush.bf16.msra.mxu0 0
      %1118 = vmatpush.bf16.msra.mxu0 %v1070
      %1119 = vmatpush.bf16.msra.mxu0 %v1069
      %1120 = vmatpush.bf16.msra.mxu0 %v1068
      %1121 = vmatpush.bf16.msra.mxu0 %v1067
      %1122 = vmatpush.bf16.msra.mxu0 %v1066
      %1123 = vmatmul.bf16.gmra.mxu0 %v1077
      %v1124 = vpop.f32.mrf.mxu0
      %v1125 = vadd.f32 0.0, %v1124
      %v1126 = vpop.f32.mrf.mxu0
      %v1127 = vadd.f32 0.0, %v1126
      %1128 = vmatmul.bf16.gmra.mxu0 %v1080
      %v1129 = vpop.f32.mrf.mxu0
      %v1130 = vadd.f32 0.0, %v1129
      %v1131 = vpop.f32.mrf.mxu0
      %v1132 = vadd.f32 0.0, %v1131
      %1133 = vmatmul.bf16.gmra.mxu0 %v1083
      %v1134 = vpop.f32.mrf.mxu0
      %v1135 = vadd.f32 0.0, %v1134
      %v1136 = vpop.f32.mrf.mxu0
      %v1137 = vadd.f32 0.0, %v1136
      %1138 = vmatmul.bf16.gmra.mxu0 %v1086
      %v1139 = vpop.f32.mrf.mxu0
      %v1140 = vadd.f32 0.0, %v1139
      %v1141 = vpop.f32.mrf.mxu0
      %v1142 = vadd.f32 0.0, %v1141
      %1143 = vmatmul.bf16.gmra.mxu0 %v1089
      %v1144 = vpop.f32.mrf.mxu0
      %v1145 = vadd.f32 0.0, %v1144
      %v1146 = vpop.f32.mrf.mxu0
      %v1147 = vadd.f32 0.0, %v1146
      %1148 = vmatmul.bf16.gmra.mxu0 %v1092
      %v1149 = vpop.f32.mrf.mxu0
      %v1150 = vadd.f32 0.0, %v1149
      %v1151 = vpop.f32.mrf.mxu0
      %v1152 = vadd.f32 0.0, %v1151
      %1153 = vmatmul.bf16.gmra.mxu0 %v1095
      %v1154 = vpop.f32.mrf.mxu0
      %v1155 = vadd.f32 0.0, %v1154
      %v1156 = vpop.f32.mrf.mxu0
      %v1157 = vadd.f32 0.0, %v1156
      %1158 = vmatmul.bf16.gmra.mxu0 %v1098
      %v1159 = vpop.f32.mrf.mxu0
      %v1160 = vadd.f32 0.0, %v1159
      %v1161 = vpop.f32.mrf.mxu0
      %v1162 = vadd.f32 0.0, %v1161
      %1163 = vmatmul.bf16.gmra.mxu0 %v1101
      %v1164 = vpop.f32.mrf.mxu0
      %v1165 = vadd.f32 0.0, %v1164
      %v1166 = vpop.f32.mrf.mxu0
      %v1167 = vadd.f32 0.0, %v1166
      %1168 = vmatmul.bf16.gmra.mxu0 %v1104
      %v1169 = vpop.f32.mrf.mxu0
      %v1170 = vadd.f32 0.0, %v1169
      %v1171 = vpop.f32.mrf.mxu0
      %v1172 = vadd.f32 0.0, %v1171
      %1173 = vmatmul.bf16.gmra.mxu0 %v1107
      %v1174 = vpop.f32.mrf.mxu0
      %v1175 = vadd.f32 0.0, %v1174
      %v1176 = vpop.f32.mrf.mxu0
      %v1177 = vadd.f32 0.0, %v1176
      %1178 = vmatmul.bf16.gmra.mxu0 %v1110
      %v1179 = vpop.f32.mrf.mxu0
      %v1180 = vadd.f32 0.0, %v1179
      %v1181 = vpop.f32.mrf.mxu0
      %v1182 = vadd.f32 0.0, %v1181
      %1183 = vmatmul.bf16.gmra.mxu0 %v1113
      %v1184 = vpop.f32.mrf.mxu0
      %v1185 = vadd.f32 0.0, %v1184
      %v1186 = vpop.f32.mrf.mxu0
      %1187 = vdwg.mxu0
      %v1188 = vadd.f32 %v1015, %v1125
      %v1189 = vadd.f32 %v1016, %v1127
      %v1190 = vadd.f32 %v1017, %v1130
      %v1191 = vadd.f32 %v1018, %v1132
      %v1192 = vadd.f32 %v1019, %v1135
      %v1193 = vadd.f32 %v1020, %v1137
      %v1194 = vadd.f32 %v1021, %v1140
      %v1195 = vadd.f32 %v1022, %v1142
      %v1196 = vadd.f32 %v1023, %v1145
      %v1197 = vadd.f32 %v1024, %v1147
      %v1198 = vadd.f32 %v1025, %v1150
      %v1199 = vadd.f32 %v1026, %v1152
      %v1200 = vadd.f32 %v1027, %v1155
      %v1201 = vadd.f32 %v1028, %v1157
      %v1202 = vadd.f32 %v1029, %v1160
      %v1203 = vadd.f32 %v1030, %v1162
      %v1204 = vadd.f32 %v1031, %v1165
      %v1205 = vadd.f32 %v1032, %v1167
      %v1206 = vadd.f32 %v1033, %v1170
      %v1207 = vadd.f32 %v1034, %v1172
      %v1208 = vadd.f32 %v1035, %v1175
      %v1209 = vadd.f32 %v1036, %v1177
      %v1210 = vadd.f32 %v1037, %v1180
      %v1211 = vadd.f32 %v1038, %v1182
      %v1212 = vadd.f32 %v1039, %v1185
      %v1213 = vld [vmem:[%s2] sm:$0x1]
      %v1215 = vperm.slane %v1213, 0
      %v1217 = vadd.f32 %v1188, %v1215
      %v1218 = vadd.f32 %v1189, %v1215
      %v1219 = vadd.f32 %v1190, %v1215
      %v1220 = vadd.f32 %v1191, %v1215
      %v1221 = vadd.f32 %v1192, %v1215
      %v1222 = vadd.f32 %v1193, %v1215
      %v1223 = vadd.f32 %v1194, %v1215
      %v1224 = vadd.f32 %v1195, %v1215
      %v1225 = vadd.f32 %v1196, %v1215
      %v1226 = vadd.f32 %v1197, %v1215
      %v1227 = vadd.f32 %v1198, %v1215
      %v1228 = vadd.f32 %v1199, %v1215
      %v1229 = vadd.f32 %v1200, %v1215
      %v1230 = vadd.f32 %v1201, %v1215
      %v1231 = vadd.f32 %v1202, %v1215
      %v1232 = vadd.f32 %v1203, %v1215
      %v1233 = vadd.f32 %v1204, %v1215
      %v1234 = vadd.f32 %v1205, %v1215
      %v1235 = vadd.f32 %v1206, %v1215
      %v1236 = vadd.f32 %v1207, %v1215
      %v1237 = vadd.f32 %v1208, %v1215
      %v1238 = vadd.f32 %v1209, %v1215
      %v1239 = vadd.f32 %v1210, %v1215
      %v1240 = vadd.f32 %v1211, %v1215
      %v1241 = vadd.f32 %v1212, %v1215
      %v1242 = vmax.f32 %v1217, 0.0
      %v1243 = vmax.f32 %v1218, 0.0
      %v1244 = vmax.f32 %v1219, 0.0
      %v1245 = vmax.f32 %v1220, 0.0
      %v1246 = vmax.f32 %v1221, 0.0
      %v1247 = vmax.f32 %v1222, 0.0
      %v1248 = vmax.f32 %v1223, 0.0
      %v1249 = vmax.f32 %v1224, 0.0
      %v1250 = vmax.f32 %v1225, 0.0
      %v1251 = vmax.f32 %v1226, 0.0
      %v1252 = vmax.f32 %v1227, 0.0
      %v1253 = vmax.f32 %v1228, 0.0
      %v1254 = vmax.f32 %v1229, 0.0
      %v1255 = vmax.f32 %v1230, 0.0
      %v1256 = vmax.f32 %v1231, 0.0
      %v1257 = vmax.f32 %v1232, 0.0
      %v1258 = vmax.f32 %v1233, 0.0
      %v1259 = vmax.f32 %v1234, 0.0
      %v1260 = vmax.f32 %v1235, 0.0
      %v1261 = vmax.f32 %v1236, 0.0
      %v1262 = vmax.f32 %v1237, 0.0
      %v1263 = vmax.f32 %v1238, 0.0
      %v1264 = vmax.f32 %v1239, 0.0
      %v1265 = vmax.f32 %v1240, 0.0
      %v1266 = vmax.f32 %v1241, 0.0
      %vm1270 = vcmask 1041408
      %v1271 = vrot.slane %v1243, 6
      %v1272 = vrot.slane %v1244, 6
      %v1273 = vsel %vm1270, %v1271, %v1272
      %v1274 = vrot.slane %v1245, 6
      %v1275 = vsel %vm1270, %v1272, %v1274
      %v1278 = vmax.f32 %v1242, %v1273
      %v1279 = vmax.f32 %v1243, %v1275
      %vm1282 = vcmask 1040384
      %v1283 = vrot.slane %v1278, 7
      %v1284 = vrot.slane %v1279, 7
      %v1285 = vsel %vm1282, %v1283, %v1284
      %v1287 = vmax.f32 %v1278, %v1285
      %v1288 = vpack.c.bf16 %v1287, %v1287
      %vm1289 = vcmask 257024
      %vm1290 = vsmask.f32 3328
      %vm1291 = vmand %vm1289, %vm1290
      %v1292 = vld [vmem:[%s170] sm:$0xf]
      %v1293 = vsel %vm1291, %v1288, %v1292
      %1294 = vst [vmem:[%s170] sm:$0xf] %v1293
      %v1297 = vrot.slane %v1247, 6
      %v1298 = vrot.slane %v1248, 6
      %v1299 = vsel %vm1270, %v1297, %v1298
      %v1303 = vmax.f32 %v1245, %v1297
      %v1304 = vmax.f32 %v1246, %v1299
      %v1305 = vmax.f32 %v1247, %v1298
      %v1308 = vrot.slane %v1304, 7
      %v1309 = vrot.slane %v1305, 7
      %v1310 = vsel %vm1282, %v1308, %v1309
      %v1313 = vmax.f32 %v1303, %v1308
      %v1314 = vmax.f32 %v1304, %v1310
      %v1315 = vpack.c.bf16 %v1313, %v1313
      %v1316 = vpack.c.bf16 %v1314, %v1314
      %vm1317 = vsmask.f32 1280
      %vm1318 = vsmask.f32 5392
      %vm1319 = vmor %vm1317, %vm1318
      %v1321 = vshll.u32 %v1315, 16
      %v1323 = vrot.slane %v1321, 7
      %v1324 = vshrl.u32 %v1315, 16
      %v1326 = vrot.slane %v1324, 6
      %v1327 = vor.u32 %v1326, %v1323
      %v1328 = vrot.slane %v1327, 4
      %v1330 = vshrl.u32 %v1316, 16
      %v1332 = vrot.slane %v1330, 6
      %v1333 = vshll.u32 %v1316, 16
      %v1335 = vrot.slane %v1333, 7
      %v1336 = vor.u32 %v1332, %v1335
      %v1337 = vsel %vm1319, %v1328, %v1336
      %vm1340 = vcmask 257027
      %vm1341 = vsmask.f32 7950
      %vm1342 = vmand %vm1340, %vm1341
      %v1343 = vld [vmem:[%s170] sm:$0x8]
      %v1344 = vsel %vm1342, %v1323, %v1343
      %1345 = vst [vmem:[%s170] sm:$0x8] %v1344
      %vm1346 = vcmask 256000
      %1347 = vst.msk [vmem:[%s170 + $0x4] sm:$0x7] %vm1346, %v1337
      %v1351 = vrot.slane %v1250, 6
      %v1352 = vrot.slane %v1251, 6
      %v1353 = vsel %vm1270, %v1351, %v1352
      %v1354 = vrot.slane %v1252, 6
      %v1355 = vsel %vm1270, %v1352, %v1354
      %v1358 = vmax.f32 %v1249, %v1353
      %v1359 = vmax.f32 %v1250, %v1355
      %v1362 = vrot.slane %v1358, 7
      %v1363 = vrot.slane %v1359, 7
      %v1364 = vsel %vm1282, %v1362, %v1363
      %v1366 = vmax.f32 %v1358, %v1364
      %v1367 = vpack.c.bf16 %v1366, %v1366
      %v1369 = vrot.slane %v1367, 5
      %v1370 = vrot.slane %v1369, 4
      %vm1373 = vcmask 257027
      %1374 = vst.msk [vmem:[%s170 + $0x4] sm:$0x8] %vm1373, %v1369
      %vm1375 = vcmask 256000
      %vm1376 = vsmask.f32 2304
      %vm1377 = vmand %vm1375, %vm1376
      %v1378 = vld [vmem:[%s170 + $0x8] sm:$0x7]
      %v1379 = vsel %vm1377, %v1370, %v1378
      %1380 = vst [vmem:[%s170 + $0x8] sm:$0x7] %v1379
      %v1383 = vrot.slane %v1254, 6
      %v1384 = vrot.slane %v1255, 6
      %v1385 = vsel %vm1270, %v1383, %v1384
      %v1389 = vmax.f32 %v1252, %v1383
      %v1390 = vmax.f32 %v1253, %v1385
      %v1391 = vmax.f32 %v1254, %v1384
      %v1394 = vrot.slane %v1390, 7
      %v1395 = vrot.slane %v1391, 7
      %v1396 = vsel %vm1282, %v1394, %v1395
      %v1399 = vmax.f32 %v1389, %v1394
      %v1400 = vmax.f32 %v1390, %v1396
      %v1401 = vpack.c.bf16 %v1399, %v1399
      %v1402 = vpack.c.bf16 %v1400, %v1400
      %vm1403 = vsmask.f32 256
      %vm1404 = vsmask.f32 4368
      %vm1405 = vmor %vm1403, %vm1404
      %v1407 = vshrl.u32 %v1401, 16
      %v1409 = vrot.slane %v1407, 7
      %v1410 = vshll.u32 %v1401, 16
      %v1412 = vor.u32 %v1409, %v1410
      %v1413 = vrot.slane %v1409, 4
      %v1415 = vshrl.u32 %v1402, 16
      %v1417 = vrot.slane %v1415, 7
      %v1418 = vshll.u32 %v1402, 16
      %v1420 = vor.u32 %v1417, %v1418
      %v1421 = vsel %vm1405, %v1413, %v1420
      %vm1424 = vcmask 257026
      %vm1425 = vsmask.f32 7946
      %vm1426 = vmand %vm1424, %vm1425
      %v1427 = vld [vmem:[%s170 + $0x8] sm:$0xc]
      %v1428 = vsel %vm1426, %v1412, %v1427
      %1429 = vst [vmem:[%s170 + $0x8] sm:$0xc] %v1428
      %vm1430 = vcmask 254976
      %1431 = vst.msk [vmem:[%s170 + $0xc] sm:$0x3] %vm1430, %v1421
      %v1435 = vrot.slane %v1257, 6
      %v1436 = vrot.slane %v1258, 6
      %v1437 = vsel %vm1270, %v1435, %v1436
      %v1438 = vrot.slane %v1259, 6
      %v1439 = vsel %vm1270, %v1436, %v1438
      %v1442 = vmax.f32 %v1256, %v1437
      %v1443 = vmax.f32 %v1257, %v1439
      %v1446 = vrot.slane %v1442, 7
      %v1447 = vrot.slane %v1443, 7
      %v1448 = vsel %vm1282, %v1446, %v1447
      %v1450 = vmax.f32 %v1442, %v1448
      %v1451 = vpack.c.bf16 %v1450, %v1450
      %v1453 = vrot.slane %v1451, 6
      %v1454 = vrot.slane %v1453, 4
      %vm1457 = vcmask 257026
      %1458 = vst.msk [vmem:[%s170 + $0xc] sm:$0xc] %vm1457, %v1453
      %vm1459 = vcmask 254976
      %vm1460 = vmand %vm1459, %vm1317
      %v1461 = vld [vmem:[%s170 + $0x10] sm:$0x3]
      %v1462 = vsel %vm1460, %v1454, %v1461
      %1463 = vst [vmem:[%s170 + $0x10] sm:$0x3] %v1462
      %v1466 = vrot.slane %v1261, 6
      %v1467 = vrot.slane %v1262, 6
      %v1468 = vsel %vm1270, %v1466, %v1467
      %v1472 = vmax.f32 %v1259, %v1466
      %v1473 = vmax.f32 %v1260, %v1468
      %v1474 = vmax.f32 %v1261, %v1467
      %v1477 = vrot.slane %v1473, 7
      %v1478 = vrot.slane %v1474, 7
      %v1479 = vsel %vm1282, %v1477, %v1478
      %v1482 = vmax.f32 %v1472, %v1477
      %v1483 = vmax.f32 %v1473, %v1479
      %v1484 = vpack.c.bf16 %v1482, %v1482
      %v1485 = vpack.c.bf16 %v1483, %v1483
      %vm1486 = vsmask.f32 7440
      %vm1487 = vmor %vm1290, %vm1486
      %v1489 = vshrl.u32 %v1484, 16
      %v1491 = vrot.slane %v1489, 4
      %v1492 = vshll.u32 %v1484, 16
      %v1494 = vrot.slane %v1492, 5
      %v1495 = vor.u32 %v1491, %v1494
      %v1496 = vrot.slane %v1495, 4
      %v1498 = vshll.u32 %v1485, 16
      %v1500 = vrot.slane %v1498, 5
      %v1501 = vsel %vm1487, %v1496, %v1500
      %v1502 = vshrl.u32 %v1485, 16
      %v1504 = vrot.slane %v1502, 4
      %v1505 = vor.u32 %v1504, %v1500
      %v1506 = vrot.slane %v1505, 4
      %vm1509 = vcmask 257025
      %vm1510 = vsmask.f32 7942
      %vm1511 = vmand %vm1509, %vm1510
      %v1512 = vld [vmem:[%s170 + $0x10] sm:$0xe]
      %v1513 = vsel %vm1511, %v1501, %v1512
      %1514 = vst [vmem:[%s170 + $0x10] sm:$0xe] %v1513
      %vm1515 = vcmask 253952
      %1516 = vst.msk [vmem:[%s170 + $0x14] sm:$0x1] %vm1515, %v1506
      %v1520 = vrot.slane %v1264, 6
      %v1521 = vrot.slane %v1265, 6
      %v1522 = vsel %vm1270, %v1520, %v1521
      %v1523 = vrot.slane %v1266, 6
      %v1524 = vsel %vm1270, %v1521, %v1523
      %v1527 = vmax.f32 %v1263, %v1522
      %v1528 = vmax.f32 %v1264, %v1524
      %v1531 = vrot.slane %v1527, 7
      %v1532 = vrot.slane %v1528, 7
      %v1533 = vsel %vm1282, %v1531, %v1532
      %v1535 = vmax.f32 %v1527, %v1533
      %v1536 = vpack.c.bf16 %v1535, %v1535
      %v1538 = vrot.slane %v1536, 7
      %v1539 = vrot.slane %v1538, 4
      %vm1542 = vcmask 257025
      %1543 = vst.msk [vmem:[%s170 + $0x14] sm:$0xe] %vm1542, %v1538
      %vm1544 = vcmask 253952
      %vm1545 = vmand %vm1544, %vm1403
      %v1546 = vld [vmem:[%s170 + $0x18] sm:$0x1]
      %v1547 = vsel %vm1545, %v1539, %v1546
      %1548 = vst [vmem:[%s170 + $0x18] sm:$0x1] %v1547
      %p1549 = scmp.lt.s32.totalorder %s14, 1
      %s1550 = scalar_select %p1549, %s14, 1
      %s1551 = smul.addr %s1550, 7
      %s1552 = smul.addr %s1551, 4
      %s1553 = scalar_lea.vmem %s3, %s1552
      // Predicated region
      $region33: #{convnet_forward.4} parent=31 // pred_check
        %p1554 = pneg %p100
      $region34: #{convnet_forward.4} parent=31 // pred_check_branch
        %1556 = sbr.rel (%p1554) target = $region36
      $region35: #{convnet_forward.4} parent=31 // pred_region
        _
      $region36: #{convnet_forward.4} parent=31 // pred_fallthru
        _
    $region32: #{convnet_forward.4} parent=5 // pred_fallthru
      _
    %p1557 = scmp.le.s32.totalorder 2, %s9
    // Predicated region
    $region37: #{convnet_forward.4} parent=5 // pred_check
      %p1558 = pneg %p1557
    $region38: #{convnet_forward.4} parent=5 // pred_check_branch
      %1560 = sbr.rel (%p1558) target = $region40
    $region39: #{convnet_forward.4} parent=5 // pred_region
      %s1561 = ssub.s32 %s9, 2
      // Predicated region
      $region41: #{convnet_forward.4} parent=39 // pred_check
        %p1562 = pneg %p106
      $region42: #{convnet_forward.4} parent=39 // pred_check_branch
        %1564 = sbr.rel (%p1562) target = $region44
      $region43: #{convnet_forward.4} parent=39 // pred_region
        %p1565 = scmp.lt.s32.totalorder %s15, 1
        %s1566 = scalar_select %p1565, %s15, 1
        %s1567 = smul.addr %s1566, 7
        %s1568 = smul.addr %s1567, 4
        %s1569 = scalar_lea.vmem %s3, %s1568
      $region44: #{convnet_forward.4} parent=39 // pred_fallthru
        _
    $region40: #{convnet_forward.4} parent=5 // pred_fallthru
      _
  $region6: #{convnet_forward.4} parent=0 // loop_footer
    %s13 = sadd.s32 1, %s9
  $region7: #{convnet_forward.4} parent=0 // loop_footer_branch
    %8 = sbr.rel target = $region3
  $region8: #{convnet_forward.4} parent=0 // loop_exit
    _

// kernel: convnet_forward.5
$region0: #{convnet_forward.5}
  #allocation0 [shape = 'u32[]', space=smem, size = 0x4, offset = 0x4, fixed_abs, tag = 'smem constant byte address 0x4 - core index']
  #allocation1 [shape = 'u32[72,128]{1,0:T(1,128)}', space=vmem, size = 0x9000, scoped, tag = 'internal scratch']
  %s0 = inlined_call_operand.vmem [shape: bf16[16,1568], index: 0, kind: input, shape index: {}]
  %s1 = inlined_call_operand.vmem [shape: bf16[1568,256], index: 1, kind: input, shape index: {}]
  %s2 = inlined_call_operand.vmem [shape: f32[1,256], index: 2, kind: input, shape index: {}]
  %s3 = inlined_call_operand.vmem [shape: bf16[256,128], index: 3, kind: input, shape index: {}]
  %s4 = inlined_call_operand.vmem [shape: f32[1,128], index: 4, kind: input, shape index: {}]
  %s5 = inlined_call_operand.vmem [shape: f32[16,128], index: 5, kind: output, shape index: {}]
  %s6 = sld [smem:[#allocation0]]
  $region30: #{convnet_forward.5} parent=0
    _
  %s8 = ssub.s32 1, %s6
  %s9 = scalar_select 0, %s8, %s6
  // Predicated region
  $region2: #{convnet_forward.5} parent=0 // pred_check
    _
  $region3: #{convnet_forward.5} parent=0 // pred_check_branch
    %11 = sbr.rel (0) target = $region5
  $region4: #{convnet_forward.5} parent=0 // pred_region
    _
  $region5: #{convnet_forward.5} parent=0 // pred_fallthru
    _
  // Predicated region
  $region6: #{convnet_forward.5} parent=0 // pred_check
    _
  $region7: #{convnet_forward.5} parent=0 // pred_check_branch
    %13 = sbr.rel (0) target = $region9
  $region8: #{convnet_forward.5} parent=0 // pred_region
    _
  $region9: #{convnet_forward.5} parent=0 // pred_fallthru
    _
  // Predicated region
  $region10: #{convnet_forward.5} parent=0 // pred_check
    _
  $region11: #{convnet_forward.5} parent=0 // pred_check_branch
    %15 = sbr.rel (0) target = $region13
  $region12: #{convnet_forward.5} parent=0 // pred_region
    _
  $region13: #{convnet_forward.5} parent=0 // pred_fallthru
    _
  // Predicated region
  $region14: #{convnet_forward.5} parent=0 // pred_check
    _
  $region15: #{convnet_forward.5} parent=0 // pred_check_branch
    %17 = sbr.rel (0) target = $region17
  $region16: #{convnet_forward.5} parent=0 // pred_region
    _
  $region17: #{convnet_forward.5} parent=0 // pred_fallthru
    _
  // Predicated region
  $region18: #{convnet_forward.5} parent=0 // pred_check
    _
  $region19: #{convnet_forward.5} parent=0 // pred_check_branch
    %19 = sbr.rel (0) target = $region21
  $region20: #{convnet_forward.5} parent=0 // pred_region
    _
  $region21: #{convnet_forward.5} parent=0 // pred_fallthru
    _
  %v21 = vld [vmem:[%s0] sm:$0xff]
  %v22 = vld [vmem:[%s0 + $0x8] sm:$0xff]
  %v23 = vld [vmem:[%s0 + $0x10] sm:$0xff]
  %v24 = vld [vmem:[%s0 + $0x18] sm:$0xff]
  %v25 = vld [vmem:[%s0 + $0x20] sm:$0xff]
  %v26 = vld [vmem:[%s0 + $0x28] sm:$0xff]
  %v27 = vld [vmem:[%s0 + $0x30] sm:$0xf]
  %v28 = vld [vmem:[%s0 + $0x34] sm:$0xff]
  %v29 = vld [vmem:[%s0 + $0x3c] sm:$0xff]
  %v30 = vld [vmem:[%s0 + $0x44] sm:$0xff]
  %v31 = vld [vmem:[%s0 + $0x4c] sm:$0xff]
  %v32 = vld [vmem:[%s0 + $0x54] sm:$0xff]
  %v33 = vld [vmem:[%s0 + $0x5c] sm:$0xff]
  %v34 = vld [vmem:[%s0 + $0x64] sm:$0xf]
  %v35 = vld [vmem:[%s1] sm:$0xff]
  %v36 = vld [vmem:[%s1 + $0x8] sm:$0xff]
  %v37 = vld [vmem:[%s1 + $0x10] sm:$0xff]
  %v38 = vld [vmem:[%s1 + $0x18] sm:$0xff]
  %v39 = vld [vmem:[%s1 + $0x20] sm:$0xff]
  %v40 = vld [vmem:[%s1 + $0x28] sm:$0xff]
  %v41 = vld [vmem:[%s1 + $0x30] sm:$0xff]
  %v42 = vld [vmem:[%s1 + $0x38] sm:$0xff]
  %v43 = vld [vmem:[%s1 + $0x40] sm:$0xff]
  %v44 = vld [vmem:[%s1 + $0x48] sm:$0xff]
  %v45 = vld [vmem:[%s1 + $0x50] sm:$0xff]
  %v46 = vld [vmem:[%s1 + $0x58] sm:$0xff]
  %v47 = vld [vmem:[%s1 + $0x60] sm:$0xff]
  %v48 = vld [vmem:[%s1 + $0x68] sm:$0xff]
  %v49 = vld [vmem:[%s1 + $0x70] sm:$0xff]
  %v50 = vld [vmem:[%s1 + $0x78] sm:$0xff]
  %v51 = vld [vmem:[%s1 + $0x80] sm:$0xff]
  %v52 = vld [vmem:[%s1 + $0x88] sm:$0xff]
  %v53 = vld [vmem:[%s1 + $0x90] sm:$0xff]
  %v54 = vld [vmem:[%s1 + $0x98] sm:$0xff]
  %v55 = vld [vmem:[%s1 + $0xa0] sm:$0xff]
  %v56 = vld [vmem:[%s1 + $0xa8] sm:$0xff]
  %v57 = vld [vmem:[%s1 + $0xb0] sm:$0xff]
  %v58 = vld [vmem:[%s1 + $0xb8] sm:$0xff]
  %v59 = vld [vmem:[%s1 + $0xc0] sm:$0xff]
  %v60 = vld [vmem:[%s1 + $0xc8] sm:$0xff]
  %v61 = vld [vmem:[%s1 + $0xd0] sm:$0xff]
  %v62 = vld [vmem:[%s1 + $0xd8] sm:$0xff]
  %v63 = vld [vmem:[%s1 + $0xe0] sm:$0xff]
  %v64 = vld [vmem:[%s1 + $0xe8] sm:$0xff]
  %v65 = vld [vmem:[%s1 + $0xf0] sm:$0xff]
  %v66 = vld [vmem:[%s1 + $0xf8] sm:$0xff]
  %v67 = vld [vmem:[%s1 + $0x100] sm:$0xff]
  %v68 = vld [vmem:[%s1 + $0x108] sm:$0xff]
  %v69 = vld [vmem:[%s1 + $0x110] sm:$0xff]
  %v70 = vld [vmem:[%s1 + $0x118] sm:$0xff]
  %v71 = vld [vmem:[%s1 + $0x120] sm:$0xff]
  %v72 = vld [vmem:[%s1 + $0x128] sm:$0xff]
  %v73 = vld [vmem:[%s1 + $0x130] sm:$0xff]
  %v74 = vld [vmem:[%s1 + $0x138] sm:$0xff]
  %v75 = vld [vmem:[%s1 + $0x140] sm:$0xff]
  %v76 = vld [vmem:[%s1 + $0x148] sm:$0xff]
  %v77 = vld [vmem:[%s1 + $0x150] sm:$0xff]
  %v78 = vld [vmem:[%s1 + $0x158] sm:$0xff]
  %v79 = vld [vmem:[%s1 + $0x160] sm:$0xff]
  %v80 = vld [vmem:[%s1 + $0x168] sm:$0xff]
  %v81 = vld [vmem:[%s1 + $0x170] sm:$0xff]
  %v82 = vld [vmem:[%s1 + $0x178] sm:$0xff]
  %v83 = vld [vmem:[%s1 + $0x180] sm:$0xff]
  %v84 = vld [vmem:[%s1 + $0x188] sm:$0xff]
  %v85 = vld [vmem:[%s1 + $0x190] sm:$0xff]
  %v86 = vld [vmem:[%s1 + $0x198] sm:$0xff]
  %v87 = vld [vmem:[%s1 + $0x1a0] sm:$0xff]
  %v88 = vld [vmem:[%s1 + $0x1a8] sm:$0xff]
  %v89 = vld [vmem:[%s1 + $0x1b0] sm:$0xff]
  %v90 = vld [vmem:[%s1 + $0x1b8] sm:$0xff]
  %v91 = vld [vmem:[%s1 + $0x1c0] sm:$0xff]
  %v92 = vld [vmem:[%s1 + $0x1c8] sm:$0xff]
  %v93 = vld [vmem:[%s1 + $0x1d0] sm:$0xff]
  %v94 = vld [vmem:[%s1 + $0x1d8] sm:$0xff]
  %v95 = vld [vmem:[%s1 + $0x1e0] sm:$0xff]
  %v96 = vld [vmem:[%s1 + $0x1e8] sm:$0xff]
  %v97 = vld [vmem:[%s1 + $0x1f0] sm:$0xff]
  %v98 = vld [vmem:[%s1 + $0x1f8] sm:$0xff]
  %v99 = vld [vmem:[%s1 + $0x200] sm:$0xff]
  %v100 = vld [vmem:[%s1 + $0x208] sm:$0xff]
  %v101 = vld [vmem:[%s1 + $0x210] sm:$0xff]
  %v102 = vld [vmem:[%s1 + $0x218] sm:$0xff]
  %v103 = vld [vmem:[%s1 + $0x220] sm:$0xff]
  %v104 = vld [vmem:[%s1 + $0x228] sm:$0xff]
  %v105 = vld [vmem:[%s1 + $0x230] sm:$0xff]
  %v106 = vld [vmem:[%s1 + $0x238] sm:$0xff]
  %v107 = vld [vmem:[%s1 + $0x240] sm:$0xff]
  %v108 = vld [vmem:[%s1 + $0x248] sm:$0xff]
  %v109 = vld [vmem:[%s1 + $0x250] sm:$0xff]
  %v110 = vld [vmem:[%s1 + $0x258] sm:$0xff]
  %v111 = vld [vmem:[%s1 + $0x260] sm:$0xff]
  %v112 = vld [vmem:[%s1 + $0x268] sm:$0xff]
  %v113 = vld [vmem:[%s1 + $0x270] sm:$0xff]
  %v114 = vld [vmem:[%s1 + $0x278] sm:$0xff]
  %v115 = vld [vmem:[%s1 + $0x280] sm:$0xff]
  %v116 = vld [vmem:[%s1 + $0x288] sm:$0xff]
  %v117 = vld [vmem:[%s1 + $0x290] sm:$0xff]
  %v118 = vld [vmem:[%s1 + $0x298] sm:$0xff]
  %v119 = vld [vmem:[%s1 + $0x2a0] sm:$0xff]
  %v120 = vld [vmem:[%s1 + $0x2a8] sm:$0xff]
  %v121 = vld [vmem:[%s1 + $0x2b0] sm:$0xff]
  %v122 = vld [vmem:[%s1 + $0x2b8] sm:$0xff]
  %v123 = vld [vmem:[%s1 + $0x2c0] sm:$0xff]
  %v124 = vld [vmem:[%s1 + $0x2c8] sm:$0xff]
  %v125 = vld [vmem:[%s1 + $0x2d0] sm:$0xff]
  %v126 = vld [vmem:[%s1 + $0x2d8] sm:$0xff]
  %v127 = vld [vmem:[%s1 + $0x2e0] sm:$0xff]
  %v128 = vld [vmem:[%s1 + $0x2e8] sm:$0xff]
  %v129 = vld [vmem:[%s1 + $0x2f0] sm:$0xff]
  %v130 = vld [vmem:[%s1 + $0x2f8] sm:$0xff]
  %v131 = vld [vmem:[%s1 + $0x300] sm:$0xff]
  %v132 = vld [vmem:[%s1 + $0x308] sm:$0xff]
  %v133 = vld [vmem:[%s1 + $0x310] sm:$0xff]
  %v134 = vld [vmem:[%s1 + $0x318] sm:$0xff]
  %v135 = vld [vmem:[%s1 + $0x320] sm:$0xff]
  %v136 = vld [vmem:[%s1 + $0x328] sm:$0xff]
  %v137 = vld [vmem:[%s1 + $0x330] sm:$0xff]
  %v138 = vld [vmem:[%s1 + $0x338] sm:$0xff]
  %v139 = vld [vmem:[%s1 + $0x340] sm:$0xff]
  %v140 = vld [vmem:[%s1 + $0x348] sm:$0xff]
  %v141 = vld [vmem:[%s1 + $0x350] sm:$0xff]
  %v142 = vld [vmem:[%s1 + $0x358] sm:$0xff]
  %v143 = vld [vmem:[%s1 + $0x360] sm:$0xff]
  %v144 = vld [vmem:[%s1 + $0x368] sm:$0xff]
  %v145 = vld [vmem:[%s1 + $0x370] sm:$0xff]
  %v146 = vld [vmem:[%s1 + $0x378] sm:$0xff]
  %v147 = vld [vmem:[%s1 + $0x380] sm:$0xff]
  %v148 = vld [vmem:[%s1 + $0x388] sm:$0xff]
  %v149 = vld [vmem:[%s1 + $0x390] sm:$0xff]
  %v150 = vld [vmem:[%s1 + $0x398] sm:$0xff]
  %v151 = vld [vmem:[%s1 + $0x3a0] sm:$0xff]
  %v152 = vld [vmem:[%s1 + $0x3a8] sm:$0xff]
  %v153 = vld [vmem:[%s1 + $0x3b0] sm:$0xff]
  %v154 = vld [vmem:[%s1 + $0x3b8] sm:$0xff]
  %v155 = vld [vmem:[%s1 + $0x3c0] sm:$0xff]
  %v156 = vld [vmem:[%s1 + $0x3c8] sm:$0xff]
  %v157 = vld [vmem:[%s1 + $0x3d0] sm:$0xff]
  %v158 = vld [vmem:[%s1 + $0x3d8] sm:$0xff]
  %v159 = vld [vmem:[%s1 + $0x3e0] sm:$0xff]
  %v160 = vld [vmem:[%s1 + $0x3e8] sm:$0xff]
  %v161 = vld [vmem:[%s1 + $0x3f0] sm:$0xff]
  %v162 = vld [vmem:[%s1 + $0x3f8] sm:$0xff]
  %v163 = vld [vmem:[%s1 + $0x400] sm:$0xff]
  %v164 = vld [vmem:[%s1 + $0x408] sm:$0xff]
  %v165 = vld [vmem:[%s1 + $0x410] sm:$0xff]
  %v166 = vld [vmem:[%s1 + $0x418] sm:$0xff]
  %v167 = vld [vmem:[%s1 + $0x420] sm:$0xff]
  %v168 = vld [vmem:[%s1 + $0x428] sm:$0xff]
  %v169 = vld [vmem:[%s1 + $0x430] sm:$0xff]
  %v170 = vld [vmem:[%s1 + $0x438] sm:$0xff]
  %v171 = vld [vmem:[%s1 + $0x440] sm:$0xff]
  %v172 = vld [vmem:[%s1 + $0x448] sm:$0xff]
  %v173 = vld [vmem:[%s1 + $0x450] sm:$0xff]
  %v174 = vld [vmem:[%s1 + $0x458] sm:$0xff]
  %v175 = vld [vmem:[%s1 + $0x460] sm:$0xff]
  %v176 = vld [vmem:[%s1 + $0x468] sm:$0xff]
  %v177 = vld [vmem:[%s1 + $0x470] sm:$0xff]
  %v178 = vld [vmem:[%s1 + $0x478] sm:$0xff]
  %v179 = vld [vmem:[%s1 + $0x480] sm:$0xff]
  %v180 = vld [vmem:[%s1 + $0x488] sm:$0xff]
  %v181 = vld [vmem:[%s1 + $0x490] sm:$0xff]
  %v182 = vld [vmem:[%s1 + $0x498] sm:$0xff]
  %v183 = vld [vmem:[%s1 + $0x4a0] sm:$0xff]
  %v184 = vld [vmem:[%s1 + $0x4a8] sm:$0xff]
  %v185 = vld [vmem:[%s1 + $0x4b0] sm:$0xff]
  %v186 = vld [vmem:[%s1 + $0x4b8] sm:$0xff]
  %v187 = vld [vmem:[%s1 + $0x4c0] sm:$0xff]
  %v188 = vld [vmem:[%s1 + $0x4c8] sm:$0xff]
  %v189 = vld [vmem:[%s1 + $0x4d0] sm:$0xff]
  %v190 = vld [vmem:[%s1 + $0x4d8] sm:$0xff]
  %v191 = vld [vmem:[%s1 + $0x4e0] sm:$0xff]
  %v192 = vld [vmem:[%s1 + $0x4e8] sm:$0xff]
  %v193 = vld [vmem:[%s1 + $0x4f0] sm:$0xff]
  %v194 = vld [vmem:[%s1 + $0x4f8] sm:$0xff]
  %v195 = vld [vmem:[%s1 + $0x500] sm:$0xff]
  %v196 = vld [vmem:[%s1 + $0x508] sm:$0xff]
  %v197 = vld [vmem:[%s1 + $0x510] sm:$0xff]
  %v198 = vld [vmem:[%s1 + $0x518] sm:$0xff]
  %v199 = vld [vmem:[%s1 + $0x520] sm:$0xff]
  %v200 = vld [vmem:[%s1 + $0x528] sm:$0xff]
  %v201 = vld [vmem:[%s1 + $0x530] sm:$0xff]
  %v202 = vld [vmem:[%s1 + $0x538] sm:$0xff]
  %v203 = vld [vmem:[%s1 + $0x540] sm:$0xff]
  %v204 = vld [vmem:[%s1 + $0x548] sm:$0xff]
  %v205 = vld [vmem:[%s1 + $0x550] sm:$0xff]
  %v206 = vld [vmem:[%s1 + $0x558] sm:$0xff]
  %v207 = vld [vmem:[%s1 + $0x560] sm:$0xff]
  %v208 = vld [vmem:[%s1 + $0x568] sm:$0xff]
  %v209 = vld [vmem:[%s1 + $0x570] sm:$0xff]
  %v210 = vld [vmem:[%s1 + $0x578] sm:$0xff]
  %v211 = vld [vmem:[%s1 + $0x580] sm:$0xff]
  %v212 = vld [vmem:[%s1 + $0x588] sm:$0xff]
  %v213 = vld [vmem:[%s1 + $0x590] sm:$0xff]
  %v214 = vld [vmem:[%s1 + $0x598] sm:$0xff]
  %v215 = vld [vmem:[%s1 + $0x5a0] sm:$0xff]
  %v216 = vld [vmem:[%s1 + $0x5a8] sm:$0xff]
  %v217 = vld [vmem:[%s1 + $0x5b0] sm:$0xff]
  %v218 = vld [vmem:[%s1 + $0x5b8] sm:$0xff]
  %v219 = vld [vmem:[%s1 + $0x5c0] sm:$0xff]
  %v220 = vld [vmem:[%s1 + $0x5c8] sm:$0xff]
  %v221 = vld [vmem:[%s1 + $0x5d0] sm:$0xff]
  %v222 = vld [vmem:[%s1 + $0x5d8] sm:$0xff]
  %v223 = vld [vmem:[%s1 + $0x5e0] sm:$0xff]
  %v224 = vld [vmem:[%s1 + $0x5e8] sm:$0xff]
  %v225 = vld [vmem:[%s1 + $0x5f0] sm:$0xff]
  %v226 = vld [vmem:[%s1 + $0x5f8] sm:$0xff]
  %v227 = vld [vmem:[%s1 + $0x600] sm:$0xff]
  %v228 = vld [vmem:[%s1 + $0x608] sm:$0xff]
  %v229 = vld [vmem:[%s1 + $0x610] sm:$0xff]
  %v230 = vld [vmem:[%s1 + $0x618] sm:$0xff]
  %v231 = vld [vmem:[%s2] sm:$0x3]
  %v233 = vperm.slane %v231, 0
  %v234 = vperm.slane %v231, 1
  %v251 = vunpack.c.l.b16 %v21
  %v252 = vunpack.c.h.b16 %v21
  %v253 = vunpack.c.l.b16 %v22
  %v254 = vunpack.c.h.b16 %v22
  %v255 = vunpack.c.l.b16 %v23
  %v256 = vunpack.c.h.b16 %v23
  %v257 = vunpack.c.l.b16 %v24
  %v258 = vunpack.c.h.b16 %v24
  %v259 = vunpack.c.l.b16 %v25
  %v260 = vunpack.c.h.b16 %v25
  %v261 = vunpack.c.l.b16 %v26
  %v262 = vunpack.c.h.b16 %v26
  %v263 = vunpack.c.l.b16 %v27
  %v264 = vunpack.c.l.b16 %v28
  %v265 = vunpack.c.h.b16 %v28
  %v266 = vunpack.c.l.b16 %v29
  %v267 = vunpack.c.h.b16 %v29
  %v268 = vunpack.c.l.b16 %v30
  %v269 = vunpack.c.h.b16 %v30
  %v270 = vunpack.c.l.b16 %v31
  %v271 = vunpack.c.h.b16 %v31
  %v272 = vunpack.c.l.b16 %v32
  %v273 = vunpack.c.h.b16 %v32
  %v274 = vunpack.c.l.b16 %v33
  %v275 = vunpack.c.h.b16 %v33
  %v276 = vunpack.c.l.b16 %v34
  %v277 = vpack.c.b16 %v264, %v251
  %v278 = vpack.c.b16 %v265, %v252
  %v279 = vpack.c.b16 %v266, %v253
  %v280 = vpack.c.b16 %v267, %v254
  %v281 = vpack.c.b16 %v268, %v255
  %v282 = vpack.c.b16 %v269, %v256
  %v283 = vpack.c.b16 %v270, %v257
  %v284 = vpack.c.b16 %v271, %v258
  %v285 = vpack.c.b16 %v272, %v259
  %v286 = vpack.c.b16 %v273, %v260
  %v287 = vpack.c.b16 %v274, %v261
  %v288 = vpack.c.b16 %v275, %v262
  %v289 = vpack.c.b16 %v276, %v263
  %v498 = vunpack.c.l.b16 %v35
  %v499 = vunpack.c.h.b16 %v35
  %v500 = vunpack.c.l.b16 %v36
  %v501 = vunpack.c.h.b16 %v36
  %v502 = vunpack.c.l.b16 %v37
  %v503 = vunpack.c.h.b16 %v37
  %v504 = vunpack.c.l.b16 %v38
  %v505 = vunpack.c.h.b16 %v38
  %v506 = vunpack.c.l.b16 %v39
  %v507 = vunpack.c.h.b16 %v39
  %v508 = vunpack.c.l.b16 %v40
  %v509 = vunpack.c.h.b16 %v40
  %v510 = vunpack.c.l.b16 %v41
  %v511 = vunpack.c.h.b16 %v41
  %v512 = vunpack.c.l.b16 %v42
  %v513 = vunpack.c.h.b16 %v42
  %v514 = vunpack.c.l.b16 %v43
  %v515 = vunpack.c.h.b16 %v43
  %v516 = vunpack.c.l.b16 %v44
  %v517 = vunpack.c.h.b16 %v44
  %v518 = vunpack.c.l.b16 %v45
  %v519 = vunpack.c.h.b16 %v45
  %v520 = vunpack.c.l.b16 %v46
  %v521 = vunpack.c.h.b16 %v46
  %v522 = vunpack.c.l.b16 %v47
  %v523 = vunpack.c.h.b16 %v47
  %v524 = vunpack.c.l.b16 %v48
  %v525 = vunpack.c.h.b16 %v48
  %v526 = vunpack.c.l.b16 %v49
  %v527 = vunpack.c.h.b16 %v49
  %v528 = vunpack.c.l.b16 %v50
  %v529 = vunpack.c.h.b16 %v50
  %v530 = vunpack.c.l.b16 %v51
  %v531 = vunpack.c.h.b16 %v51
  %v532 = vunpack.c.l.b16 %v52
  %v533 = vunpack.c.h.b16 %v52
  %v534 = vunpack.c.l.b16 %v53
  %v535 = vunpack.c.h.b16 %v53
  %v536 = vunpack.c.l.b16 %v54
  %v537 = vunpack.c.h.b16 %v54
  %v538 = vunpack.c.l.b16 %v55
  %v539 = vunpack.c.h.b16 %v55
  %v540 = vunpack.c.l.b16 %v56
  %v541 = vunpack.c.h.b16 %v56
  %v542 = vunpack.c.l.b16 %v57
  %v543 = vunpack.c.h.b16 %v57
  %v544 = vunpack.c.l.b16 %v58
  %v545 = vunpack.c.h.b16 %v58
  %v546 = vunpack.c.l.b16 %v59
  %v547 = vunpack.c.h.b16 %v59
  %v548 = vunpack.c.l.b16 %v60
  %v549 = vunpack.c.h.b16 %v60
  %v550 = vunpack.c.l.b16 %v61
  %v551 = vunpack.c.h.b16 %v61
  %v552 = vunpack.c.l.b16 %v62
  %v553 = vunpack.c.h.b16 %v62
  %v554 = vunpack.c.l.b16 %v63
  %v555 = vunpack.c.h.b16 %v63
  %v556 = vunpack.c.l.b16 %v64
  %v557 = vunpack.c.h.b16 %v64
  %v558 = vunpack.c.l.b16 %v65
  %v559 = vunpack.c.h.b16 %v65
  %v560 = vunpack.c.l.b16 %v66
  %v561 = vunpack.c.h.b16 %v66
  %v562 = vunpack.c.l.b16 %v67
  %v563 = vunpack.c.h.b16 %v67
  %v564 = vunpack.c.l.b16 %v68
  %v565 = vunpack.c.h.b16 %v68
  %v566 = vunpack.c.l.b16 %v69
  %v567 = vunpack.c.h.b16 %v69
  %v568 = vunpack.c.l.b16 %v70
  %v569 = vunpack.c.h.b16 %v70
  %v570 = vunpack.c.l.b16 %v71
  %v571 = vunpack.c.h.b16 %v71
  %v572 = vunpack.c.l.b16 %v72
  %v573 = vunpack.c.h.b16 %v72
  %v574 = vunpack.c.l.b16 %v73
  %v575 = vunpack.c.h.b16 %v73
  %v576 = vunpack.c.l.b16 %v74
  %v577 = vunpack.c.h.b16 %v74
  %v578 = vunpack.c.l.b16 %v75
  %v579 = vunpack.c.h.b16 %v75
  %v580 = vunpack.c.l.b16 %v76
  %v581 = vunpack.c.h.b16 %v76
  %v582 = vunpack.c.l.b16 %v77
  %v583 = vunpack.c.h.b16 %v77
  %v584 = vunpack.c.l.b16 %v78
  %v585 = vunpack.c.h.b16 %v78
  %v586 = vunpack.c.l.b16 %v79
  %v587 = vunpack.c.h.b16 %v79
  %v588 = vunpack.c.l.b16 %v80
  %v589 = vunpack.c.h.b16 %v80
  %v590 = vunpack.c.l.b16 %v81
  %v591 = vunpack.c.h.b16 %v81
  %v592 = vunpack.c.l.b16 %v82
  %v593 = vunpack.c.h.b16 %v82
  %v594 = vunpack.c.l.b16 %v83
  %v595 = vunpack.c.h.b16 %v83
  %v596 = vunpack.c.l.b16 %v84
  %v597 = vunpack.c.h.b16 %v84
  %v598 = vunpack.c.l.b16 %v85
  %v599 = vunpack.c.h.b16 %v85
  %v600 = vunpack.c.l.b16 %v86
  %v601 = vunpack.c.h.b16 %v86
  %v602 = vunpack.c.l.b16 %v87
  %v603 = vunpack.c.h.b16 %v87
  %v604 = vunpack.c.l.b16 %v88
  %v605 = vunpack.c.h.b16 %v88
  %v606 = vunpack.c.l.b16 %v89
  %v607 = vunpack.c.h.b16 %v89
  %v608 = vunpack.c.l.b16 %v90
  %v609 = vunpack.c.h.b16 %v90
  %v610 = vunpack.c.l.b16 %v91
  %v611 = vunpack.c.h.b16 %v91
  %v612 = vunpack.c.l.b16 %v92
  %v613 = vunpack.c.h.b16 %v92
  %v614 = vunpack.c.l.b16 %v93
  %v615 = vunpack.c.h.b16 %v93
  %v616 = vunpack.c.l.b16 %v94
  %v617 = vunpack.c.h.b16 %v94
  %v618 = vunpack.c.l.b16 %v95
  %v619 = vunpack.c.h.b16 %v95
  %v620 = vunpack.c.l.b16 %v96
  %v621 = vunpack.c.h.b16 %v96
  %v622 = vunpack.c.l.b16 %v97
  %v623 = vunpack.c.h.b16 %v97
  %v624 = vunpack.c.l.b16 %v98
  %v625 = vunpack.c.h.b16 %v98
  %v626 = vunpack.c.l.b16 %v99
  %v627 = vunpack.c.h.b16 %v99
  %v628 = vunpack.c.l.b16 %v100
  %v629 = vunpack.c.h.b16 %v100
  %v630 = vunpack.c.l.b16 %v101
  %v631 = vunpack.c.h.b16 %v101
  %v632 = vunpack.c.l.b16 %v102
  %v633 = vunpack.c.h.b16 %v102
  %v634 = vunpack.c.l.b16 %v103
  %v635 = vunpack.c.h.b16 %v103
  %v636 = vunpack.c.l.b16 %v104
  %v637 = vunpack.c.h.b16 %v104
  %v638 = vunpack.c.l.b16 %v105
  %v639 = vunpack.c.h.b16 %v105
  %v640 = vunpack.c.l.b16 %v106
  %v641 = vunpack.c.h.b16 %v106
  %v642 = vunpack.c.l.b16 %v107
  %v643 = vunpack.c.h.b16 %v107
  %v644 = vunpack.c.l.b16 %v108
  %v645 = vunpack.c.h.b16 %v108
  %v646 = vunpack.c.l.b16 %v109
  %v647 = vunpack.c.h.b16 %v109
  %v648 = vunpack.c.l.b16 %v110
  %v649 = vunpack.c.h.b16 %v110
  %v650 = vunpack.c.l.b16 %v111
  %v651 = vunpack.c.h.b16 %v111
  %v652 = vunpack.c.l.b16 %v112
  %v653 = vunpack.c.h.b16 %v112
  %v654 = vunpack.c.l.b16 %v113
  %v655 = vunpack.c.h.b16 %v113
  %v656 = vunpack.c.l.b16 %v114
  %v657 = vunpack.c.h.b16 %v114
  %v658 = vunpack.c.l.b16 %v115
  %v659 = vunpack.c.h.b16 %v115
  %v660 = vunpack.c.l.b16 %v116
  %v661 = vunpack.c.h.b16 %v116
  %v662 = vunpack.c.l.b16 %v117
  %v663 = vunpack.c.h.b16 %v117
  %v664 = vunpack.c.l.b16 %v118
  %v665 = vunpack.c.h.b16 %v118
  %v666 = vunpack.c.l.b16 %v119
  %v667 = vunpack.c.h.b16 %v119
  %v668 = vunpack.c.l.b16 %v120
  %v669 = vunpack.c.h.b16 %v120
  %v670 = vunpack.c.l.b16 %v121
  %v671 = vunpack.c.h.b16 %v121
  %v672 = vunpack.c.l.b16 %v122
  %v673 = vunpack.c.h.b16 %v122
  %v674 = vunpack.c.l.b16 %v123
  %v675 = vunpack.c.h.b16 %v123
  %v676 = vunpack.c.l.b16 %v124
  %v677 = vunpack.c.h.b16 %v124
  %v678 = vunpack.c.l.b16 %v125
  %v679 = vunpack.c.h.b16 %v125
  %v680 = vunpack.c.l.b16 %v126
  %v681 = vunpack.c.h.b16 %v126
  %v682 = vunpack.c.l.b16 %v127
  %v683 = vunpack.c.h.b16 %v127
  %v684 = vunpack.c.l.b16 %v128
  %v685 = vunpack.c.h.b16 %v128
  %v686 = vunpack.c.l.b16 %v129
  %v687 = vunpack.c.h.b16 %v129
  %v688 = vunpack.c.l.b16 %v130
  %v689 = vunpack.c.h.b16 %v130
  %v690 = vunpack.c.l.b16 %v131
  %v691 = vunpack.c.h.b16 %v131
  %v692 = vunpack.c.l.b16 %v132
  %v693 = vunpack.c.h.b16 %v132
  %v694 = vunpack.c.l.b16 %v133
  %v695 = vunpack.c.h.b16 %v133
  %v696 = vunpack.c.l.b16 %v134
  %v697 = vunpack.c.h.b16 %v134
  %v698 = vunpack.c.l.b16 %v135
  %v699 = vunpack.c.h.b16 %v135
  %v700 = vunpack.c.l.b16 %v136
  %v701 = vunpack.c.h.b16 %v136
  %v702 = vunpack.c.l.b16 %v137
  %v703 = vunpack.c.h.b16 %v137
  %v704 = vunpack.c.l.b16 %v138
  %v705 = vunpack.c.h.b16 %v138
  %v706 = vunpack.c.l.b16 %v139
  %v707 = vunpack.c.h.b16 %v139
  %v708 = vunpack.c.l.b16 %v140
  %v709 = vunpack.c.h.b16 %v140
  %v710 = vunpack.c.l.b16 %v141
  %v711 = vunpack.c.h.b16 %v141
  %v712 = vunpack.c.l.b16 %v142
  %v713 = vunpack.c.h.b16 %v142
  %v714 = vunpack.c.l.b16 %v143
  %v715 = vunpack.c.h.b16 %v143
  %v716 = vunpack.c.l.b16 %v144
  %v717 = vunpack.c.h.b16 %v144
  %v718 = vunpack.c.l.b16 %v145
  %v719 = vunpack.c.h.b16 %v145
  %v720 = vunpack.c.l.b16 %v146
  %v721 = vunpack.c.h.b16 %v146
  %v722 = vunpack.c.l.b16 %v147
  %v723 = vunpack.c.h.b16 %v147
  %v724 = vunpack.c.l.b16 %v148
  %v725 = vunpack.c.h.b16 %v148
  %v726 = vunpack.c.l.b16 %v149
  %v727 = vunpack.c.h.b16 %v149
  %v728 = vunpack.c.l.b16 %v150
  %v729 = vunpack.c.h.b16 %v150
  %v730 = vunpack.c.l.b16 %v151
  %v731 = vunpack.c.h.b16 %v151
  %v732 = vunpack.c.l.b16 %v152
  %v733 = vunpack.c.h.b16 %v152
  %v734 = vunpack.c.l.b16 %v153
  %v735 = vunpack.c.h.b16 %v153
  %v736 = vunpack.c.l.b16 %v154
  %v737 = vunpack.c.h.b16 %v154
  %v738 = vunpack.c.l.b16 %v155
  %v739 = vunpack.c.h.b16 %v155
  %v740 = vunpack.c.l.b16 %v156
  %v741 = vunpack.c.h.b16 %v156
  %v742 = vunpack.c.l.b16 %v157
  %v743 = vunpack.c.h.b16 %v157
  %v744 = vunpack.c.l.b16 %v158
  %v745 = vunpack.c.h.b16 %v158
  %v746 = vunpack.c.l.b16 %v159
  %v747 = vunpack.c.h.b16 %v159
  %v748 = vunpack.c.l.b16 %v160
  %v749 = vunpack.c.h.b16 %v160
  %v750 = vunpack.c.l.b16 %v161
  %v751 = vunpack.c.h.b16 %v161
  %v752 = vunpack.c.l.b16 %v162
  %v753 = vunpack.c.h.b16 %v162
  %v754 = vunpack.c.l.b16 %v163
  %v755 = vunpack.c.h.b16 %v163
  %v756 = vunpack.c.l.b16 %v164
  %v757 = vunpack.c.h.b16 %v164
  %v758 = vunpack.c.l.b16 %v165
  %v759 = vunpack.c.h.b16 %v165
  %v760 = vunpack.c.l.b16 %v166
  %v761 = vunpack.c.h.b16 %v166
  %v762 = vunpack.c.l.b16 %v167
  %v763 = vunpack.c.h.b16 %v167
  %v764 = vunpack.c.l.b16 %v168
  %v765 = vunpack.c.h.b16 %v168
  %v766 = vunpack.c.l.b16 %v169
  %v767 = vunpack.c.h.b16 %v169
  %v768 = vunpack.c.l.b16 %v170
  %v769 = vunpack.c.h.b16 %v170
  %v770 = vunpack.c.l.b16 %v171
  %v771 = vunpack.c.h.b16 %v171
  %v772 = vunpack.c.l.b16 %v172
  %v773 = vunpack.c.h.b16 %v172
  %v774 = vunpack.c.l.b16 %v173
  %v775 = vunpack.c.h.b16 %v173
  %v776 = vunpack.c.l.b16 %v174
  %v777 = vunpack.c.h.b16 %v174
  %v778 = vunpack.c.l.b16 %v175
  %v779 = vunpack.c.h.b16 %v175
  %v780 = vunpack.c.l.b16 %v176
  %v781 = vunpack.c.h.b16 %v176
  %v782 = vunpack.c.l.b16 %v177
  %v783 = vunpack.c.h.b16 %v177
  %v784 = vunpack.c.l.b16 %v178
  %v785 = vunpack.c.h.b16 %v178
  %v786 = vunpack.c.l.b16 %v179
  %v787 = vunpack.c.h.b16 %v179
  %v788 = vunpack.c.l.b16 %v180
  %v789 = vunpack.c.h.b16 %v180
  %v790 = vunpack.c.l.b16 %v181
  %v791 = vunpack.c.h.b16 %v181
  %v792 = vunpack.c.l.b16 %v182
  %v793 = vunpack.c.h.b16 %v182
  %v794 = vunpack.c.l.b16 %v183
  %v795 = vunpack.c.h.b16 %v183
  %v796 = vunpack.c.l.b16 %v184
  %v797 = vunpack.c.h.b16 %v184
  %v798 = vunpack.c.l.b16 %v185
  %v799 = vunpack.c.h.b16 %v185
  %v800 = vunpack.c.l.b16 %v186
  %v801 = vunpack.c.h.b16 %v186
  %v802 = vunpack.c.l.b16 %v187
  %v803 = vunpack.c.h.b16 %v187
  %v804 = vunpack.c.l.b16 %v188
  %v805 = vunpack.c.h.b16 %v188
  %v806 = vunpack.c.l.b16 %v189
  %v807 = vunpack.c.h.b16 %v189
  %v808 = vunpack.c.l.b16 %v190
  %v809 = vunpack.c.h.b16 %v190
  %v810 = vunpack.c.l.b16 %v191
  %v811 = vunpack.c.h.b16 %v191
  %v812 = vunpack.c.l.b16 %v192
  %v813 = vunpack.c.h.b16 %v192
  %v814 = vunpack.c.l.b16 %v193
  %v815 = vunpack.c.h.b16 %v193
  %v816 = vunpack.c.l.b16 %v194
  %v817 = vunpack.c.h.b16 %v194
  %v818 = vunpack.c.l.b16 %v195
  %v819 = vunpack.c.h.b16 %v195
  %v820 = vunpack.c.l.b16 %v196
  %v821 = vunpack.c.h.b16 %v196
  %v822 = vunpack.c.l.b16 %v197
  %v823 = vunpack.c.h.b16 %v197
  %v824 = vunpack.c.l.b16 %v198
  %v825 = vunpack.c.h.b16 %v198
  %v826 = vunpack.c.l.b16 %v199
  %v827 = vunpack.c.h.b16 %v199
  %v828 = vunpack.c.l.b16 %v200
  %v829 = vunpack.c.h.b16 %v200
  %v830 = vunpack.c.l.b16 %v201
  %v831 = vunpack.c.h.b16 %v201
  %v832 = vunpack.c.l.b16 %v202
  %v833 = vunpack.c.h.b16 %v202
  %v834 = vunpack.c.l.b16 %v203
  %v835 = vunpack.c.h.b16 %v203
  %v836 = vunpack.c.l.b16 %v204
  %v837 = vunpack.c.h.b16 %v204
  %v838 = vunpack.c.l.b16 %v205
  %v839 = vunpack.c.h.b16 %v205
  %v840 = vunpack.c.l.b16 %v206
  %v841 = vunpack.c.h.b16 %v206
  %v842 = vunpack.c.l.b16 %v207
  %v843 = vunpack.c.h.b16 %v207
  %v844 = vunpack.c.l.b16 %v208
  %v845 = vunpack.c.h.b16 %v208
  %v846 = vunpack.c.l.b16 %v209
  %v847 = vunpack.c.h.b16 %v209
  %v848 = vunpack.c.l.b16 %v210
  %v849 = vunpack.c.h.b16 %v210
  %v850 = vunpack.c.l.b16 %v211
  %v851 = vunpack.c.h.b16 %v211
  %v852 = vunpack.c.l.b16 %v212
  %v853 = vunpack.c.h.b16 %v212
  %v854 = vunpack.c.l.b16 %v213
  %v855 = vunpack.c.h.b16 %v213
  %v856 = vunpack.c.l.b16 %v214
  %v857 = vunpack.c.h.b16 %v214
  %v858 = vunpack.c.l.b16 %v215
  %v859 = vunpack.c.h.b16 %v215
  %v860 = vunpack.c.l.b16 %v216
  %v861 = vunpack.c.h.b16 %v216
  %v862 = vunpack.c.l.b16 %v217
  %v863 = vunpack.c.h.b16 %v217
  %v864 = vunpack.c.l.b16 %v218
  %v865 = vunpack.c.h.b16 %v218
  %v866 = vunpack.c.l.b16 %v219
  %v867 = vunpack.c.h.b16 %v219
  %v868 = vunpack.c.l.b16 %v220
  %v869 = vunpack.c.h.b16 %v220
  %v870 = vunpack.c.l.b16 %v221
  %v871 = vunpack.c.h.b16 %v221
  %v872 = vunpack.c.l.b16 %v222
  %v873 = vunpack.c.h.b16 %v222
  %v874 = vunpack.c.l.b16 %v223
  %v875 = vunpack.c.h.b16 %v223
  %v876 = vunpack.c.l.b16 %v224
  %v877 = vunpack.c.h.b16 %v224
  %v878 = vunpack.c.l.b16 %v225
  %v879 = vunpack.c.h.b16 %v225
  %v880 = vunpack.c.l.b16 %v226
  %v881 = vunpack.c.h.b16 %v226
  %v882 = vunpack.c.l.b16 %v227
  %v883 = vunpack.c.h.b16 %v227
  %v884 = vunpack.c.l.b16 %v228
  %v885 = vunpack.c.h.b16 %v228
  %v886 = vunpack.c.l.b16 %v229
  %v887 = vunpack.c.h.b16 %v229
  %v888 = vunpack.c.l.b16 %v230
  %v889 = vunpack.c.h.b16 %v230
  %v890 = vpack.c.b16 %v500, %v498
  %v891 = vpack.c.b16 %v501, %v499
  %v892 = vpack.c.b16 %v504, %v502
  %v893 = vpack.c.b16 %v505, %v503
  %v894 = vpack.c.b16 %v508, %v506
  %v895 = vpack.c.b16 %v509, %v507
  %v896 = vpack.c.b16 %v512, %v510
  %v897 = vpack.c.b16 %v513, %v511
  %v898 = vpack.c.b16 %v516, %v514
  %v899 = vpack.c.b16 %v517, %v515
  %v900 = vpack.c.b16 %v520, %v518
  %v901 = vpack.c.b16 %v521, %v519
  %v902 = vpack.c.b16 %v524, %v522
  %v903 = vpack.c.b16 %v525, %v523
  %v904 = vpack.c.b16 %v528, %v526
  %v905 = vpack.c.b16 %v529, %v527
  %v906 = vpack.c.b16 %v532, %v530
  %v907 = vpack.c.b16 %v533, %v531
  %v908 = vpack.c.b16 %v536, %v534
  %v909 = vpack.c.b16 %v537, %v535
  %v910 = vpack.c.b16 %v540, %v538
  %v911 = vpack.c.b16 %v541, %v539
  %v912 = vpack.c.b16 %v544, %v542
  %v913 = vpack.c.b16 %v545, %v543
  %v914 = vpack.c.b16 %v548, %v546
  %v915 = vpack.c.b16 %v549, %v547
  %v916 = vpack.c.b16 %v552, %v550
  %v917 = vpack.c.b16 %v553, %v551
  %v918 = vpack.c.b16 %v556, %v554
  %v919 = vpack.c.b16 %v557, %v555
  %v920 = vpack.c.b16 %v560, %v558
  %v921 = vpack.c.b16 %v561, %v559
  %v922 = vpack.c.b16 %v564, %v562
  %v923 = vpack.c.b16 %v565, %v563
  %v924 = vpack.c.b16 %v568, %v566
  %v925 = vpack.c.b16 %v569, %v567
  %v926 = vpack.c.b16 %v572, %v570
  %v927 = vpack.c.b16 %v573, %v571
  %v928 = vpack.c.b16 %v576, %v574
  %v929 = vpack.c.b16 %v577, %v575
  %v930 = vpack.c.b16 %v580, %v578
  %v931 = vpack.c.b16 %v581, %v579
  %v932 = vpack.c.b16 %v584, %v582
  %v933 = vpack.c.b16 %v585, %v583
  %v934 = vpack.c.b16 %v588, %v586
  %v935 = vpack.c.b16 %v589, %v587
  %v936 = vpack.c.b16 %v592, %v590
  %v937 = vpack.c.b16 %v593, %v591
  %v938 = vpack.c.b16 %v596, %v594
  %v939 = vpack.c.b16 %v597, %v595
  %v940 = vpack.c.b16 %v600, %v598
  %v941 = vpack.c.b16 %v601, %v599
  %v942 = vpack.c.b16 %v604, %v602
  %v943 = vpack.c.b16 %v605, %v603
  %v944 = vpack.c.b16 %v608, %v606
  %v945 = vpack.c.b16 %v609, %v607
  %v946 = vpack.c.b16 %v612, %v610
  %v947 = vpack.c.b16 %v613, %v611
  %v948 = vpack.c.b16 %v616, %v614
  %v949 = vpack.c.b16 %v617, %v615
  %v950 = vpack.c.b16 %v620, %v618
  %v951 = vpack.c.b16 %v621, %v619
  %v952 = vpack.c.b16 %v624, %v622
  %v953 = vpack.c.b16 %v625, %v623
  %v954 = vpack.c.b16 %v628, %v626
  %v955 = vpack.c.b16 %v629, %v627
  %v956 = vpack.c.b16 %v632, %v630
  %v957 = vpack.c.b16 %v633, %v631
  %v958 = vpack.c.b16 %v636, %v634
  %v959 = vpack.c.b16 %v637, %v635
  %v960 = vpack.c.b16 %v640, %v638
  %v961 = vpack.c.b16 %v641, %v639
  %v962 = vpack.c.b16 %v644, %v642
  %v963 = vpack.c.b16 %v645, %v643
  %v964 = vpack.c.b16 %v648, %v646
  %v965 = vpack.c.b16 %v649, %v647
  %v966 = vpack.c.b16 %v652, %v650
  %v967 = vpack.c.b16 %v653, %v651
  %v968 = vpack.c.b16 %v656, %v654
  %v969 = vpack.c.b16 %v657, %v655
  %v970 = vpack.c.b16 %v660, %v658
  %v971 = vpack.c.b16 %v661, %v659
  %v972 = vpack.c.b16 %v664, %v662
  %v973 = vpack.c.b16 %v665, %v663
  %v974 = vpack.c.b16 %v668, %v666
  %v975 = vpack.c.b16 %v669, %v667
  %v976 = vpack.c.b16 %v672, %v670
  %v977 = vpack.c.b16 %v673, %v671
  %v978 = vpack.c.b16 %v676, %v674
  %v979 = vpack.c.b16 %v677, %v675
  %v980 = vpack.c.b16 %v680, %v678
  %v981 = vpack.c.b16 %v681, %v679
  %v982 = vpack.c.b16 %v684, %v682
  %v983 = vpack.c.b16 %v685, %v683
  %v984 = vpack.c.b16 %v688, %v686
  %v985 = vpack.c.b16 %v689, %v687
  %v986 = vpack.c.b16 %v692, %v690
  %v987 = vpack.c.b16 %v693, %v691
  %v988 = vpack.c.b16 %v696, %v694
  %v989 = vpack.c.b16 %v697, %v695
  %v990 = vpack.c.b16 %v700, %v698
  %v991 = vpack.c.b16 %v701, %v699
  %v992 = vpack.c.b16 %v704, %v702
  %v993 = vpack.c.b16 %v705, %v703
  %v994 = vpack.c.b16 %v708, %v706
  %v995 = vpack.c.b16 %v709, %v707
  %v996 = vpack.c.b16 %v712, %v710
  %v997 = vpack.c.b16 %v713, %v711
  %v998 = vpack.c.b16 %v716, %v714
  %v999 = vpack.c.b16 %v717, %v715
  %v1000 = vpack.c.b16 %v720, %v718
  %v1001 = vpack.c.b16 %v721, %v719
  %v1002 = vpack.c.b16 %v724, %v722
  %v1003 = vpack.c.b16 %v725, %v723
  %v1004 = vpack.c.b16 %v728, %v726
  %v1005 = vpack.c.b16 %v729, %v727
  %v1006 = vpack.c.b16 %v732, %v730
  %v1007 = vpack.c.b16 %v733, %v731
  %v1008 = vpack.c.b16 %v736, %v734
  %v1009 = vpack.c.b16 %v737, %v735
  %v1010 = vpack.c.b16 %v740, %v738
  %v1011 = vpack.c.b16 %v741, %v739
  %v1012 = vpack.c.b16 %v744, %v742
  %v1013 = vpack.c.b16 %v745, %v743
  %v1014 = vpack.c.b16 %v748, %v746
  %v1015 = vpack.c.b16 %v749, %v747
  %v1016 = vpack.c.b16 %v752, %v750
  %v1017 = vpack.c.b16 %v753, %v751
  %v1018 = vpack.c.b16 %v756, %v754
  %v1019 = vpack.c.b16 %v757, %v755
  %v1020 = vpack.c.b16 %v760, %v758
  %v1021 = vpack.c.b16 %v761, %v759
  %v1022 = vpack.c.b16 %v764, %v762
  %v1023 = vpack.c.b16 %v765, %v763
  %v1024 = vpack.c.b16 %v768, %v766
  %v1025 = vpack.c.b16 %v769, %v767
  %v1026 = vpack.c.b16 %v772, %v770
  %v1027 = vpack.c.b16 %v773, %v771
  %v1028 = vpack.c.b16 %v776, %v774
  %v1029 = vpack.c.b16 %v777, %v775
  %v1030 = vpack.c.b16 %v780, %v778
  %v1031 = vpack.c.b16 %v781, %v779
  %v1032 = vpack.c.b16 %v784, %v782
  %v1033 = vpack.c.b16 %v785, %v783
  %v1034 = vpack.c.b16 %v788, %v786
  %v1035 = vpack.c.b16 %v789, %v787
  %v1036 = vpack.c.b16 %v792, %v790
  %v1037 = vpack.c.b16 %v793, %v791
  %v1038 = vpack.c.b16 %v796, %v794
  %v1039 = vpack.c.b16 %v797, %v795
  %v1040 = vpack.c.b16 %v800, %v798
  %v1041 = vpack.c.b16 %v801, %v799
  %v1042 = vpack.c.b16 %v804, %v802
  %v1043 = vpack.c.b16 %v805, %v803
  %v1044 = vpack.c.b16 %v808, %v806
  %v1045 = vpack.c.b16 %v809, %v807
  %v1046 = vpack.c.b16 %v812, %v810
  %v1047 = vpack.c.b16 %v813, %v811
  %v1048 = vpack.c.b16 %v816, %v814
  %v1049 = vpack.c.b16 %v817, %v815
  %v1050 = vpack.c.b16 %v820, %v818
  %v1051 = vpack.c.b16 %v821, %v819
  %v1052 = vpack.c.b16 %v824, %v822
  %v1053 = vpack.c.b16 %v825, %v823
  %v1054 = vpack.c.b16 %v828, %v826
  %v1055 = vpack.c.b16 %v829, %v827
  %v1056 = vpack.c.b16 %v832, %v830
  %v1057 = vpack.c.b16 %v833, %v831
  %v1058 = vpack.c.b16 %v836, %v834
  %v1059 = vpack.c.b16 %v837, %v835
  %v1060 = vpack.c.b16 %v840, %v838
  %v1061 = vpack.c.b16 %v841, %v839
  %v1062 = vpack.c.b16 %v844, %v842
  %v1063 = vpack.c.b16 %v845, %v843
  %v1064 = vpack.c.b16 %v848, %v846
  %v1065 = vpack.c.b16 %v849, %v847
  %v1066 = vpack.c.b16 %v852, %v850
  %v1067 = vpack.c.b16 %v853, %v851
  %v1068 = vpack.c.b16 %v856, %v854
  %v1069 = vpack.c.b16 %v857, %v855
  %v1070 = vpack.c.b16 %v860, %v858
  %v1071 = vpack.c.b16 %v861, %v859
  %v1072 = vpack.c.b16 %v864, %v862
  %v1073 = vpack.c.b16 %v865, %v863
  %v1074 = vpack.c.b16 %v868, %v866
  %v1075 = vpack.c.b16 %v869, %v867
  %v1076 = vpack.c.b16 %v872, %v870
  %v1077 = vpack.c.b16 %v873, %v871
  %v1078 = vpack.c.b16 %v876, %v874
  %v1079 = vpack.c.b16 %v877, %v875
  %v1080 = vpack.c.b16 %v880, %v878
  %v1081 = vpack.c.b16 %v881, %v879
  %v1082 = vpack.c.b16 %v884, %v882
  %v1083 = vpack.c.b16 %v885, %v883
  %v1084 = vpack.c.b16 %v888, %v886
  %v1085 = vpack.c.b16 %v889, %v887
  %vm1282 = vcmask 261120
  %v1284 = vsel %vm1282, %v289, 0
  %1286 = vmatpush.bf16.msra.mxu0 %v904
  %1287 = vmatpush.bf16.msra.mxu0 %v902
  %1288 = vmatpush.bf16.msra.mxu0 %v900
  %1289 = vmatpush.bf16.msra.mxu0 %v898
  %1290 = vmatpush.bf16.msra.mxu0 %v896
  %1291 = vmatpush.bf16.msra.mxu0 %v894
  %1292 = vmatpush.bf16.msra.mxu0 %v892
  %1293 = vmatpush.bf16.msra.mxu0 %v890
  %1294 = vmatmul.bf16.gmra.mxu0 %v277
  %v1295 = vpop.f32.mrf.mxu0
  %v1296 = vadd.f32 %v233, %v1295
  %v1297 = vpop.f32.mrf.mxu0
  %v1298 = vadd.f32 %v233, %v1297
  %1299 = vdwg.mxu0
  %1300 = vmatpush.bf16.msra.mxu0 %v920
  %1301 = vmatpush.bf16.msra.mxu0 %v918
  %1302 = vmatpush.bf16.msra.mxu0 %v916
  %1303 = vmatpush.bf16.msra.mxu0 %v914
  %1304 = vmatpush.bf16.msra.mxu0 %v912
  %1305 = vmatpush.bf16.msra.mxu0 %v910
  %1306 = vmatpush.bf16.msra.mxu0 %v908
  %1307 = vmatpush.bf16.msra.mxu0 %v906
  %1308 = vmatmul.bf16.gmra.mxu0 %v278
  %v1309 = vpop.f32.mrf.mxu0
  %v1310 = vadd.f32 %v1296, %v1309
  %v1311 = vpop.f32.mrf.mxu0
  %v1312 = vadd.f32 %v1298, %v1311
  %1313 = vdwg.mxu0
  %1314 = vmatpush.bf16.msra.mxu0 %v936
  %1315 = vmatpush.bf16.msra.mxu0 %v934
  %1316 = vmatpush.bf16.msra.mxu0 %v932
  %1317 = vmatpush.bf16.msra.mxu0 %v930
  %1318 = vmatpush.bf16.msra.mxu0 %v928
  %1319 = vmatpush.bf16.msra.mxu0 %v926
  %1320 = vmatpush.bf16.msra.mxu0 %v924
  %1321 = vmatpush.bf16.msra.mxu0 %v922
  %1322 = vmatmul.bf16.gmra.mxu0 %v279
  %v1323 = vpop.f32.mrf.mxu0
  %v1324 = vadd.f32 %v1310, %v1323
  %v1325 = vpop.f32.mrf.mxu0
  %v1326 = vadd.f32 %v1312, %v1325
  %1327 = vdwg.mxu0
  %1328 = vmatpush.bf16.msra.mxu0 %v952
  %1329 = vmatpush.bf16.msra.mxu0 %v950
  %1330 = vmatpush.bf16.msra.mxu0 %v948
  %1331 = vmatpush.bf16.msra.mxu0 %v946
  %1332 = vmatpush.bf16.msra.mxu0 %v944
  %1333 = vmatpush.bf16.msra.mxu0 %v942
  %1334 = vmatpush.bf16.msra.mxu0 %v940
  %1335 = vmatpush.bf16.msra.mxu0 %v938
  %1336 = vmatmul.bf16.gmra.mxu0 %v280
  %v1337 = vpop.f32.mrf.mxu0
  %v1338 = vadd.f32 %v1324, %v1337
  %v1339 = vpop.f32.mrf.mxu0
  %v1340 = vadd.f32 %v1326, %v1339
  %1341 = vdwg.mxu0
  %1342 = vmatpush.bf16.msra.mxu0 %v968
  %1343 = vmatpush.bf16.msra.mxu0 %v966
  %1344 = vmatpush.bf16.msra.mxu0 %v964
  %1345 = vmatpush.bf16.msra.mxu0 %v962
  %1346 = vmatpush.bf16.msra.mxu0 %v960
  %1347 = vmatpush.bf16.msra.mxu0 %v958
  %1348 = vmatpush.bf16.msra.mxu0 %v956
  %1349 = vmatpush.bf16.msra.mxu0 %v954
  %1350 = vmatmul.bf16.gmra.mxu0 %v281
  %v1351 = vpop.f32.mrf.mxu0
  %v1352 = vadd.f32 %v1338, %v1351
  %v1353 = vpop.f32.mrf.mxu0
  %v1354 = vadd.f32 %v1340, %v1353
  %1355 = vdwg.mxu0
  %1356 = vmatpush.bf16.msra.mxu0 %v984
  %1357 = vmatpush.bf16.msra.mxu0 %v982
  %1358 = vmatpush.bf16.msra.mxu0 %v980
  %1359 = vmatpush.bf16.msra.mxu0 %v978
  %1360 = vmatpush.bf16.msra.mxu0 %v976
  %1361 = vmatpush.bf16.msra.mxu0 %v974
  %1362 = vmatpush.bf16.msra.mxu0 %v972
  %1363 = vmatpush.bf16.msra.mxu0 %v970
  %1364 = vmatmul.bf16.gmra.mxu0 %v282
  %v1365 = vpop.f32.mrf.mxu0
  %v1366 = vadd.f32 %v1352, %v1365
  %v1367 = vpop.f32.mrf.mxu0
  %v1368 = vadd.f32 %v1354, %v1367
  %1369 = vdwg.mxu0
  %1370 = vmatpush.bf16.msra.mxu0 %v1000
  %1371 = vmatpush.bf16.msra.mxu0 %v998
  %1372 = vmatpush.bf16.msra.mxu0 %v996
  %1373 = vmatpush.bf16.msra.mxu0 %v994
  %1374 = vmatpush.bf16.msra.mxu0 %v992
  %1375 = vmatpush.bf16.msra.mxu0 %v990
  %1376 = vmatpush.bf16.msra.mxu0 %v988
  %1377 = vmatpush.bf16.msra.mxu0 %v986
  %1378 = vmatmul.bf16.gmra.mxu0 %v283
  %v1379 = vpop.f32.mrf.mxu0
  %v1380 = vadd.f32 %v1366, %v1379
  %v1381 = vpop.f32.mrf.mxu0
  %v1382 = vadd.f32 %v1368, %v1381
  %1383 = vdwg.mxu0
  %1384 = vmatpush.bf16.msra.mxu0 %v1016
  %1385 = vmatpush.bf16.msra.mxu0 %v1014
  %1386 = vmatpush.bf16.msra.mxu0 %v1012
  %1387 = vmatpush.bf16.msra.mxu0 %v1010
  %1388 = vmatpush.bf16.msra.mxu0 %v1008
  %1389 = vmatpush.bf16.msra.mxu0 %v1006
  %1390 = vmatpush.bf16.msra.mxu0 %v1004
  %1391 = vmatpush.bf16.msra.mxu0 %v1002
  %1392 = vmatmul.bf16.gmra.mxu0 %v284
  %v1393 = vpop.f32.mrf.mxu0
  %v1394 = vadd.f32 %v1380, %v1393
  %v1395 = vpop.f32.mrf.mxu0
  %v1396 = vadd.f32 %v1382, %v1395
  %1397 = vdwg.mxu0
  %1398 = vmatpush.bf16.msra.mxu0 %v1032
  %1399 = vmatpush.bf16.msra.mxu0 %v1030
  %1400 = vmatpush.bf16.msra.mxu0 %v1028
  %1401 = vmatpush.bf16.msra.mxu0 %v1026
  %1402 = vmatpush.bf16.msra.mxu0 %v1024
  %1403 = vmatpush.bf16.msra.mxu0 %v1022
  %1404 = vmatpush.bf16.msra.mxu0 %v1020
  %1405 = vmatpush.bf16.msra.mxu0 %v1018
  %1406 = vmatmul.bf16.gmra.mxu0 %v285
  %v1407 = vpop.f32.mrf.mxu0
  %v1408 = vadd.f32 %v1394, %v1407
  %v1409 = vpop.f32.mrf.mxu0
  %v1410 = vadd.f32 %v1396, %v1409
  %1411 = vdwg.mxu0
  %1412 = vmatpush.bf16.msra.mxu0 %v1048
  %1413 = vmatpush.bf16.msra.mxu0 %v1046
  %1414 = vmatpush.bf16.msra.mxu0 %v1044
  %1415 = vmatpush.bf16.msra.mxu0 %v1042
  %1416 = vmatpush.bf16.msra.mxu0 %v1040
  %1417 = vmatpush.bf16.msra.mxu0 %v1038
  %1418 = vmatpush.bf16.msra.mxu0 %v1036
  %1419 = vmatpush.bf16.msra.mxu0 %v1034
  %1420 = vmatmul.bf16.gmra.mxu0 %v286
  %v1421 = vpop.f32.mrf.mxu0
  %v1422 = vadd.f32 %v1408, %v1421
  %v1423 = vpop.f32.mrf.mxu0
  %v1424 = vadd.f32 %v1410, %v1423
  %1425 = vdwg.mxu0
  %1426 = vmatpush.bf16.msra.mxu0 %v1064
  %1427 = vmatpush.bf16.msra.mxu0 %v1062
  %1428 = vmatpush.bf16.msra.mxu0 %v1060
  %1429 = vmatpush.bf16.msra.mxu0 %v1058
  %1430 = vmatpush.bf16.msra.mxu0 %v1056
  %1431 = vmatpush.bf16.msra.mxu0 %v1054
  %1432 = vmatpush.bf16.msra.mxu0 %v1052
  %1433 = vmatpush.bf16.msra.mxu0 %v1050
  %1434 = vmatmul.bf16.gmra.mxu0 %v287
  %v1435 = vpop.f32.mrf.mxu0
  %v1436 = vadd.f32 %v1422, %v1435
  %v1437 = vpop.f32.mrf.mxu0
  %v1438 = vadd.f32 %v1424, %v1437
  %1439 = vdwg.mxu0
  %1440 = vmatpush.bf16.msra.mxu0 %v1080
  %1441 = vmatpush.bf16.msra.mxu0 %v1078
  %1442 = vmatpush.bf16.msra.mxu0 %v1076
  %1443 = vmatpush.bf16.msra.mxu0 %v1074
  %1444 = vmatpush.bf16.msra.mxu0 %v1072
  %1445 = vmatpush.bf16.msra.mxu0 %v1070
  %1446 = vmatpush.bf16.msra.mxu0 %v1068
  %1447 = vmatpush.bf16.msra.mxu0 %v1066
  %1448 = vmatmul.bf16.gmra.mxu0 %v288
  %v1449 = vpop.f32.mrf.mxu0
  %v1450 = vadd.f32 %v1436, %v1449
  %v1451 = vpop.f32.mrf.mxu0
  %v1452 = vadd.f32 %v1438, %v1451
  %1453 = vdwg.mxu0
  %1454 = vmatpush.bf16.msra.mxu0 0
  %1455 = vmatpush.bf16.msra.mxu0 0
  %1456 = vmatpush.bf16.msra.mxu0 0
  %1457 = vmatpush.bf16.msra.mxu0 0
  %1458 = vmatpush.bf16.msra.mxu0 0
  %1459 = vmatpush.bf16.msra.mxu0 0
  %1460 = vmatpush.bf16.msra.mxu0 %v1084
  %1461 = vmatpush.bf16.msra.mxu0 %v1082
  %1462 = vmatmul.bf16.gmra.mxu0 %v1284
  %v1463 = vpop.f32.mrf.mxu0
  %v1464 = vadd.f32 %v1450, %v1463
  %v1465 = vpop.f32.mrf.mxu0
  %v1466 = vadd.f32 %v1452, %v1465
  %1467 = vdwg.mxu0
  %1468 = vmatpush.bf16.msra.mxu0 %v905
  %1469 = vmatpush.bf16.msra.mxu0 %v903
  %1470 = vmatpush.bf16.msra.mxu0 %v901
  %1471 = vmatpush.bf16.msra.mxu0 %v899
  %1472 = vmatpush.bf16.msra.mxu0 %v897
  %1473 = vmatpush.bf16.msra.mxu0 %v895
  %1474 = vmatpush.bf16.msra.mxu0 %v893
  %1475 = vmatpush.bf16.msra.mxu0 %v891
  %1476 = vmatmul.bf16.gmra.mxu0 %v277
  %v1477 = vpop.f32.mrf.mxu0
  %v1478 = vadd.f32 %v234, %v1477
  %v1479 = vpop.f32.mrf.mxu0
  %v1480 = vadd.f32 %v234, %v1479
  %1481 = vdwg.mxu0
  %1482 = vmatpush.bf16.msra.mxu0 %v921
  %1483 = vmatpush.bf16.msra.mxu0 %v919
  %1484 = vmatpush.bf16.msra.mxu0 %v917
  %1485 = vmatpush.bf16.msra.mxu0 %v915
  %1486 = vmatpush.bf16.msra.mxu0 %v913
  %1487 = vmatpush.bf16.msra.mxu0 %v911
  %1488 = vmatpush.bf16.msra.mxu0 %v909
  %1489 = vmatpush.bf16.msra.mxu0 %v907
  %1490 = vmatmul.bf16.gmra.mxu0 %v278
  %v1491 = vpop.f32.mrf.mxu0
  %v1492 = vadd.f32 %v1478, %v1491
  %v1493 = vpop.f32.mrf.mxu0
  %v1494 = vadd.f32 %v1480, %v1493
  %1495 = vdwg.mxu0
  %1496 = vmatpush.bf16.msra.mxu0 %v937
  %1497 = vmatpush.bf16.msra.mxu0 %v935
  %1498 = vmatpush.bf16.msra.mxu0 %v933
  %1499 = vmatpush.bf16.msra.mxu0 %v931
  %1500 = vmatpush.bf16.msra.mxu0 %v929
  %1501 = vmatpush.bf16.msra.mxu0 %v927
  %1502 = vmatpush.bf16.msra.mxu0 %v925
  %1503 = vmatpush.bf16.msra.mxu0 %v923
  %1504 = vmatmul.bf16.gmra.mxu0 %v279
  %v1505 = vpop.f32.mrf.mxu0
  %v1506 = vadd.f32 %v1492, %v1505
  %v1507 = vpop.f32.mrf.mxu0
  %v1508 = vadd.f32 %v1494, %v1507
  %1509 = vdwg.mxu0
  %1510 = vmatpush.bf16.msra.mxu0 %v953
  %1511 = vmatpush.bf16.msra.mxu0 %v951
  %1512 = vmatpush.bf16.msra.mxu0 %v949
  %1513 = vmatpush.bf16.msra.mxu0 %v947
  %1514 = vmatpush.bf16.msra.mxu0 %v945
  %1515 = vmatpush.bf16.msra.mxu0 %v943
  %1516 = vmatpush.bf16.msra.mxu0 %v941
  %1517 = vmatpush.bf16.msra.mxu0 %v939
  %1518 = vmatmul.bf16.gmra.mxu0 %v280
  %v1519 = vpop.f32.mrf.mxu0
  %v1520 = vadd.f32 %v1506, %v1519
  %v1521 = vpop.f32.mrf.mxu0
  %v1522 = vadd.f32 %v1508, %v1521
  %1523 = vdwg.mxu0
  %1524 = vmatpush.bf16.msra.mxu0 %v969
  %1525 = vmatpush.bf16.msra.mxu0 %v967
  %1526 = vmatpush.bf16.msra.mxu0 %v965
  %1527 = vmatpush.bf16.msra.mxu0 %v963
  %1528 = vmatpush.bf16.msra.mxu0 %v961
  %1529 = vmatpush.bf16.msra.mxu0 %v959
  %1530 = vmatpush.bf16.msra.mxu0 %v957
  %1531 = vmatpush.bf16.msra.mxu0 %v955
  %1532 = vmatmul.bf16.gmra.mxu0 %v281
  %v1533 = vpop.f32.mrf.mxu0
  %v1534 = vadd.f32 %v1520, %v1533
  %v1535 = vpop.f32.mrf.mxu0
  %v1536 = vadd.f32 %v1522, %v1535
  %1537 = vdwg.mxu0
  %1538 = vmatpush.bf16.msra.mxu0 %v985
  %1539 = vmatpush.bf16.msra.mxu0 %v983
  %1540 = vmatpush.bf16.msra.mxu0 %v981
  %1541 = vmatpush.bf16.msra.mxu0 %v979
  %1542 = vmatpush.bf16.msra.mxu0 %v977
  %1543 = vmatpush.bf16.msra.mxu0 %v975
  %1544 = vmatpush.bf16.msra.mxu0 %v973
  %1545 = vmatpush.bf16.msra.mxu0 %v971
  %1546 = vmatmul.bf16.gmra.mxu0 %v282
  %v1547 = vpop.f32.mrf.mxu0
  %v1548 = vadd.f32 %v1534, %v1547
  %v1549 = vpop.f32.mrf.mxu0
  %v1550 = vadd.f32 %v1536, %v1549
  %1551 = vdwg.mxu0
  %1552 = vmatpush.bf16.msra.mxu0 %v1001
  %1553 = vmatpush.bf16.msra.mxu0 %v999
  %1554 = vmatpush.bf16.msra.mxu0 %v997
  %1555 = vmatpush.bf16.msra.mxu0 %v995
  %1556 = vmatpush.bf16.msra.mxu0 %v993
  %1557 = vmatpush.bf16.msra.mxu0 %v991
  %1558 = vmatpush.bf16.msra.mxu0 %v989
  %1559 = vmatpush.bf16.msra.mxu0 %v987
  %1560 = vmatmul.bf16.gmra.mxu0 %v283
  %v1561 = vpop.f32.mrf.mxu0
  %v1562 = vadd.f32 %v1548, %v1561
  %v1563 = vpop.f32.mrf.mxu0
  %v1564 = vadd.f32 %v1550, %v1563
  %1565 = vdwg.mxu0
  %1566 = vmatpush.bf16.msra.mxu0 %v1017
  %1567 = vmatpush.bf16.msra.mxu0 %v1015
  %1568 = vmatpush.bf16.msra.mxu0 %v1013
  %1569 = vmatpush.bf16.msra.mxu0 %v1011
  %1570 = vmatpush.bf16.msra.mxu0 %v1009
  %1571 = vmatpush.bf16.msra.mxu0 %v1007
  %1572 = vmatpush.bf16.msra.mxu0 %v1005
  %1573 = vmatpush.bf16.msra.mxu0 %v1003
  %1574 = vmatmul.bf16.gmra.mxu0 %v284
  %v1575 = vpop.f32.mrf.mxu0
  %v1576 = vadd.f32 %v1562, %v1575
  %v1577 = vpop.f32.mrf.mxu0
  %v1578 = vadd.f32 %v1564, %v1577
  %1579 = vdwg.mxu0
  %1580 = vmatpush.bf16.msra.mxu0 %v1033
  %1581 = vmatpush.bf16.msra.mxu0 %v1031
  %1582 = vmatpush.bf16.msra.mxu0 %v1029
  %1583 = vmatpush.bf16.msra.mxu0 %v1027
  %1584 = vmatpush.bf16.msra.mxu0 %v1025
  %1585 = vmatpush.bf16.msra.mxu0 %v1023
  %1586 = vmatpush.bf16.msra.mxu0 %v1021
  %1587 = vmatpush.bf16.msra.mxu0 %v1019
  %1588 = vmatmul.bf16.gmra.mxu0 %v285
  %v1589 = vpop.f32.mrf.mxu0
  %v1590 = vadd.f32 %v1576, %v1589
  %v1591 = vpop.f32.mrf.mxu0
  %v1592 = vadd.f32 %v1578, %v1591
  %1593 = vdwg.mxu0
  %1594 = vmatpush.bf16.msra.mxu0 %v1049
  %1595 = vmatpush.bf16.msra.mxu0 %v1047
  %1596 = vmatpush.bf16.msra.mxu0 %v1045
  %1597 = vmatpush.bf16.msra.mxu0 %v1043
  %1598 = vmatpush.bf16.msra.mxu0 %v1041
  %1599 = vmatpush.bf16.msra.mxu0 %v1039
  %1600 = vmatpush.bf16.msra.mxu0 %v1037
  %1601 = vmatpush.bf16.msra.mxu0 %v1035
  %1602 = vmatmul.bf16.gmra.mxu0 %v286
  %v1603 = vpop.f32.mrf.mxu0
  %v1604 = vadd.f32 %v1590, %v1603
  %v1605 = vpop.f32.mrf.mxu0
  %v1606 = vadd.f32 %v1592, %v1605
  %1607 = vdwg.mxu0
  %1608 = vmatpush.bf16.msra.mxu0 %v1065
  %1609 = vmatpush.bf16.msra.mxu0 %v1063
  %1610 = vmatpush.bf16.msra.mxu0 %v1061
  %1611 = vmatpush.bf16.msra.mxu0 %v1059
  %1612 = vmatpush.bf16.msra.mxu0 %v1057
  %1613 = vmatpush.bf16.msra.mxu0 %v1055
  %1614 = vmatpush.bf16.msra.mxu0 %v1053
  %1615 = vmatpush.bf16.msra.mxu0 %v1051
  %1616 = vmatmul.bf16.gmra.mxu0 %v287
  %v1617 = vpop.f32.mrf.mxu0
  %v1618 = vadd.f32 %v1604, %v1617
  %v1619 = vpop.f32.mrf.mxu0
  %v1620 = vadd.f32 %v1606, %v1619
  %1621 = vdwg.mxu0
  %1622 = vmatpush.bf16.msra.mxu0 %v1081
  %1623 = vmatpush.bf16.msra.mxu0 %v1079
  %1624 = vmatpush.bf16.msra.mxu0 %v1077
  %1625 = vmatpush.bf16.msra.mxu0 %v1075
  %1626 = vmatpush.bf16.msra.mxu0 %v1073
  %1627 = vmatpush.bf16.msra.mxu0 %v1071
  %1628 = vmatpush.bf16.msra.mxu0 %v1069
  %1629 = vmatpush.bf16.msra.mxu0 %v1067
  %1630 = vmatmul.bf16.gmra.mxu0 %v288
  %v1631 = vpop.f32.mrf.mxu0
  %v1632 = vadd.f32 %v1618, %v1631
  %v1633 = vpop.f32.mrf.mxu0
  %v1634 = vadd.f32 %v1620, %v1633
  %1635 = vdwg.mxu0
  %1636 = vmatpush.bf16.msra.mxu0 0
  %1637 = vmatpush.bf16.msra.mxu0 0
  %1638 = vmatpush.bf16.msra.mxu0 0
  %1639 = vmatpush.bf16.msra.mxu0 0
  %1640 = vmatpush.bf16.msra.mxu0 0
  %1641 = vmatpush.bf16.msra.mxu0 0
  %1642 = vmatpush.bf16.msra.mxu0 %v1085
  %1643 = vmatpush.bf16.msra.mxu0 %v1083
  %1644 = vmatmul.bf16.gmra.mxu0 %v1284
  %v1645 = vpop.f32.mrf.mxu0
  %v1646 = vadd.f32 %v1632, %v1645
  %v1647 = vpop.f32.mrf.mxu0
  %v1648 = vadd.f32 %v1634, %v1647
  %1649 = vdwg.mxu0
  %v1650 = vmax.f32 %v1464, 0.0
  %v1651 = vmax.f32 %v1646, 0.0
  %v1652 = vmax.f32 %v1466, 0.0
  %v1653 = vmax.f32 %v1648, 0.0
  %v1654 = vpack.c.bf16 %v1652, %v1650
  %v1655 = vpack.c.bf16 %v1653, %v1651
  %v1656 = vld [vmem:[%s3] sm:$0xf]
  %v1657 = vld [vmem:[%s3 + $0x4] sm:$0xf]
  %v1658 = vld [vmem:[%s3 + $0x8] sm:$0xf]
  %v1659 = vld [vmem:[%s3 + $0xc] sm:$0xf]
  %v1660 = vld [vmem:[%s3 + $0x10] sm:$0xf]
  %v1661 = vld [vmem:[%s3 + $0x14] sm:$0xf]
  %v1662 = vld [vmem:[%s3 + $0x18] sm:$0xf]
  %v1663 = vld [vmem:[%s3 + $0x1c] sm:$0xf]
  %v1664 = vld [vmem:[%s3 + $0x20] sm:$0xf]
  %v1665 = vld [vmem:[%s3 + $0x24] sm:$0xf]
  %v1666 = vld [vmem:[%s3 + $0x28] sm:$0xf]
  %v1667 = vld [vmem:[%s3 + $0x2c] sm:$0xf]
  %v1668 = vld [vmem:[%s3 + $0x30] sm:$0xf]
  %v1669 = vld [vmem:[%s3 + $0x34] sm:$0xf]
  %v1670 = vld [vmem:[%s3 + $0x38] sm:$0xf]
  %v1671 = vld [vmem:[%s3 + $0x3c] sm:$0xf]
  %v1672 = vld [vmem:[%s3 + $0x40] sm:$0xf]
  %v1673 = vld [vmem:[%s3 + $0x44] sm:$0xf]
  %v1674 = vld [vmem:[%s3 + $0x48] sm:$0xf]
  %v1675 = vld [vmem:[%s3 + $0x4c] sm:$0xf]
  %v1676 = vld [vmem:[%s3 + $0x50] sm:$0xf]
  %v1677 = vld [vmem:[%s3 + $0x54] sm:$0xf]
  %v1678 = vld [vmem:[%s3 + $0x58] sm:$0xf]
  %v1679 = vld [vmem:[%s3 + $0x5c] sm:$0xf]
  %v1680 = vld [vmem:[%s3 + $0x60] sm:$0xf]
  %v1681 = vld [vmem:[%s3 + $0x64] sm:$0xf]
  %v1682 = vld [vmem:[%s3 + $0x68] sm:$0xf]
  %v1683 = vld [vmem:[%s3 + $0x6c] sm:$0xf]
  %v1684 = vld [vmem:[%s3 + $0x70] sm:$0xf]
  %v1685 = vld [vmem:[%s3 + $0x74] sm:$0xf]
  %v1686 = vld [vmem:[%s3 + $0x78] sm:$0xf]
  %v1687 = vld [vmem:[%s3 + $0x7c] sm:$0xf]
  %v1688 = vld [vmem:[%s4] sm:$0x1]
  %v1690 = vperm.slane %v1688, 0
  %v1724 = vunpack.c.l.b16 %v1656
  %v1725 = vunpack.c.l.b16 %v1657
  %v1726 = vunpack.c.l.b16 %v1658
  %v1727 = vunpack.c.l.b16 %v1659
  %v1728 = vunpack.c.l.b16 %v1660
  %v1729 = vunpack.c.l.b16 %v1661
  %v1730 = vunpack.c.l.b16 %v1662
  %v1731 = vunpack.c.l.b16 %v1663
  %v1732 = vunpack.c.l.b16 %v1664
  %v1733 = vunpack.c.l.b16 %v1665
  %v1734 = vunpack.c.l.b16 %v1666
  %v1735 = vunpack.c.l.b16 %v1667
  %v1736 = vunpack.c.l.b16 %v1668
  %v1737 = vunpack.c.l.b16 %v1669
  %v1738 = vunpack.c.l.b16 %v1670
  %v1739 = vunpack.c.l.b16 %v1671
  %v1740 = vunpack.c.l.b16 %v1672
  %v1741 = vunpack.c.l.b16 %v1673
  %v1742 = vunpack.c.l.b16 %v1674
  %v1743 = vunpack.c.l.b16 %v1675
  %v1744 = vunpack.c.l.b16 %v1676
  %v1745 = vunpack.c.l.b16 %v1677
  %v1746 = vunpack.c.l.b16 %v1678
  %v1747 = vunpack.c.l.b16 %v1679
  %v1748 = vunpack.c.l.b16 %v1680
  %v1749 = vunpack.c.l.b16 %v1681
  %v1750 = vunpack.c.l.b16 %v1682
  %v1751 = vunpack.c.l.b16 %v1683
  %v1752 = vunpack.c.l.b16 %v1684
  %v1753 = vunpack.c.l.b16 %v1685
  %v1754 = vunpack.c.l.b16 %v1686
  %v1755 = vunpack.c.l.b16 %v1687
  %v1756 = vpack.c.b16 %v1725, %v1724
  %v1757 = vpack.c.b16 %v1727, %v1726
  %v1758 = vpack.c.b16 %v1729, %v1728
  %v1759 = vpack.c.b16 %v1731, %v1730
  %v1760 = vpack.c.b16 %v1733, %v1732
  %v1761 = vpack.c.b16 %v1735, %v1734
  %v1762 = vpack.c.b16 %v1737, %v1736
  %v1763 = vpack.c.b16 %v1739, %v1738
  %v1764 = vpack.c.b16 %v1741, %v1740
  %v1765 = vpack.c.b16 %v1743, %v1742
  %v1766 = vpack.c.b16 %v1745, %v1744
  %v1767 = vpack.c.b16 %v1747, %v1746
  %v1768 = vpack.c.b16 %v1749, %v1748
  %v1769 = vpack.c.b16 %v1751, %v1750
  %v1770 = vpack.c.b16 %v1753, %v1752
  %v1771 = vpack.c.b16 %v1755, %v1754
  %1788 = vmatpush.bf16.msra.mxu0 %v1763
  %1789 = vmatpush.bf16.msra.mxu0 %v1762
  %1790 = vmatpush.bf16.msra.mxu0 %v1761
  %1791 = vmatpush.bf16.msra.mxu0 %v1760
  %1792 = vmatpush.bf16.msra.mxu0 %v1759
  %1793 = vmatpush.bf16.msra.mxu0 %v1758
  %1794 = vmatpush.bf16.msra.mxu0 %v1757
  %1795 = vmatpush.bf16.msra.mxu0 %v1756
  %1796 = vmatmul.bf16.gmra.mxu0 %v1654
  %v1797 = vpop.f32.mrf.mxu0
  %v1798 = vadd.f32 %v1690, %v1797
  %v1799 = vpop.f32.mrf.mxu0
  %v1800 = vadd.f32 %v1690, %v1799
  %1801 = vdwg.mxu0
  %1802 = vmatpush.bf16.msra.mxu0 %v1771
  %1803 = vmatpush.bf16.msra.mxu0 %v1770
  %1804 = vmatpush.bf16.msra.mxu0 %v1769
  %1805 = vmatpush.bf16.msra.mxu0 %v1768
  %1806 = vmatpush.bf16.msra.mxu0 %v1767
  %1807 = vmatpush.bf16.msra.mxu0 %v1766
  %1808 = vmatpush.bf16.msra.mxu0 %v1765
  %1809 = vmatpush.bf16.msra.mxu0 %v1764
  %1810 = vmatmul.bf16.gmra.mxu0 %v1655
  %v1811 = vpop.f32.mrf.mxu0
  %v1812 = vadd.f32 %v1798, %v1811
  %v1813 = vpop.f32.mrf.mxu0
  %v1814 = vadd.f32 %v1800, %v1813
  %1815 = vdwg.mxu0
  %1816 = vmax.xlane.f32.xlu0 %v1812
  %v1817 = vpop.xlane.xlu0 %1816
  %1818 = vmax.xlane.f32.xlu0 %v1814
  %v1819 = vpop.xlane.xlu0 %1818
  %v1820 = vsub.f32 %v1812, %v1817
  %v1821 = vsub.f32 %v1814, %v1819
  %v1822 = vmul.f32 %v1820, 1.442695
  %v1823 = vpow.pop %v1822
  %v1824 = vmul.f32 %v1821, 1.442695
  %v1825 = vpow.pop %v1824
  %1826 = vadd.xlane.f32.xlu0 %v1823
  %v1827 = vpop.xlane.xlu0 %1826
  %1828 = vadd.xlane.f32.xlu0 %v1825
  %v1829 = vpop.xlane.xlu0 %1828
  %v1830 = vrcp.pop %v1827
  %v1831 = vmul.f32 %v1827, %v1830
  %v1832 = vsub.f32 1.0, %v1831
  %v1833 = vmul.f32 %v1830, %v1832
  %v1834 = vadd.f32 %v1830, %v1833
  %vm1835 = vweird.f32 %v1827
  %vm1836 = vweird.f32 %v1830
  %vm1837 = vmor %vm1835, %vm1836
  %v1838 = vsel %vm1837, %v1830, %v1834
  %v1839 = vand.u32 2147483647, %v1827
  %vm1840 = vcmp.eq.f32.partialorder %v1839, 8.507059e+37
  %v1841 = vand.u32 %v1827, 2147483648
  %v1842 = vor.u32 1.1754944e-38, %v1841
  %v1843 = vsel %vm1840, %v1842, %v1838
  %v1844 = vmul.f32 %v1823, %v1843
  %v1845 = vrcp.pop %v1829
  %v1846 = vmul.f32 %v1829, %v1845
  %v1847 = vsub.f32 1.0, %v1846
  %v1848 = vmul.f32 %v1845, %v1847
  %v1849 = vadd.f32 %v1845, %v1848
  %vm1850 = vweird.f32 %v1829
  %vm1851 = vweird.f32 %v1845
  %vm1852 = vmor %vm1850, %vm1851
  %v1853 = vsel %vm1852, %v1845, %v1849
  %v1854 = vand.u32 2147483647, %v1829
  %vm1855 = vcmp.eq.f32.partialorder %v1854, 8.507059e+37
  %v1856 = vand.u32 %v1829, 2147483648
  %v1857 = vor.u32 1.1754944e-38, %v1856
  %v1858 = vsel %vm1855, %v1857, %v1853
  %v1859 = vmul.f32 %v1825, %v1858
  %1860 = vst [vmem:[%s5] sm:$0xff] %v1844
  %1861 = vst [vmem:[%s5 + $0x8] sm:$0xff] %v1859
  // Predicated region
  $region22: #{convnet_forward.5} parent=0 // pred_check
    _
  $region23: #{convnet_forward.5} parent=0 // pred_check_branch
    %1863 = sbr.rel (0) target = $region25
  $region24: #{convnet_forward.5} parent=0 // pred_region
    _
  $region25: #{convnet_forward.5} parent=0 // pred_fallthru
    _
  // Predicated region
  $region26: #{convnet_forward.5} parent=0 // pred_check
    _
  $region27: #{convnet_forward.5} parent=0 // pred_check_branch
    %1865 = sbr.rel (0) target = $region29
  $region28: #{convnet_forward.5} parent=0 // pred_region
    _
  $region29: #{convnet_forward.5} parent=0 // pred_fallthru
    _

</llo_original>
